<compile_context>
chip_gen: v5e
topology: v5e:2x2
jax: 0.10.0
libtpu: 0.0.40
codegen_flags: <defaults>
</compile_context>

<pallas_src>
import functools

import jax
import jax.numpy as jnp
from jax.experimental import pallas as pl
from jax.experimental.pallas import tpu as pltpu


_VMEM_LIMIT = 32 * 1024 * 1024        # explicit scoped-VMEM limit (safe on v5e/v6e/v7x)

_FRONTEND_KEYS = ("conv_w", "conv_b", "fp_ln_g", "fp_ln_b", "proj_w", "proj_b")
_LAYER_KEYS = ("qkv_w", "qkv_b", "o_w", "o_b", "ln1_g", "ln1_b",
               "ff1_w", "ff1_b", "ff2_w", "ff2_b", "ln2_g", "ln2_b")


# ------------------------- small helpers -------------------------

def _row_tile(rows, cap=64):
    """rows itself (if small) or a sublane-aligned divisor <= cap."""
    if rows <= cap:
        return rows
    t = (cap // 8) * 8
    while t >= 8:
        if rows % t == 0:
            return t
        t -= 8
    return rows


def _col_tile(cols, cap=16384):
    """cols itself (if small) or a lane-aligned divisor <= cap."""
    if cols <= cap:
        return cols
    t = (cap // 128) * 128
    while t >= 128:
        if cols % t == 0:
            return t
        t -= 128
    return cols


def _const_block(w):
    """Full-array BlockSpec with a constant (0,...,0) index map (weights)."""
    idx = (0,) * w.ndim
    return pl.BlockSpec(w.shape, lambda *args, _idx=idx: _idx)


def _ln(x, g, b, eps=1e-5):
    mean = jnp.mean(x, axis=-1, keepdims=True)
    var = jnp.mean((x - mean) ** 2, axis=-1, keepdims=True)
    return (x - mean) * jax.lax.rsqrt(var + eps) * g + b


# ------------------------- kernel 1: waveform stats (T tiled) -------------------------

def _stats_kernel(x_ref, o_ref, sum_ref, sq_ref, *, total_n):
    t = pl.program_id(1)

    @pl.when(t == 0)
    def _():
        sum_ref[...] = jnp.zeros_like(sum_ref)
        sq_ref[...] = jnp.zeros_like(sq_ref)

    xb = x_ref[...]                                   # (rb, ct)
    sum_ref[...] += jnp.sum(xb, axis=-1, keepdims=True)
    sq_ref[...] += jnp.sum(xb * xb, axis=-1, keepdims=True)

    @pl.when(t == pl.num_programs(1) - 1)
    def _():
        n = jnp.float32(total_n)
        mean = sum_ref[...] / n
        var = (sq_ref[...] - n * mean * mean) / (n - 1.0)     # unbiased (torch .std)
        std = jnp.maximum(jnp.sqrt(jnp.maximum(var, 0.0)), 1e-5)  # clamp on std
        o_ref[:, 0:1] = mean
        o_ref[:, 1:2] = 1.0 / std


def waveform_stats(x):
    B, T = x.shape
    rb = _row_tile(B)
    ct = _col_tile(T)
    return pl.pallas_call(
        functools.partial(_stats_kernel, total_n=T),
        out_shape=jax.ShapeDtypeStruct((B, 2), jnp.float32),
        grid=(B // rb, T // ct),
        in_specs=[pl.BlockSpec((rb, ct), lambda r, t: (r, t))],
        out_specs=pl.BlockSpec((rb, 2), lambda r, t: (r, 0)),
        scratch_shapes=[pltpu.VMEM((rb, 1), jnp.float32),
                        pltpu.VMEM((rb, 1), jnp.float32)],
        compiler_params=pltpu.CompilerParams(
            dimension_semantics=("parallel", "arbitrary"),
            vmem_limit_bytes=_VMEM_LIMIT),
    )(x)


# ------------------------- kernel 2: fully fused encoder -------------------------

def _encoder_kernel(x_ref, stats_ref, *refs, num_layers, num_heads):
    nfw = len(_FRONTEND_KEYS)
    npl_ = len(_LAYER_KEYS)
    fw = refs[:nfw]
    lw = refs[nfw:nfw + num_layers * npl_]
    outs = refs[nfw + num_layers * npl_:]

    conv_w, conv_b, fp_ln_g, fp_ln_b, proj_w, proj_b = (r[...] for r in fw)

    # per-utterance normalization applied in-kernel (stats over the FULL waveform)
    st = stats_ref[...]                      # (1, 1, 2)
    mean = st[:, :, 0:1]
    inv_std = st[:, :, 1:2]
    frames = ((x_ref[...] - mean) * inv_std)[0]            # (S, K)

    # frontend: framed conv1d (kernel=stride=K) as matmul + GELU + LN + projection
    feats = jnp.dot(frames, conv_w, preferred_element_type=jnp.float32) + conv_b
    feats = jax.nn.gelu(feats)    # TODO(synk): tanh approx (torch GELU is erf-exact)
    h = _ln(feats, fp_ln_g, fp_ln_b)
    h = jnp.dot(h, proj_w, preferred_element_type=jnp.float32) + proj_b    # (S, H)
    outs[0][0] = h.astype(outs[0].dtype)

    S, H = h.shape
    dh = H // num_heads

    for li in range(num_layers):
        (qkv_w, qkv_b, o_w, o_b, ln1_g, ln1_b,
         ff1_w, ff1_b, ff2_w, ff2_b, ln2_g, ln2_b) = (
            r[...] for r in lw[li * npl_:(li + 1) * npl_])

        # fused QKV projection; 1/sqrt(dh) already folded into the Q weights
        qkv = jnp.dot(h, qkv_w, preferred_element_type=jnp.float32) + qkv_b
        q = qkv[:, :H].reshape(S, num_heads, dh)
        k = qkv[:, H:2 * H].reshape(S, num_heads, dh)
        v = qkv[:, 2 * H:3 * H].reshape(S, num_heads, dh)

        # all heads batched in one dot_general (no per-head unroll, no concat)
        s = jnp.einsum('qnd,knd->nqk', q, k, preferred_element_type=jnp.float32)
        s = s - jnp.max(s, axis=-1, keepdims=True)
        p = jnp.exp(s)
        p = p / jnp.sum(p, axis=-1, keepdims=True)          # exact softmax
        attn = jnp.einsum('nqk,knd->qnd', p, v,
                          preferred_element_type=jnp.float32).reshape(S, H)

        ao = jnp.dot(attn, o_w, preferred_element_type=jnp.float32) + o_b
        h1 = _ln(h + ao, ln1_g, ln1_b)

        f = jnp.dot(h1, ff1_w, preferred_element_type=jnp.float32) + ff1_b
        f = jax.nn.gelu(f)
        f = jnp.dot(f, ff2_w, preferred_element_type=jnp.float32) + ff2_b
        h = _ln(h1 + f, ln2_g, ln2_b)
        outs[li + 1][0] = h.astype(outs[li + 1].dtype)


def encoder_fused(x_framed, stats, params):
    B, S, K = x_framed.shape
    H = params["proj_w"].shape[1]
    L = len(params["layers"])

    weights = [params[k] for k in _FRONTEND_KEYS]
    for lp in params["layers"]:
        weights += [lp[k] for k in _LAYER_KEYS]
    w_specs = [_const_block(w) for w in weights]

    out_shape = tuple(jax.ShapeDtypeStruct((B, S, H), x_framed.dtype)
                      for _ in range(L + 1))
    out_specs = tuple(pl.BlockSpec((1, S, H), lambda b: (b, 0, 0))
                      for _ in range(L + 1))

    outs = pl.pallas_call(
        functools.partial(_encoder_kernel, num_layers=L,
                          num_heads=params["num_heads"]),
        out_shape=out_shape,
        grid=(B,),
        in_specs=[pl.BlockSpec((1, S, K), lambda b: (b, 0, 0)),
                  pl.BlockSpec((1, 1, 2), lambda b: (b, 0, 0))] + w_specs,
        out_specs=out_specs,
        compiler_params=pltpu.CompilerParams(
            dimension_semantics=("parallel",),
            vmem_limit_bytes=_VMEM_LIMIT),
    )(x_framed, stats, *weights)
    return tuple(outs)


# ------------------------- parameters -------------------------

def init_params(key, frame_size=10, conv_dim=32, hidden=32, num_heads=4,
                ffn=64, num_layers=2):
    keys = jax.random.split(key, 2 + num_layers)

    def w(k, shape, scale=0.02):
        return (scale * jax.random.normal(k, shape)).astype(jnp.float32)

    params = {
        "frame_size": frame_size,
        "num_heads": num_heads,
        "conv_w": w(keys[0], (frame_size, conv_dim)),       # conv1d k=stride=frame_size
        "conv_b": jnp.zeros((1, conv_dim), jnp.float32),    # biases pre-broadcast (1, N)
        "fp_ln_g": jnp.ones((1, conv_dim), jnp.float32),
        "fp_ln_b": jnp.zeros((1, conv_dim), jnp.float32),
        "proj_w": w(keys[1], (conv_dim, hidden)),
        "proj_b": jnp.zeros((1, hidden), jnp.float32),
        "layers": [],
    }
    dh = hidden // num_heads
    attn_scale = 1.0 / float(dh) ** 0.5
    for i in range(num_layers):
        lk = jax.random.split(keys[2 + i], 6)
        params["layers"].append({
            # Q, K, V fused into one (H, 3H) projection for a lane-dense MXU
            # output; the 1/sqrt(dh) attention scale is folded into the Q
            # slice (the Q bias is zero, so no bias scaling is required).
            "qkv_w": jnp.concatenate([w(lk[0], (hidden, hidden)) * attn_scale,
                                      w(lk[1], (hidden, hidden)),
                                      w(lk[2], (hidden, hidden))], axis=1),
            "qkv_b": jnp.zeros((1, 3 * hidden), jnp.float32),
            "o_w": w(lk[3], (hidden, hidden)),
            "o_b": jnp.zeros((1, hidden), jnp.float32),
            "ln1_g": jnp.ones((1, hidden), jnp.float32),
            "ln1_b": jnp.zeros((1, hidden), jnp.float32),
            "ff1_w": w(lk[4], (hidden, ffn)),
            "ff1_b": jnp.zeros((1, ffn), jnp.float32),
            "ff2_w": w(lk[5], (ffn, hidden)),
            "ff2_b": jnp.zeros((1, hidden), jnp.float32),
            "ln2_g": jnp.ones((1, hidden), jnp.float32),
            "ln2_b": jnp.zeros((1, hidden), jnp.float32),
        })
    return params


# ------------------------- forward (SSLEncoder.forward) -------------------------

def ssl_encoder_forward(x, params):
    # if x.dim() == 3: x = x.squeeze(1)
    if x.ndim == 3:
        x = jnp.squeeze(x, axis=1)
    B, T = x.shape
    K = params["frame_size"]
    S = T // K

    # pass 1: per-utterance mean / clamped unbiased std over the FULL waveform
    stats = waveform_stats(x).reshape(B, 1, 2)

    # pass 2: normalization-apply + framed conv + projection + all transformer
    # layers fused in ONE pallas_call; framing is a free wrapper-side reshape
    # (no pad, no normalized-waveform HBM round trip).
    x_framed = x[:, :S * K].reshape(B, S, K)
    return encoder_fused(x_framed, stats, params)


if __name__ == "__main__":
    key = jax.random.PRNGKey(0)
    kparam, kx = jax.random.split(key)
    params = init_params(kparam)

    B, T = 2, 160                      # small raw-audio waveform
    x = jax.random.normal(kx, (B, 1, T), dtype=jnp.float32)   # (B, 1, T) torch-style input

    fwd = jax.jit(lambda inp: ssl_encoder_forward(inp, params))
    hidden_states = fwd(x)
    jax.block_until_ready(hidden_states)

    assert len(hidden_states) == len(params["layers"]) + 1
    S = T // params["frame_size"]
    for hs in hidden_states:
        assert hs.shape == (B, S, 32)

    print("KERNEL_OK")
</pallas_src>

<mosaic_0001>
module attributes {stable_mosaic.version = 11 : i64} {
  func.func @_stats_kernel(%arg0: i32, %arg1: i32, %arg2: memref<2x160xf32, #tpu.memory_space<vmem>>, %arg3: memref<2x2xf32, #tpu.memory_space<vmem>>, %arg4: memref<2x1xf32, #tpu.memory_space<vmem>>, %arg5: memref<2x1xf32, #tpu.memory_space<vmem>>) attributes {dimension_semantics = [#tpu.dimension_semantics<parallel>, #tpu.dimension_semantics<arbitrary>], iteration_bounds = array<i64: 1, 1>, scalar_prefetch = 0 : i64, scratch_operands = 2 : i64, tpu.core_type = #tpu.core_type<tc>, window_params = [{transform_indices = @transform_0, window_bounds = array<i64: 2, 160>}, {transform_indices = @transform_1, window_bounds = array<i64: 2, 2>}]} {
    %c0_i32 = arith.constant 0 : i32
    %0 = arith.cmpi eq, %arg1, %c0_i32 : i32
    %1 = arith.extui %0 : i1 to i32
    %c0_i32_0 = arith.constant 0 : i32
    %2 = arith.cmpi ne, %1, %c0_i32_0 : i32
    scf.if %2 {
      %cst_13 = arith.constant 0.000000e+00 : f32
      %18 = vector.broadcast %cst_13 : f32 to vector<2x1xf32>
      %c0_14 = arith.constant 0 : index
      %c0_15 = arith.constant 0 : index
      %19 = vector.load %arg4[%c0_14, %c0_15] : memref<2x1xf32, #tpu.memory_space<vmem>>, vector<2x1xf32>
      tpu.vector_store %arg4[%c0_14, %c0_15], %18 {strides = array<i32>} : memref<2x1xf32, #tpu.memory_space<vmem>>, vector<2x1xf32>,
      %cst_16 = arith.constant 0.000000e+00 : f32
      %20 = vector.broadcast %cst_16 : f32 to vector<2x1xf32>
      %c0_17 = arith.constant 0 : index
      %c0_18 = arith.constant 0 : index
      %21 = vector.load %arg5[%c0_17, %c0_18] : memref<2x1xf32, #tpu.memory_space<vmem>>, vector<2x1xf32>
      tpu.vector_store %arg5[%c0_17, %c0_18], %20 {strides = array<i32>} : memref<2x1xf32, #tpu.memory_space<vmem>>, vector<2x1xf32>,
    } else {
    }
    %c0 = arith.constant 0 : index
    %c0_1 = arith.constant 0 : index
    %3 = vector.load %arg2[%c0, %c0_1] : memref<2x160xf32, #tpu.memory_space<vmem>>, vector<2x160xf32>
    %c0_2 = arith.constant 0 : index
    %c0_3 = arith.constant 0 : index
    %4 = vector.load %arg4[%c0_2, %c0_3] : memref<2x1xf32, #tpu.memory_space<vmem>>, vector<2x1xf32>
    %cst = arith.constant dense<0.000000e+00> : vector<2xf32>
    %5 = vector.multi_reduction <add>, %3, %cst [1] : vector<2x160xf32> to vector<2xf32>
    %6 = vector.shape_cast %5 : vector<2xf32> to vector<2x1xf32>
    %7 = arith.addf %4, %6 : vector<2x1xf32>
    %c0_4 = arith.constant 0 : index
    %c0_5 = arith.constant 0 : index
    %8 = vector.load %arg4[%c0_4, %c0_5] : memref<2x1xf32, #tpu.memory_space<vmem>>, vector<2x1xf32>
    tpu.vector_store %arg4[%c0_4, %c0_5], %7 {strides = array<i32>} : memref<2x1xf32, #tpu.memory_space<vmem>>, vector<2x1xf32>,
    %c0_6 = arith.constant 0 : index
    %c0_7 = arith.constant 0 : index
    %9 = vector.load %arg5[%c0_6, %c0_7] : memref<2x1xf32, #tpu.memory_space<vmem>>, vector<2x1xf32>
    %10 = arith.mulf %3, %3 : vector<2x160xf32>
    %cst_8 = arith.constant dense<0.000000e+00> : vector<2xf32>
    %11 = vector.multi_reduction <add>, %10, %cst_8 [1] : vector<2x160xf32> to vector<2xf32>
    %12 = vector.shape_cast %11 : vector<2xf32> to vector<2x1xf32>
    %13 = arith.addf %9, %12 : vector<2x1xf32>
    %c0_9 = arith.constant 0 : index
    %c0_10 = arith.constant 0 : index
    %14 = vector.load %arg5[%c0_9, %c0_10] : memref<2x1xf32, #tpu.memory_space<vmem>>, vector<2x1xf32>
    tpu.vector_store %arg5[%c0_9, %c0_10], %13 {strides = array<i32>} : memref<2x1xf32, #tpu.memory_space<vmem>>, vector<2x1xf32>,
    %c0_i32_11 = arith.constant 0 : i32
    %15 = arith.cmpi eq, %arg1, %c0_i32_11 : i32
    %16 = arith.extui %15 : i1 to i32
    %c0_i32_12 = arith.constant 0 : i32
    %17 = arith.cmpi ne, %16, %c0_i32_12 : i32
    scf.if %17 {
      %c0_13 = arith.constant 0 : index
      %c0_14 = arith.constant 0 : index
      %18 = vector.load %arg4[%c0_13, %c0_14] : memref<2x1xf32, #tpu.memory_space<vmem>>, vector<2x1xf32>
      %cst_15 = arith.constant 1.600000e+02 : f32
      %19 = vector.broadcast %cst_15 : f32 to vector<2x1xf32>
      %20 = arith.divf %18, %19 : vector<2x1xf32>
      %c0_16 = arith.constant 0 : index
      %c0_17 = arith.constant 0 : index
      %21 = vector.load %arg5[%c0_16, %c0_17] : memref<2x1xf32, #tpu.memory_space<vmem>>, vector<2x1xf32>
      %cst_18 = arith.constant 1.600000e+02 : f32
      %22 = vector.broadcast %cst_18 : f32 to vector<2x1xf32>
      %23 = arith.mulf %22, %20 : vector<2x1xf32>
      %24 = arith.mulf %23, %20 : vector<2x1xf32>
      %25 = arith.subf %21, %24 : vector<2x1xf32>
      %cst_19 = arith.constant 1.600000e+02 : f32
      %cst_20 = arith.constant 1.000000e+00 : f32
      %26 = arith.subf %cst_19, %cst_20 : f32
      %27 = vector.broadcast %26 : f32 to vector<2x1xf32>
      %28 = arith.divf %25, %27 : vector<2x1xf32>
      %cst_21 = arith.constant 0.000000e+00 : f32
      %29 = vector.broadcast %cst_21 : f32 to vector<2x1xf32>
      %30 = arith.maximumf %28, %29 : vector<2x1xf32>
      %31 = math.sqrt %30 : vector<2x1xf32>
      %cst_22 = arith.constant 9.99999974E-6 : f32
      %32 = vector.broadcast %cst_22 : f32 to vector<2x1xf32>
      %33 = arith.maximumf %31, %32 : vector<2x1xf32>
      %c0_23 = arith.constant 0 : index
      %c0_24 = arith.constant 0 : index
      %34 = vector.load %arg3[%c0_23, %c0_24] : memref<2x2xf32, #tpu.memory_space<vmem>>, vector<2x1xf32>
      tpu.vector_store %arg3[%c0_23, %c0_24], %20 {strides = array<i32>} : memref<2x2xf32, #tpu.memory_space<vmem>>, vector<2x1xf32>,
      %cst_25 = arith.constant 1.000000e+00 : f32
      %35 = vector.broadcast %cst_25 : f32 to vector<2x1xf32>
      %36 = arith.divf %35, %33 : vector<2x1xf32>
      %c0_26 = arith.constant 0 : index
      %c1 = arith.constant 1 : index
      %37 = vector.load %arg3[%c0_26, %c1] : memref<2x2xf32, #tpu.memory_space<vmem>>, vector<2x1xf32>
      tpu.vector_store %arg3[%c0_26, %c1], %36 {strides = array<i32>} : memref<2x2xf32, #tpu.memory_space<vmem>>, vector<2x1xf32>,
    } else {
    }
    return
  }
  func.func @transform_0(%arg0: i32, %arg1: i32) -> (i32, i32) {
    %c0_i32 = arith.constant 0 : i32
    return %arg0, %arg1 : i32, i32
  }
  func.func @transform_1(%arg0: i32, %arg1: i32) -> (i32, i32) {
    %c0_i32 = arith.constant 0 : i32
    %c0_i32_0 = arith.constant 0 : i32
    return %arg0, %c0_i32 : i32, i32
  }
}

module attributes {stable_mosaic.version = 11 : i64} {
  func.func @_encoder_kernel(%arg0: i32, %arg1: memref<1x16x10xf32, #tpu.memory_space<vmem>>, %arg2: memref<1x1x2xf32, #tpu.memory_space<vmem>>, %arg3: memref<10x32xf32, #tpu.memory_space<vmem>>, %arg4: memref<1x32xf32, #tpu.memory_space<vmem>>, %arg5: memref<1x32xf32, #tpu.memory_space<vmem>>, %arg6: memref<1x32xf32, #tpu.memory_space<vmem>>, %arg7: memref<32x32xf32, #tpu.memory_space<vmem>>, %arg8: memref<1x32xf32, #tpu.memory_space<vmem>>, %arg9: memref<32x96xf32, #tpu.memory_space<vmem>>, %arg10: memref<1x96xf32, #tpu.memory_space<vmem>>, %arg11: memref<32x32xf32, #tpu.memory_space<vmem>>, %arg12: memref<1x32xf32, #tpu.memory_space<vmem>>, %arg13: memref<1x32xf32, #tpu.memory_space<vmem>>, %arg14: memref<1x32xf32, #tpu.memory_space<vmem>>, %arg15: memref<32x64xf32, #tpu.memory_space<vmem>>, %arg16: memref<1x64xf32, #tpu.memory_space<vmem>>, %arg17: memref<64x32xf32, #tpu.memory_space<vmem>>, %arg18: memref<1x32xf32, #tpu.memory_space<vmem>>, %arg19: memref<1x32xf32, #tpu.memory_space<vmem>>, %arg20: memref<1x32xf32, #tpu.memory_space<vmem>>, %arg21: memref<32x96xf32, #tpu.memory_space<vmem>>, %arg22: memref<1x96xf32, #tpu.memory_space<vmem>>, %arg23: memref<32x32xf32, #tpu.memory_space<vmem>>, %arg24: memref<1x32xf32, #tpu.memory_space<vmem>>, %arg25: memref<1x32xf32, #tpu.memory_space<vmem>>, %arg26: memref<1x32xf32, #tpu.memory_space<vmem>>, %arg27: memref<32x64xf32, #tpu.memory_space<vmem>>, %arg28: memref<1x64xf32, #tpu.memory_space<vmem>>, %arg29: memref<64x32xf32, #tpu.memory_space<vmem>>, %arg30: memref<1x32xf32, #tpu.memory_space<vmem>>, %arg31: memref<1x32xf32, #tpu.memory_space<vmem>>, %arg32: memref<1x32xf32, #tpu.memory_space<vmem>>, %arg33: memref<1x16x32xf32, #tpu.memory_space<vmem>>, %arg34: memref<1x16x32xf32, #tpu.memory_space<vmem>>, %arg35: memref<1x16x32xf32, #tpu.memory_space<vmem>>) attributes {dimension_semantics = [#tpu.dimension_semantics<parallel>], iteration_bounds = array<i64: 2>, scalar_prefetch = 0 : i64, scratch_operands = 0 : i64, tpu.core_type = #tpu.core_type<tc>, window_params = [{transform_indices = @transform_0, window_bounds = array<i64: 1, 16, 10>}, {transform_indices = @transform_1, window_bounds = array<i64: 1, 1, 2>}, {pipeline_mode = #tpu.pipeline_mode<synchronous>, transform_indices = @transform_2, window_bounds = array<i64: 10, 32>}, {pipeline_mode = #tpu.pipeline_mode<synchronous>, transform_indices = @transform_3, window_bounds = array<i64: 1, 32>}, {pipeline_mode = #tpu.pipeline_mode<synchronous>, transform_indices = @transform_4, window_bounds = array<i64: 1, 32>}, {pipeline_mode = #tpu.pipeline_mode<synchronous>, transform_indices = @transform_5, window_bounds = array<i64: 1, 32>}, {pipeline_mode = #tpu.pipeline_mode<synchronous>, transform_indices = @transform_6, window_bounds = array<i64: 32, 32>}, {pipeline_mode = #tpu.pipeline_mode<synchronous>, transform_indices = @transform_7, window_bounds = array<i64: 1, 32>}, {pipeline_mode = #tpu.pipeline_mode<synchronous>, transform_indices = @transform_8, window_bounds = array<i64: 32, 96>}, {pipeline_mode = #tpu.pipeline_mode<synchronous>, transform_indices = @transform_9, window_bounds = array<i64: 1, 96>}, {pipeline_mode = #tpu.pipeline_mode<synchronous>, transform_indices = @transform_10, window_bounds = array<i64: 32, 32>}, {pipeline_mode = #tpu.pipeline_mode<synchronous>, transform_indices = @transform_11, window_bounds = array<i64: 1, 32>}, {pipeline_mode = #tpu.pipeline_mode<synchronous>, transform_indices = @transform_12, window_bounds = array<i64: 1, 32>}, {pipeline_mode = #tpu.pipeline_mode<synchronous>, transform_indices = @transform_13, window_bounds = array<i64: 1, 32>}, {pipeline_mode = #tpu.pipeline_mode<synchronous>, transform_indices = @transform_14, window_bounds = array<i64: 32, 64>}, {pipeline_mode = #tpu.pipeline_mode<synchronous>, transform_indices = @transform_15, window_bounds = array<i64: 1, 64>}, {pipeline_mode = #tpu.pipeline_mode<synchronous>, transform_indices = @transform_16, window_bounds = array<i64: 64, 32>}, {pipeline_mode = #tpu.pipeline_mode<synchronous>, transform_indices = @transform_17, window_bounds = array<i64: 1, 32>}, {pipeline_mode = #tpu.pipeline_mode<synchronous>, transform_indices = @transform_18, window_bounds = array<i64: 1, 32>}, {pipeline_mode = #tpu.pipeline_mode<synchronous>, transform_indices = @transform_19, window_bounds = array<i64: 1, 32>}, {pipeline_mode = #tpu.pipeline_mode<synchronous>, transform_indices = @transform_20, window_bounds = array<i64: 32, 96>}, {pipeline_mode = #tpu.pipeline_mode<synchronous>, transform_indices = @transform_21, window_bounds = array<i64: 1, 96>}, {pipeline_mode = #tpu.pipeline_mode<synchronous>, transform_indices = @transform_22, window_bounds = array<i64: 32, 32>}, {pipeline_mode = #tpu.pipeline_mode<synchronous>, transform_indices = @transform_23, window_bounds = array<i64: 1, 32>}, {pipeline_mode = #tpu.pipeline_mode<synchronous>, transform_indices = @transform_24, window_bounds = array<i64: 1, 32>}, {pipeline_mode = #tpu.pipeline_mode<synchronous>, transform_indices = @transform_25, window_bounds = array<i64: 1, 32>}, {pipeline_mode = #tpu.pipeline_mode<synchronous>, transform_indices = @transform_26, window_bounds = array<i64: 32, 64>}, {pipeline_mode = #tpu.pipeline_mode<synchronous>, transform_indices = @transform_27, window_bounds = array<i64: 1, 64>}, {pipeline_mode = #tpu.pipeline_mode<synchronous>, transform_indices = @transform_28, window_bounds = array<i64: 64, 32>}, {pipeline_mode = #tpu.pipeline_mode<synchronous>, transform_indices = @transform_29, window_bounds = array<i64: 1, 32>}, {pipeline_mode = #tpu.pipeline_mode<synchronous>, transform_indices = @transform_30, window_bounds = array<i64: 1, 32>}, {pipeline_mode = #tpu.pipeline_mode<synchronous>, transform_indices = @transform_31, window_bounds = array<i64: 1, 32>}, {transform_indices = @transform_32, window_bounds = array<i64: 1, 16, 32>}, {transform_indices = @transform_33, window_bounds = array<i64: 1, 16, 32>}, {transform_indices = @transform_34, window_bounds = array<i64: 1, 16, 32>}]} {
    %c0 = arith.constant 0 : index
    %c0_0 = arith.constant 0 : index
    %0 = vector.load %arg3[%c0, %c0_0] : memref<10x32xf32, #tpu.memory_space<vmem>>, vector<10x32xf32>
    %c0_1 = arith.constant 0 : index
    %c0_2 = arith.constant 0 : index
    %1 = vector.load %arg4[%c0_1, %c0_2] : memref<1x32xf32, #tpu.memory_space<vmem>>, vector<1x32xf32>
    %c0_3 = arith.constant 0 : index
    %c0_4 = arith.constant 0 : index
    %2 = vector.load %arg5[%c0_3, %c0_4] : memref<1x32xf32, #tpu.memory_space<vmem>>, vector<1x32xf32>
    %c0_5 = arith.constant 0 : index
    %c0_6 = arith.constant 0 : index
    %3 = vector.load %arg6[%c0_5, %c0_6] : memref<1x32xf32, #tpu.memory_space<vmem>>, vector<1x32xf32>
    %c0_7 = arith.constant 0 : index
    %c0_8 = arith.constant 0 : index
    %4 = vector.load %arg7[%c0_7, %c0_8] : memref<32x32xf32, #tpu.memory_space<vmem>>, vector<32x32xf32>
    %c0_9 = arith.constant 0 : index
    %c0_10 = arith.constant 0 : index
    %5 = vector.load %arg8[%c0_9, %c0_10] : memref<1x32xf32, #tpu.memory_space<vmem>>, vector<1x32xf32>
    %c0_11 = arith.constant 0 : index
    %c0_12 = arith.constant 0 : index
    %c0_13 = arith.constant 0 : index
    %6 = vector.load %arg2[%c0_11, %c0_12, %c0_13] : memref<1x1x2xf32, #tpu.memory_space<vmem>>, vector<1x1x2xf32>
    %7 = vector.extract_strided_slice %6 {offsets = [0, 0, 0], sizes = [1, 1, 1], strides = [1, 1, 1]} : vector<1x1x2xf32> to vector<1x1x1xf32>
    %8 = vector.extract_strided_slice %6 {offsets = [0, 0, 1], sizes = [1, 1, 1], strides = [1, 1, 1]} : vector<1x1x2xf32> to vector<1x1x1xf32>
    %c0_14 = arith.constant 0 : index
    %c0_15 = arith.constant 0 : index
    %c0_16 = arith.constant 0 : index
    %9 = vector.load %arg1[%c0_14, %c0_15, %c0_16] : memref<1x16x10xf32, #tpu.memory_space<vmem>>, vector<1x16x10xf32>
    %10 = vector.broadcast %7 : vector<1x1x1xf32> to vector<1x16x10xf32>
    %11 = arith.subf %9, %10 : vector<1x16x10xf32>
    %12 = vector.broadcast %8 : vector<1x1x1xf32> to vector<1x16x10xf32>
    %13 = arith.mulf %11, %12 : vector<1x16x10xf32>
    %14 = vector.shape_cast %13 : vector<1x16x10xf32> to vector<16x10xf32>
    %cst = arith.constant dense<0.000000e+00> : vector<16x32xf32>
    %15 = tpu.matmul %14, %0, %cst {dimension_numbers = #tpu.dot_dimension_numbers<[1], [0], [0], [1], [0, 0, 1, 1], [], []>} : vector<16x10xf32>, vector<10x32xf32>, vector<16x32xf32> -> vector<16x32xf32>
    %16 = vector.broadcast %1 : vector<1x32xf32> to vector<16x32xf32>
    %17 = arith.addf %15, %16 : vector<16x32xf32>
    %18 = arith.mulf %17, %17 : vector<16x32xf32>
    %19 = arith.mulf %17, %18 : vector<16x32xf32>
    %cst_17 = arith.constant 4.471500e-02 : f32
    %20 = vector.broadcast %cst_17 : f32 to vector<16x32xf32>
    %21 = arith.mulf %20, %19 : vector<16x32xf32>
    %22 = arith.addf %17, %21 : vector<16x32xf32>
    %cst_18 = arith.constant 0.797884583 : f32
    %23 = vector.broadcast %cst_18 : f32 to vector<16x32xf32>
    %24 = arith.mulf %23, %22 : vector<16x32xf32>
    %25 = math.tanh %24 : vector<16x32xf32>
    %cst_19 = arith.constant 1.000000e+00 : f32
    %26 = vector.broadcast %cst_19 : f32 to vector<16x32xf32>
    %27 = arith.addf %26, %25 : vector<16x32xf32>
    %cst_20 = arith.constant 5.000000e-01 : f32
    %28 = vector.broadcast %cst_20 : f32 to vector<16x32xf32>
    %29 = arith.mulf %28, %27 : vector<16x32xf32>
    %30 = arith.mulf %17, %29 : vector<16x32xf32>
    %cst_21 = arith.constant dense<0.000000e+00> : vector<16xf32>
    %31 = vector.multi_reduction <add>, %30, %cst_21 [1] : vector<16x32xf32> to vector<16xf32>
    %32 = vector.shape_cast %31 : vector<16xf32> to vector<16x1xf32>
    %cst_22 = arith.constant 3.200000e+01 : f32
    %33 = vector.broadcast %cst_22 : f32 to vector<16x1xf32>
    %34 = arith.divf %32, %33 : vector<16x1xf32>
    %35 = vector.broadcast %34 : vector<16x1xf32> to vector<16x32xf32>
    %36 = arith.subf %30, %35 : vector<16x32xf32>
    %37 = arith.mulf %36, %36 : vector<16x32xf32>
    %cst_23 = arith.constant dense<0.000000e+00> : vector<16xf32>
    %38 = vector.multi_reduction <add>, %37, %cst_23 [1] : vector<16x32xf32> to vector<16xf32>
    %39 = vector.shape_cast %38 : vector<16xf32> to vector<16x1xf32>
    %cst_24 = arith.constant 3.200000e+01 : f32
    %40 = vector.broadcast %cst_24 : f32 to vector<16x1xf32>
    %41 = arith.divf %39, %40 : vector<16x1xf32>
    %42 = vector.broadcast %34 : vector<16x1xf32> to vector<16x32xf32>
    %43 = arith.subf %30, %42 : vector<16x32xf32>
    %cst_25 = arith.constant 9.99999974E-6 : f32
    %44 = vector.broadcast %cst_25 : f32 to vector<16x1xf32>
    %45 = arith.addf %41, %44 : vector<16x1xf32>
    %46 = math.rsqrt %45 : vector<16x1xf32>
    %47 = vector.broadcast %46 : vector<16x1xf32> to vector<16x32xf32>
    %48 = arith.mulf %43, %47 : vector<16x32xf32>
    %49 = vector.broadcast %2 : vector<1x32xf32> to vector<16x32xf32>
    %50 = arith.mulf %48, %49 : vector<16x32xf32>
    %51 = vector.broadcast %3 : vector<1x32xf32> to vector<16x32xf32>
    %52 = arith.addf %50, %51 : vector<16x32xf32>
    %cst_26 = arith.constant dense<0.000000e+00> : vector<16x32xf32>
    %53 = tpu.matmul %52, %4, %cst_26 {dimension_numbers = #tpu.dot_dimension_numbers<[1], [0], [0], [1], [0, 0, 1, 1], [], []>} : vector<16x32xf32>, vector<32x32xf32>, vector<16x32xf32> -> vector<16x32xf32>
    %54 = vector.broadcast %5 : vector<1x32xf32> to vector<16x32xf32>
    %55 = arith.addf %53, %54 : vector<16x32xf32>
    %c0_27 = arith.constant 0 : index
    %c0_28 = arith.constant 0 : index
    %c0_29 = arith.constant 0 : index
    %56 = vector.load %arg33[%c0_27, %c0_28, %c0_29] : memref<1x16x32xf32, #tpu.memory_space<vmem>>, vector<1x16x32xf32>
    %57 = vector.shape_cast %56 : vector<1x16x32xf32> to vector<16x32xf32>
    %58 = vector.shape_cast %55 : vector<16x32xf32> to vector<1x16x32xf32>
    tpu.vector_store %arg33[%c0_27, %c0_28, %c0_29], %58 {strides = array<i32>} : memref<1x16x32xf32, #tpu.memory_space<vmem>>, vector<1x16x32xf32>,
    %c0_30 = arith.constant 0 : index
    %c0_31 = arith.constant 0 : index
    %59 = vector.load %arg9[%c0_30, %c0_31] : memref<32x96xf32, #tpu.memory_space<vmem>>, vector<32x96xf32>
    %c0_32 = arith.constant 0 : index
    %c0_33 = arith.constant 0 : index
    %60 = vector.load %arg10[%c0_32, %c0_33] : memref<1x96xf32, #tpu.memory_space<vmem>>, vector<1x96xf32>
    %c0_34 = arith.constant 0 : index
    %c0_35 = arith.constant 0 : index
    %61 = vector.load %arg11[%c0_34, %c0_35] : memref<32x32xf32, #tpu.memory_space<vmem>>, vector<32x32xf32>
    %c0_36 = arith.constant 0 : index
    %c0_37 = arith.constant 0 : index
    %62 = vector.load %arg12[%c0_36, %c0_37] : memref<1x32xf32, #tpu.memory_space<vmem>>, vector<1x32xf32>
    %c0_38 = arith.constant 0 : index
    %c0_39 = arith.constant 0 : index
    %63 = vector.load %arg13[%c0_38, %c0_39] : memref<1x32xf32, #tpu.memory_space<vmem>>, vector<1x32xf32>
    %c0_40 = arith.constant 0 : index
    %c0_41 = arith.constant 0 : index
    %64 = vector.load %arg14[%c0_40, %c0_41] : memref<1x32xf32, #tpu.memory_space<vmem>>, vector<1x32xf32>
    %c0_42 = arith.constant 0 : index
    %c0_43 = arith.constant 0 : index
    %65 = vector.load %arg15[%c0_42, %c0_43] : memref<32x64xf32, #tpu.memory_space<vmem>>, vector<32x64xf32>
    %c0_44 = arith.constant 0 : index
    %c0_45 = arith.constant 0 : index
    %66 = vector.load %arg16[%c0_44, %c0_45] : memref<1x64xf32, #tpu.memory_space<vmem>>, vector<1x64xf32>
    %c0_46 = arith.constant 0 : index
    %c0_47 = arith.constant 0 : index
    %67 = vector.load %arg17[%c0_46, %c0_47] : memref<64x32xf32, #tpu.memory_space<vmem>>, vector<64x32xf32>
    %c0_48 = arith.constant 0 : index
    %c0_49 = arith.constant 0 : index
    %68 = vector.load %arg18[%c0_48, %c0_49] : memref<1x32xf32, #tpu.memory_space<vmem>>, vector<1x32xf32>
    %c0_50 = arith.constant 0 : index
    %c0_51 = arith.constant 0 : index
    %69 = vector.load %arg19[%c0_50, %c0_51] : memref<1x32xf32, #tpu.memory_space<vmem>>, vector<1x32xf32>
    %c0_52 = arith.constant 0 : index
    %c0_53 = arith.constant 0 : index
    %70 = vector.load %arg20[%c0_52, %c0_53] : memref<1x32xf32, #tpu.memory_space<vmem>>, vector<1x32xf32>
    %cst_54 = arith.constant dense<0.000000e+00> : vector<16x96xf32>
    %71 = tpu.matmul %55, %59, %cst_54 {dimension_numbers = #tpu.dot_dimension_numbers<[1], [0], [0], [1], [0, 0, 1, 1], [], []>} : vector<16x32xf32>, vector<32x96xf32>, vector<16x96xf32> -> vector<16x96xf32>
    %72 = vector.broadcast %60 : vector<1x96xf32> to vector<16x96xf32>
    %73 = arith.addf %71, %72 : vector<16x96xf32>
    %74 = vector.extract_strided_slice %73 {offsets = [0, 0], sizes = [16, 32], strides = [1, 1]} : vector<16x96xf32> to vector<16x32xf32>
    %75 = vector.shape_cast %74 : vector<16x32xf32> to vector<16x4x8xf32>
    %76 = vector.extract_strided_slice %73 {offsets = [0, 32], sizes = [16, 32], strides = [1, 1]} : vector<16x96xf32> to vector<16x32xf32>
    %77 = vector.shape_cast %76 : vector<16x32xf32> to vector<16x4x8xf32>
    %78 = vector.extract_strided_slice %73 {offsets = [0, 64], sizes = [16, 32], strides = [1, 1]} : vector<16x96xf32> to vector<16x32xf32>
    %79 = vector.shape_cast %78 : vector<16x32xf32> to vector<16x4x8xf32>
    "tpu.trace_start"() <{level = 10 : i32, message = "qnd,knd->nqk"}> : () -> ()
    %cst_55 = arith.constant dense<0.000000e+00> : vector<4x16x16xf32>
    %80 = tpu.matmul %75, %77, %cst_55 {dimension_numbers = #tpu.dot_dimension_numbers<[2], [2], [0], [0], [0, 1, 0, 0, 1, 0], [1], [1]>} : vector<16x4x8xf32>, vector<16x4x8xf32>, vector<4x16x16xf32> -> vector<4x16x16xf32>
    "tpu.trace_stop"() : () -> ()
    %cst_56 = arith.constant dense<0xFF800000> : vector<4x16xf32>
    %81 = vector.multi_reduction <maximumf>, %80, %cst_56 [2] : vector<4x16x16xf32> to vector<4x16xf32>
    %82 = vector.shape_cast %81 : vector<4x16xf32> to vector<4x16x1xf32>
    %83 = vector.broadcast %82 : vector<4x16x1xf32> to vector<4x16x16xf32>
    %84 = arith.subf %80, %83 : vector<4x16x16xf32>
    %85 = math.exp %84 : vector<4x16x16xf32>
    %cst_57 = arith.constant dense<0.000000e+00> : vector<4x16xf32>
    %86 = vector.multi_reduction <add>, %85, %cst_57 [2] : vector<4x16x16xf32> to vector<4x16xf32>
    %87 = vector.shape_cast %86 : vector<4x16xf32> to vector<4x16x1xf32>
    %88 = vector.broadcast %87 : vector<4x16x1xf32> to vector<4x16x16xf32>
    %89 = arith.divf %85, %88 : vector<4x16x16xf32>
    "tpu.trace_start"() <{level = 10 : i32, message = "nqk,knd->qnd"}> : () -> ()
    %cst_58 = arith.constant dense<0.000000e+00> : vector<4x8x16xf32>
    %90 = tpu.matmul %79, %89, %cst_58 {dimension_numbers = #tpu.dot_dimension_numbers<[0], [2], [2], [1], [0, 1, 0, 2, 1, 1], [1], [0]>} : vector<16x4x8xf32>, vector<4x16x16xf32>, vector<4x8x16xf32> -> vector<4x8x16xf32>
    %91 = tpu.transpose %90, [2, 0, 1] : vector<4x8x16xf32> -> vector<16x4x8xf32>
    "tpu.trace_stop"() : () -> ()
    %92 = vector.shape_cast %91 : vector<16x4x8xf32> to vector<16x32xf32>
    %cst_59 = arith.constant dense<0.000000e+00> : vector<16x32xf32>
    %93 = tpu.matmul %92, %61, %cst_59 {dimension_numbers = #tpu.dot_dimension_numbers<[1], [0], [0], [1], [0, 0, 1, 1], [], []>} : vector<16x32xf32>, vector<32x32xf32>, vector<16x32xf32> -> vector<16x32xf32>
    %94 = vector.broadcast %62 : vector<1x32xf32> to vector<16x32xf32>
    %95 = arith.addf %93, %94 : vector<16x32xf32>
    %96 = arith.addf %55, %95 : vector<16x32xf32>
    %cst_60 = arith.constant dense<0.000000e+00> : vector<16xf32>
    %97 = vector.multi_reduction <add>, %96, %cst_60 [1] : vector<16x32xf32> to vector<16xf32>
    %98 = vector.shape_cast %97 : vector<16xf32> to vector<16x1xf32>
    %cst_61 = arith.constant 3.200000e+01 : f32
    %99 = vector.broadcast %cst_61 : f32 to vector<16x1xf32>
    %100 = arith.divf %98, %99 : vector<16x1xf32>
    %101 = vector.broadcast %100 : vector<16x1xf32> to vector<16x32xf32>
    %102 = arith.subf %96, %101 : vector<16x32xf32>
    %103 = arith.mulf %102, %102 : vector<16x32xf32>
    %cst_62 = arith.constant dense<0.000000e+00> : vector<16xf32>
    %104 = vector.multi_reduction <add>, %103, %cst_62 [1] : vector<16x32xf32> to vector<16xf32>
    %105 = vector.shape_cast %104 : vector<16xf32> to vector<16x1xf32>
    %cst_63 = arith.constant 3.200000e+01 : f32
    %106 = vector.broadcast %cst_63 : f32 to vector<16x1xf32>
    %107 = arith.divf %105, %106 : vector<16x1xf32>
    %108 = vector.broadcast %100 : vector<16x1xf32> to vector<16x32xf32>
    %109 = arith.subf %96, %108 : vector<16x32xf32>
    %cst_64 = arith.constant 9.99999974E-6 : f32
    %110 = vector.broadcast %cst_64 : f32 to vector<16x1xf32>
    %111 = arith.addf %107, %110 : vector<16x1xf32>
    %112 = math.rsqrt %111 : vector<16x1xf32>
    %113 = vector.broadcast %112 : vector<16x1xf32> to vector<16x32xf32>
    %114 = arith.mulf %109, %113 : vector<16x32xf32>
    %115 = vector.broadcast %63 : vector<1x32xf32> to vector<16x32xf32>
    %116 = arith.mulf %114, %115 : vector<16x32xf32>
    %117 = vector.broadcast %64 : vector<1x32xf32> to vector<16x32xf32>
    %118 = arith.addf %116, %117 : vector<16x32xf32>
    %cst_65 = arith.constant dense<0.000000e+00> : vector<16x64xf32>
    %119 = tpu.matmul %118, %65, %cst_65 {dimension_numbers = #tpu.dot_dimension_numbers<[1], [0], [0], [1], [0, 0, 1, 1], [], []>} : vector<16x32xf32>, vector<32x64xf32>, vector<16x64xf32> -> vector<16x64xf32>
    %120 = vector.broadcast %66 : vector<1x64xf32> to vector<16x64xf32>
    %121 = arith.addf %119, %120 : vector<16x64xf32>
    %122 = arith.mulf %121, %121 : vector<16x64xf32>
    %123 = arith.mulf %121, %122 : vector<16x64xf32>
    %cst_66 = arith.constant 4.471500e-02 : f32
    %124 = vector.broadcast %cst_66 : f32 to vector<16x64xf32>
    %125 = arith.mulf %124, %123 : vector<16x64xf32>
    %126 = arith.addf %121, %125 : vector<16x64xf32>
    %cst_67 = arith.constant 0.797884583 : f32
    %127 = vector.broadcast %cst_67 : f32 to vector<16x64xf32>
    %128 = arith.mulf %127, %126 : vector<16x64xf32>
    %129 = math.tanh %128 : vector<16x64xf32>
    %cst_68 = arith.constant 1.000000e+00 : f32
    %130 = vector.broadcast %cst_68 : f32 to vector<16x64xf32>
    %131 = arith.addf %130, %129 : vector<16x64xf32>
    %cst_69 = arith.constant 5.000000e-01 : f32
    %132 = vector.broadcast %cst_69 : f32 to vector<16x64xf32>
    %133 = arith.mulf %132, %131 : vector<16x64xf32>
    %134 = arith.mulf %121, %133 : vector<16x64xf32>
    %cst_70 = arith.constant dense<0.000000e+00> : vector<16x32xf32>
    %135 = tpu.matmul %134, %67, %cst_70 {dimension_numbers = #tpu.dot_dimension_numbers<[1], [0], [0], [1], [0, 0, 1, 1], [], []>} : vector<16x64xf32>, vector<64x32xf32>, vector<16x32xf32> -> vector<16x32xf32>
    %136 = vector.broadcast %68 : vector<1x32xf32> to vector<16x32xf32>
    %137 = arith.addf %135, %136 : vector<16x32xf32>
    %138 = arith.addf %118, %137 : vector<16x32xf32>
    %cst_71 = arith.constant dense<0.000000e+00> : vector<16xf32>
    %139 = vector.multi_reduction <add>, %138, %cst_71 [1] : vector<16x32xf32> to vector<16xf32>
    %140 = vector.shape_cast %139 : vector<16xf32> to vector<16x1xf32>
    %cst_72 = arith.constant 3.200000e+01 : f32
    %141 = vector.broadcast %cst_72 : f32 to vector<16x1xf32>
    %142 = arith.divf %140, %141 : vector<16x1xf32>
    %143 = vector.broadcast %142 : vector<16x1xf32> to vector<16x32xf32>
    %144 = arith.subf %138, %143 : vector<16x32xf32>
    %145 = arith.mulf %144, %144 : vector<16x32xf32>
    %cst_73 = arith.constant dense<0.000000e+00> : vector<16xf32>
    %146 = vector.multi_reduction <add>, %145, %cst_73 [1] : vector<16x32xf32> to vector<16xf32>
    %147 = vector.shape_cast %146 : vector<16xf32> to vector<16x1xf32>
    %cst_74 = arith.constant 3.200000e+01 : f32
    %148 = vector.broadcast %cst_74 : f32 to vector<16x1xf32>
    %149 = arith.divf %147, %148 : vector<16x1xf32>
    %150 = vector.broadcast %142 : vector<16x1xf32> to vector<16x32xf32>
    %151 = arith.subf %138, %150 : vector<16x32xf32>
    %cst_75 = arith.constant 9.99999974E-6 : f32
    %152 = vector.broadcast %cst_75 : f32 to vector<16x1xf32>
    %153 = arith.addf %149, %152 : vector<16x1xf32>
    %154 = math.rsqrt %153 : vector<16x1xf32>
    %155 = vector.broadcast %154 : vector<16x1xf32> to vector<16x32xf32>
    %156 = arith.mulf %151, %155 : vector<16x32xf32>
    %157 = vector.broadcast %69 : vector<1x32xf32> to vector<16x32xf32>
    %158 = arith.mulf %156, %157 : vector<16x32xf32>
    %159 = vector.broadcast %70 : vector<1x32xf32> to vector<16x32xf32>
    %160 = arith.addf %158, %159 : vector<16x32xf32>
    %c0_76 = arith.constant 0 : index
    %c0_77 = arith.constant 0 : index
    %c0_78 = arith.constant 0 : index
    %161 = vector.load %arg34[%c0_76, %c0_77, %c0_78] : memref<1x16x32xf32, #tpu.memory_space<vmem>>, vector<1x16x32xf32>
    %162 = vector.shape_cast %161 : vector<1x16x32xf32> to vector<16x32xf32>
    %163 = vector.shape_cast %160 : vector<16x32xf32> to vector<1x16x32xf32>
    tpu.vector_store %arg34[%c0_76, %c0_77, %c0_78], %163 {strides = array<i32>} : memref<1x16x32xf32, #tpu.memory_space<vmem>>, vector<1x16x32xf32>,
    %c0_79 = arith.constant 0 : index
    %c0_80 = arith.constant 0 : index
    %164 = vector.load %arg21[%c0_79, %c0_80] : memref<32x96xf32, #tpu.memory_space<vmem>>, vector<32x96xf32>
    %c0_81 = arith.constant 0 : index
    %c0_82 = arith.constant 0 : index
    %165 = vector.load %arg22[%c0_81, %c0_82] : memref<1x96xf32, #tpu.memory_space<vmem>>, vector<1x96xf32>
    %c0_83 = arith.constant 0 : index
    %c0_84 = arith.constant 0 : index
    %166 = vector.load %arg23[%c0_83, %c0_84] : memref<32x32xf32, #tpu.memory_space<vmem>>, vector<32x32xf32>
    %c0_85 = arith.constant 0 : index
    %c0_86 = arith.constant 0 : index
    %167 = vector.load %arg24[%c0_85, %c0_86] : memref<1x32xf32, #tpu.memory_space<vmem>>, vector<1x32xf32>
    %c0_87 = arith.constant 0 : index
    %c0_88 = arith.constant 0 : index
    %168 = vector.load %arg25[%c0_87, %c0_88] : memref<1x32xf32, #tpu.memory_space<vmem>>, vector<1x32xf32>
    %c0_89 = arith.constant 0 : index
    %c0_90 = arith.constant 0 : index
    %169 = vector.load %arg26[%c0_89, %c0_90] : memref<1x32xf32, #tpu.memory_space<vmem>>, vector<1x32xf32>
    %c0_91 = arith.constant 0 : index
    %c0_92 = arith.constant 0 : index
    %170 = vector.load %arg27[%c0_91, %c0_92] : memref<32x64xf32, #tpu.memory_space<vmem>>, vector<32x64xf32>
    %c0_93 = arith.constant 0 : index
    %c0_94 = arith.constant 0 : index
    %171 = vector.load %arg28[%c0_93, %c0_94] : memref<1x64xf32, #tpu.memory_space<vmem>>, vector<1x64xf32>
    %c0_95 = arith.constant 0 : index
    %c0_96 = arith.constant 0 : index
    %172 = vector.load %arg29[%c0_95, %c0_96] : memref<64x32xf32, #tpu.memory_space<vmem>>, vector<64x32xf32>
    %c0_97 = arith.constant 0 : index
    %c0_98 = arith.constant 0 : index
    %173 = vector.load %arg30[%c0_97, %c0_98] : memref<1x32xf32, #tpu.memory_space<vmem>>, vector<1x32xf32>
    %c0_99 = arith.constant 0 : index
    %c0_100 = arith.constant 0 : index
    %174 = vector.load %arg31[%c0_99, %c0_100] : memref<1x32xf32, #tpu.memory_space<vmem>>, vector<1x32xf32>
    %c0_101 = arith.constant 0 : index
    %c0_102 = arith.constant 0 : index
    %175 = vector.load %arg32[%c0_101, %c0_102] : memref<1x32xf32, #tpu.memory_space<vmem>>, vector<1x32xf32>
    %cst_103 = arith.constant dense<0.000000e+00> : vector<16x96xf32>
    %176 = tpu.matmul %160, %164, %cst_103 {dimension_numbers = #tpu.dot_dimension_numbers<[1], [0], [0], [1], [0, 0, 1, 1], [], []>} : vector<16x32xf32>, vector<32x96xf32>, vector<16x96xf32> -> vector<16x96xf32>
    %177 = vector.broadcast %165 : vector<1x96xf32> to vector<16x96xf32>
    %178 = arith.addf %176, %177 : vector<16x96xf32>
    %179 = vector.extract_strided_slice %178 {offsets = [0, 0], sizes = [16, 32], strides = [1, 1]} : vector<16x96xf32> to vector<16x32xf32>
    %180 = vector.shape_cast %179 : vector<16x32xf32> to vector<16x4x8xf32>
    %181 = vector.extract_strided_slice %178 {offsets = [0, 32], sizes = [16, 32], strides = [1, 1]} : vector<16x96xf32> to vector<16x32xf32>
    %182 = vector.shape_cast %181 : vector<16x32xf32> to vector<16x4x8xf32>
    %183 = vector.extract_strided_slice %178 {offsets = [0, 64], sizes = [16, 32], strides = [1, 1]} : vector<16x96xf32> to vector<16x32xf32>
    %184 = vector.shape_cast %183 : vector<16x32xf32> to vector<16x4x8xf32>
    "tpu.trace_start"() <{level = 10 : i32, message = "qnd,knd->nqk"}> : () -> ()
    %cst_104 = arith.constant dense<0.000000e+00> : vector<4x16x16xf32>
    %185 = tpu.matmul %180, %182, %cst_104 {dimension_numbers = #tpu.dot_dimension_numbers<[2], [2], [0], [0], [0, 1, 0, 0, 1, 0], [1], [1]>} : vector<16x4x8xf32>, vector<16x4x8xf32>, vector<4x16x16xf32> -> vector<4x16x16xf32>
    "tpu.trace_stop"() : () -> ()
    %cst_105 = arith.constant dense<0xFF800000> : vector<4x16xf32>
    %186 = vector.multi_reduction <maximumf>, %185, %cst_105 [2] : vector<4x16x16xf32> to vector<4x16xf32>
    %187 = vector.shape_cast %186 : vector<4x16xf32> to vector<4x16x1xf32>
    %188 = vector.broadcast %187 : vector<4x16x1xf32> to vector<4x16x16xf32>
    %189 = arith.subf %185, %188 : vector<4x16x16xf32>
    %190 = math.exp %189 : vector<4x16x16xf32>
    %cst_106 = arith.constant dense<0.000000e+00> : vector<4x16xf32>
    %191 = vector.multi_reduction <add>, %190, %cst_106 [2] : vector<4x16x16xf32> to vector<4x16xf32>
    %192 = vector.shape_cast %191 : vector<4x16xf32> to vector<4x16x1xf32>
    %193 = vector.broadcast %192 : vector<4x16x1xf32> to vector<4x16x16xf32>
    %194 = arith.divf %190, %193 : vector<4x16x16xf32>
    "tpu.trace_start"() <{level = 10 : i32, message = "nqk,knd->qnd"}> : () -> ()
    %cst_107 = arith.constant dense<0.000000e+00> : vector<4x8x16xf32>
    %195 = tpu.matmul %184, %194, %cst_107 {dimension_numbers = #tpu.dot_dimension_numbers<[0], [2], [2], [1], [0, 1, 0, 2, 1, 1], [1], [0]>} : vector<16x4x8xf32>, vector<4x16x16xf32>, vector<4x8x16xf32> -> vector<4x8x16xf32>
    %196 = tpu.transpose %195, [2, 0, 1] : vector<4x8x16xf32> -> vector<16x4x8xf32>
    "tpu.trace_stop"() : () -> ()
    %197 = vector.shape_cast %196 : vector<16x4x8xf32> to vector<16x32xf32>
    %cst_108 = arith.constant dense<0.000000e+00> : vector<16x32xf32>
    %198 = tpu.matmul %197, %166, %cst_108 {dimension_numbers = #tpu.dot_dimension_numbers<[1], [0], [0], [1], [0, 0, 1, 1], [], []>} : vector<16x32xf32>, vector<32x32xf32>, vector<16x32xf32> -> vector<16x32xf32>
    %199 = vector.broadcast %167 : vector<1x32xf32> to vector<16x32xf32>
    %200 = arith.addf %198, %199 : vector<16x32xf32>
    %201 = arith.addf %160, %200 : vector<16x32xf32>
    %cst_109 = arith.constant dense<0.000000e+00> : vector<16xf32>
    %202 = vector.multi_reduction <add>, %201, %cst_109 [1] : vector<16x32xf32> to vector<16xf32>
    %203 = vector.shape_cast %202 : vector<16xf32> to vector<16x1xf32>
    %cst_110 = arith.constant 3.200000e+01 : f32
    %204 = vector.broadcast %cst_110 : f32 to vector<16x1xf32>
    %205 = arith.divf %203, %204 : vector<16x1xf32>
    %206 = vector.broadcast %205 : vector<16x1xf32> to vector<16x32xf32>
    %207 = arith.subf %201, %206 : vector<16x32xf32>
    %208 = arith.mulf %207, %207 : vector<16x32xf32>
    %cst_111 = arith.constant dense<0.000000e+00> : vector<16xf32>
    %209 = vector.multi_reduction <add>, %208, %cst_111 [1] : vector<16x32xf32> to vector<16xf32>
    %210 = vector.shape_cast %209 : vector<16xf32> to vector<16x1xf32>
    %cst_112 = arith.constant 3.200000e+01 : f32
    %211 = vector.broadcast %cst_112 : f32 to vector<16x1xf32>
    %212 = arith.divf %210, %211 : vector<16x1xf32>
    %213 = vector.broadcast %205 : vector<16x1xf32> to vector<16x32xf32>
    %214 = arith.subf %201, %213 : vector<16x32xf32>
    %cst_113 = arith.constant 9.99999974E-6 : f32
    %215 = vector.broadcast %cst_113 : f32 to vector<16x1xf32>
    %216 = arith.addf %212, %215 : vector<16x1xf32>
    %217 = math.rsqrt %216 : vector<16x1xf32>
    %218 = vector.broadcast %217 : vector<16x1xf32> to vector<16x32xf32>
    %219 = arith.mulf %214, %218 : vector<16x32xf32>
    %220 = vector.broadcast %168 : vector<1x32xf32> to vector<16x32xf32>
    %221 = arith.mulf %219, %220 : vector<16x32xf32>
    %222 = vector.broadcast %169 : vector<1x32xf32> to vector<16x32xf32>
    %223 = arith.addf %221, %222 : vector<16x32xf32>
    %cst_114 = arith.constant dense<0.000000e+00> : vector<16x64xf32>
    %224 = tpu.matmul %223, %170, %cst_114 {dimension_numbers = #tpu.dot_dimension_numbers<[1], [0], [0], [1], [0, 0, 1, 1], [], []>} : vector<16x32xf32>, vector<32x64xf32>, vector<16x64xf32> -> vector<16x64xf32>
    %225 = vector.broadcast %171 : vector<1x64xf32> to vector<16x64xf32>
    %226 = arith.addf %224, %225 : vector<16x64xf32>
    %227 = arith.mulf %226, %226 : vector<16x64xf32>
    %228 = arith.mulf %226, %227 : vector<16x64xf32>
    %cst_115 = arith.constant 4.471500e-02 : f32
    %229 = vector.broadcast %cst_115 : f32 to vector<16x64xf32>
    %230 = arith.mulf %229, %228 : vector<16x64xf32>
    %231 = arith.addf %226, %230 : vector<16x64xf32>
    %cst_116 = arith.constant 0.797884583 : f32
    %232 = vector.broadcast %cst_116 : f32 to vector<16x64xf32>
    %233 = arith.mulf %232, %231 : vector<16x64xf32>
    %234 = math.tanh %233 : vector<16x64xf32>
    %cst_117 = arith.constant 1.000000e+00 : f32
    %235 = vector.broadcast %cst_117 : f32 to vector<16x64xf32>
    %236 = arith.addf %235, %234 : vector<16x64xf32>
    %cst_118 = arith.constant 5.000000e-01 : f32
    %237 = vector.broadcast %cst_118 : f32 to vector<16x64xf32>
    %238 = arith.mulf %237, %236 : vector<16x64xf32>
    %239 = arith.mulf %226, %238 : vector<16x64xf32>
    %cst_119 = arith.constant dense<0.000000e+00> : vector<16x32xf32>
    %240 = tpu.matmul %239, %172, %cst_119 {dimension_numbers = #tpu.dot_dimension_numbers<[1], [0], [0], [1], [0, 0, 1, 1], [], []>} : vector<16x64xf32>, vector<64x32xf32>, vector<16x32xf32> -> vector<16x32xf32>
    %241 = vector.broadcast %173 : vector<1x32xf32> to vector<16x32xf32>
    %242 = arith.addf %240, %241 : vector<16x32xf32>
    %243 = arith.addf %223, %242 : vector<16x32xf32>
    %cst_120 = arith.constant dense<0.000000e+00> : vector<16xf32>
    %244 = vector.multi_reduction <add>, %243, %cst_120 [1] : vector<16x32xf32> to vector<16xf32>
    %245 = vector.shape_cast %244 : vector<16xf32> to vector<16x1xf32>
    %cst_121 = arith.constant 3.200000e+01 : f32
    %246 = vector.broadcast %cst_121 : f32 to vector<16x1xf32>
    %247 = arith.divf %245, %246 : vector<16x1xf32>
    %248 = vector.broadcast %247 : vector<16x1xf32> to vector<16x32xf32>
    %249 = arith.subf %243, %248 : vector<16x32xf32>
    %250 = arith.mulf %249, %249 : vector<16x32xf32>
    %cst_122 = arith.constant dense<0.000000e+00> : vector<16xf32>
    %251 = vector.multi_reduction <add>, %250, %cst_122 [1] : vector<16x32xf32> to vector<16xf32>
    %252 = vector.shape_cast %251 : vector<16xf32> to vector<16x1xf32>
    %cst_123 = arith.constant 3.200000e+01 : f32
    %253 = vector.broadcast %cst_123 : f32 to vector<16x1xf32>
    %254 = arith.divf %252, %253 : vector<16x1xf32>
    %255 = vector.broadcast %247 : vector<16x1xf32> to vector<16x32xf32>
    %256 = arith.subf %243, %255 : vector<16x32xf32>
    %cst_124 = arith.constant 9.99999974E-6 : f32
    %257 = vector.broadcast %cst_124 : f32 to vector<16x1xf32>
    %258 = arith.addf %254, %257 : vector<16x1xf32>
    %259 = math.rsqrt %258 : vector<16x1xf32>
    %260 = vector.broadcast %259 : vector<16x1xf32> to vector<16x32xf32>
    %261 = arith.mulf %256, %260 : vector<16x32xf32>
    %262 = vector.broadcast %174 : vector<1x32xf32> to vector<16x32xf32>
    %263 = arith.mulf %261, %262 : vector<16x32xf32>
    %264 = vector.broadcast %175 : vector<1x32xf32> to vector<16x32xf32>
    %265 = arith.addf %263, %264 : vector<16x32xf32>
    %c0_125 = arith.constant 0 : index
    %c0_126 = arith.constant 0 : index
    %c0_127 = arith.constant 0 : index
    %266 = vector.load %arg35[%c0_125, %c0_126, %c0_127] : memref<1x16x32xf32, #tpu.memory_space<vmem>>, vector<1x16x32xf32>
    %267 = vector.shape_cast %266 : vector<1x16x32xf32> to vector<16x32xf32>
    %268 = vector.shape_cast %265 : vector<16x32xf32> to vector<1x16x32xf32>
    tpu.vector_store %arg35[%c0_125, %c0_126, %c0_127], %268 {strides = array<i32>} : memref<1x16x32xf32, #tpu.memory_space<vmem>>, vector<1x16x32xf32>,
    return
  }
  func.func @transform_0(%arg0: i32) -> (i32, i32, i32) {
    %c0_i32 = arith.constant 0 : i32
    %c0_i32_0 = arith.constant 0 : i32
    %c0_i32_1 = arith.constant 0 : i32
    return %arg0, %c0_i32, %c0_i32_0 : i32, i32, i32
  }
  func.func @transform_1(%arg0: i32) -> (i32, i32, i32) {
    %c0_i32 = arith.constant 0 : i32
    %c0_i32_0 = arith.constant 0 : i32
    %c0_i32_1 = arith.constant 0 : i32
    return %arg0, %c0_i32, %c0_i32_0 : i32, i32, i32
  }
  func.func @transform_2(%arg0: i32) -> (i32, i32) {
    %c0_i32 = arith.constant 0 : i32
    %c0_i32_0 = arith.constant 0 : i32
    %c0_i32_1 = arith.constant 0 : i32
    return %c0_i32, %c0_i32_0 : i32, i32
  }
  func.func @transform_3(%arg0: i32) -> (i32, i32) {
    %c0_i32 = arith.constant 0 : i32
    %c0_i32_0 = arith.constant 0 : i32
    %c0_i32_1 = arith.constant 0 : i32
    return %c0_i32, %c0_i32_0 : i32, i32
  }
  func.func @transform_4(%arg0: i32) -> (i32, i32) {
    %c0_i32 = arith.constant 0 : i32
    %c0_i32_0 = arith.constant 0 : i32
    %c0_i32_1 = arith.constant 0 : i32
    return %c0_i32, %c0_i32_0 : i32, i32
  }
  func.func @transform_5(%arg0: i32) -> (i32, i32) {
    %c0_i32 = arith.constant 0 : i32
    %c0_i32_0 = arith.constant 0 : i32
    %c0_i32_1 = arith.constant 0 : i32
    return %c0_i32, %c0_i32_0 : i32, i32
  }
  func.func @transform_6(%arg0: i32) -> (i32, i32) {
    %c0_i32 = arith.constant 0 : i32
    %c0_i32_0 = arith.constant 0 : i32
    %c0_i32_1 = arith.constant 0 : i32
    return %c0_i32, %c0_i32_0 : i32, i32
  }
  func.func @transform_7(%arg0: i32) -> (i32, i32) {
    %c0_i32 = arith.constant 0 : i32
    %c0_i32_0 = arith.constant 0 : i32
    %c0_i32_1 = arith.constant 0 : i32
    return %c0_i32, %c0_i32_0 : i32, i32
  }
  func.func @transform_8(%arg0: i32) -> (i32, i32) {
    %c0_i32 = arith.constant 0 : i32
    %c0_i32_0 = arith.constant 0 : i32
    %c0_i32_1 = arith.constant 0 : i32
    return %c0_i32, %c0_i32_0 : i32, i32
  }
  func.func @transform_9(%arg0: i32) -> (i32, i32) {
    %c0_i32 = arith.constant 0 : i32
    %c0_i32_0 = arith.constant 0 : i32
    %c0_i32_1 = arith.constant 0 : i32
    return %c0_i32, %c0_i32_0 : i32, i32
  }
  func.func @transform_10(%arg0: i32) -> (i32, i32) {
    %c0_i32 = arith.constant 0 : i32
    %c0_i32_0 = arith.constant 0 : i32
    %c0_i32_1 = arith.constant 0 : i32
    return %c0_i32, %c0_i32_0 : i32, i32
  }
  func.func @transform_11(%arg0: i32) -> (i32, i32) {
    %c0_i32 = arith.constant 0 : i32
    %c0_i32_0 = arith.constant 0 : i32
    %c0_i32_1 = arith.constant 0 : i32
    return %c0_i32, %c0_i32_0 : i32, i32
  }
  func.func @transform_12(%arg0: i32) -> (i32, i32) {
    %c0_i32 = arith.constant 0 : i32
    %c0_i32_0 = arith.constant 0 : i32
    %c0_i32_1 = arith.constant 0 : i32
    return %c0_i32, %c0_i32_0 : i32, i32
  }
  func.func @transform_13(%arg0: i32) -> (i32, i32) {
    %c0_i32 = arith.constant 0 : i32
    %c0_i32_0 = arith.constant 0 : i32
    %c0_i32_1 = arith.constant 0 : i32
    return %c0_i32, %c0_i32_0 : i32, i32
  }
  func.func @transform_14(%arg0: i32) -> (i32, i32) {
    %c0_i32 = arith.constant 0 : i32
    %c0_i32_0 = arith.constant 0 : i32
    %c0_i32_1 = arith.constant 0 : i32
    return %c0_i32, %c0_i32_0 : i32, i32
  }
  func.func @transform_15(%arg0: i32) -> (i32, i32) {
    %c0_i32 = arith.constant 0 : i32
    %c0_i32_0 = arith.constant 0 : i32
    %c0_i32_1 = arith.constant 0 : i32
    return %c0_i32, %c0_i32_0 : i32, i32
  }
  func.func @transform_16(%arg0: i32) -> (i32, i32) {
    %c0_i32 = arith.constant 0 : i32
    %c0_i32_0 = arith.constant 0 : i32
    %c0_i32_1 = arith.constant 0 : i32
    return %c0_i32, %c0_i32_0 : i32, i32
  }
  func.func @transform_17(%arg0: i32) -> (i32, i32) {
    %c0_i32 = arith.constant 0 : i32
    %c0_i32_0 = arith.constant 0 : i32
    %c0_i32_1 = arith.constant 0 : i32
    return %c0_i32, %c0_i32_0 : i32, i32
  }
  func.func @transform_18(%arg0: i32) -> (i32, i32) {
    %c0_i32 = arith.constant 0 : i32
    %c0_i32_0 = arith.constant 0 : i32
    %c0_i32_1 = arith.constant 0 : i32
    return %c0_i32, %c0_i32_0 : i32, i32
  }
  func.func @transform_19(%arg0: i32) -> (i32, i32) {
    %c0_i32 = arith.constant 0 : i32
    %c0_i32_0 = arith.constant 0 : i32
    %c0_i32_1 = arith.constant 0 : i32
    return %c0_i32, %c0_i32_0 : i32, i32
  }
  func.func @transform_20(%arg0: i32) -> (i32, i32) {
    %c0_i32 = arith.constant 0 : i32
    %c0_i32_0 = arith.constant 0 : i32
    %c0_i32_1 = arith.constant 0 : i32
    return %c0_i32, %c0_i32_0 : i32, i32
  }
  func.func @transform_21(%arg0: i32) -> (i32, i32) {
    %c0_i32 = arith.constant 0 : i32
    %c0_i32_0 = arith.constant 0 : i32
    %c0_i32_1 = arith.constant 0 : i32
    return %c0_i32, %c0_i32_0 : i32, i32
  }
  func.func @transform_22(%arg0: i32) -> (i32, i32) {
    %c0_i32 = arith.constant 0 : i32
    %c0_i32_0 = arith.constant 0 : i32
    %c0_i32_1 = arith.constant 0 : i32
    return %c0_i32, %c0_i32_0 : i32, i32
  }
  func.func @transform_23(%arg0: i32) -> (i32, i32) {
    %c0_i32 = arith.constant 0 : i32
    %c0_i32_0 = arith.constant 0 : i32
    %c0_i32_1 = arith.constant 0 : i32
    return %c0_i32, %c0_i32_0 : i32, i32
  }
  func.func @transform_24(%arg0: i32) -> (i32, i32) {
    %c0_i32 = arith.constant 0 : i32
    %c0_i32_0 = arith.constant 0 : i32
    %c0_i32_1 = arith.constant 0 : i32
    return %c0_i32, %c0_i32_0 : i32, i32
  }
  func.func @transform_25(%arg0: i32) -> (i32, i32) {
    %c0_i32 = arith.constant 0 : i32
    %c0_i32_0 = arith.constant 0 : i32
    %c0_i32_1 = arith.constant 0 : i32
    return %c0_i32, %c0_i32_0 : i32, i32
  }
  func.func @transform_26(%arg0: i32) -> (i32, i32) {
    %c0_i32 = arith.constant 0 : i32
    %c0_i32_0 = arith.constant 0 : i32
    %c0_i32_1 = arith.constant 0 : i32
    return %c0_i32, %c0_i32_0 : i32, i32
  }
  func.func @transform_27(%arg0: i32) -> (i32, i32) {
    %c0_i32 = arith.constant 0 : i32
    %c0_i32_0 = arith.constant 0 : i32
    %c0_i32_1 = arith.constant 0 : i32
    return %c0_i32, %c0_i32_0 : i32, i32
  }
  func.func @transform_28(%arg0: i32) -> (i32, i32) {
    %c0_i32 = arith.constant 0 : i32
    %c0_i32_0 = arith.constant 0 : i32
    %c0_i32_1 = arith.constant 0 : i32
    return %c0_i32, %c0_i32_0 : i32, i32
  }
  func.func @transform_29(%arg0: i32) -> (i32, i32) {
    %c0_i32 = arith.constant 0 : i32
    %c0_i32_0 = arith.constant 0 : i32
    %c0_i32_1 = arith.constant 0 : i32
    return %c0_i32, %c0_i32_0 : i32, i32
  }
  func.func @transform_30(%arg0: i32) -> (i32, i32) {
    %c0_i32 = arith.constant 0 : i32
    %c0_i32_0 = arith.constant 0 : i32
    %c0_i32_1 = arith.constant 0 : i32
    return %c0_i32, %c0_i32_0 : i32, i32
  }
  func.func @transform_31(%arg0: i32) -> (i32, i32) {
    %c0_i32 = arith.constant 0 : i32
    %c0_i32_0 = arith.constant 0 : i32
    %c0_i32_1 = arith.constant 0 : i32
    return %c0_i32, %c0_i32_0 : i32, i32
  }
  func.func @transform_32(%arg0: i32) -> (i32, i32, i32) {
    %c0_i32 = arith.constant 0 : i32
    %c0_i32_0 = arith.constant 0 : i32
    %c0_i32_1 = arith.constant 0 : i32
    return %arg0, %c0_i32, %c0_i32_0 : i32, i32, i32
  }
  func.func @transform_33(%arg0: i32) -> (i32, i32, i32) {
    %c0_i32 = arith.constant 0 : i32
    %c0_i32_0 = arith.constant 0 : i32
    %c0_i32_1 = arith.constant 0 : i32
    return %arg0, %c0_i32, %c0_i32_0 : i32, i32, i32
  }
  func.func @transform_34(%arg0: i32) -> (i32, i32, i32) {
    %c0_i32 = arith.constant 0 : i32
    %c0_i32_0 = arith.constant 0 : i32
    %c0_i32_1 = arith.constant 0 : i32
    return %arg0, %c0_i32, %c0_i32_0 : i32, i32, i32
  }
}

</mosaic_0001>

<llo_original>
// kernel: squeeze.3
$region0: #{squeeze.3}
  %s0 = inlined_call_operand.vmem [shape: f32[2,160], index: 0, kind: input, shape index: {}]
  %s1 = inlined_call_operand.vmem [shape: f32[2,16,10], index: 1, kind: output, shape index: {}]
  $region1: #{squeeze.3} parent=0
    #allocation0 [shape = 'u8[8192]{0}', space=vmem, size = 0x2000, scoped, tag = 'scoped mem for input reshape']
    %s3 = ssub.s32 4, 1
    %s4 = scalar_lea.vmem %s0, 2
    %v5 = vld [vmem:[%s4] sm:%s3]
    %s6 = scalar_lea.vmem [#allocation0], 8
    %7 = vst [vmem:[%s6] sm:%s3] %v5
    %v8 = vld [vmem:[%s0] sm:%s3]
    %9 = vst [vmem:[#allocation0] sm:%s3] %v8
    %v10 = vld [vmem:[#allocation0] sm:$0x3]
    %vm11 = vcmask 80896
    %12 = vst.msk [vmem:[%s1] ss:$16 sm:$0x3] %vm11, %v10
    %s13 = scalar_lea.vmem [#allocation0], 8
    %v14 = vld [vmem:[%s13] sm:$0x3]
    %15 = vrot.lane.b32.xlu0 %v14, 126
    %v16 = vpop.permute.xlu0 %15
    %vm17 = vcmask 80896
    %s18 = scalar_lea.vmem %s1, 13
    %19 = vst.msk [vmem:[%s18] ss:$16 sm:$0x3] %vm17, %v16
    %v20 = vld [vmem:[#allocation0] sm:$0x3]
    %21 = vrot.lane.b32.xlu0 %v20, 118
    %v22 = vpop.permute.xlu0 %21
    %vm23 = vcmask 80896
    %s24 = scalar_lea.vmem %s1, 1
    %25 = vst.msk [vmem:[%s24] ss:$16 sm:$0x3] %vm23, %v22
    %s26 = scalar_lea.vmem [#allocation0], 8
    %v27 = vld [vmem:[%s26] sm:$0x3]
    %28 = vrot.lane.b32.xlu0 %v27, 116
    %v29 = vpop.permute.xlu0 %28
    %vm30 = vcmask 80896
    %s31 = scalar_lea.vmem %s1, 14
    %32 = vst.msk [vmem:[%s31] ss:$16 sm:$0x3] %vm30, %v29
    %v33 = vld [vmem:[#allocation0] sm:$0x3]
    %34 = vrot.lane.b32.xlu0 %v33, 108
    %v35 = vpop.permute.xlu0 %34
    %vm36 = vcmask 80896
    %s37 = scalar_lea.vmem %s1, 2
    %38 = vst.msk [vmem:[%s37] ss:$16 sm:$0x3] %vm36, %v35
    %s39 = scalar_lea.vmem [#allocation0], 8
    %v40 = vld [vmem:[%s39] sm:$0x3]
    %41 = vrot.lane.b32.xlu0 %v40, 106
    %v42 = vpop.permute.xlu0 %41
    %vm43 = vcmask 80896
    %s44 = scalar_lea.vmem %s1, 15
    %45 = vst.msk [vmem:[%s44] ss:$16 sm:$0x3] %vm43, %v42
    %v46 = vld [vmem:[#allocation0] sm:$0x3]
    %47 = vrot.lane.b32.xlu0 %v46, 98
    %v48 = vpop.permute.xlu0 %47
    %vm49 = vcmask 80896
    %s50 = scalar_lea.vmem %s1, 3
    %51 = vst.msk [vmem:[%s50] ss:$16 sm:$0x3] %vm49, %v48
    %v52 = vld [vmem:[#allocation0] sm:$0x3]
    %53 = vrot.lane.b32.xlu0 %v52, 88
    %v54 = vpop.permute.xlu0 %53
    %vm55 = vcmask 80896
    %s56 = scalar_lea.vmem %s1, 4
    %57 = vst.msk [vmem:[%s56] ss:$16 sm:$0x3] %vm55, %v54
    %v58 = vld [vmem:[#allocation0] sm:$0x3]
    %59 = vrot.lane.b32.xlu0 %v58, 78
    %v60 = vpop.permute.xlu0 %59
    %vm61 = vcmask 80896
    %s62 = scalar_lea.vmem %s1, 5
    %63 = vst.msk [vmem:[%s62] ss:$16 sm:$0x3] %vm61, %v60
    %v64 = vld [vmem:[#allocation0] sm:$0x3]
    %65 = vrot.lane.b32.xlu0 %v64, 68
    %v66 = vpop.permute.xlu0 %65
    %vm67 = vcmask 80896
    %s68 = scalar_lea.vmem %s1, 6
    %69 = vst.msk [vmem:[%s68] ss:$16 sm:$0x3] %vm67, %v66
    %v70 = vld [vmem:[#allocation0] sm:$0x3]
    %71 = vrot.lane.b32.xlu0 %v70, 58
    %v72 = vpop.permute.xlu0 %71
    %vm73 = vcmask 80896
    %s74 = scalar_lea.vmem %s1, 7
    %75 = vst.msk [vmem:[%s74] ss:$16 sm:$0x3] %vm73, %v72
    %v76 = vld [vmem:[#allocation0] sm:$0x3]
    %77 = vrot.lane.b32.xlu0 %v76, 48
    %v78 = vpop.permute.xlu0 %77
    %vm79 = vcmask 80896
    %s80 = scalar_lea.vmem %s1, 8
    %81 = vst.msk [vmem:[%s80] ss:$16 sm:$0x3] %vm79, %v78
    %v82 = vld [vmem:[#allocation0] sm:$0x3]
    %83 = vrot.lane.b32.xlu0 %v82, 38
    %v84 = vpop.permute.xlu0 %83
    %vm85 = vcmask 80896
    %s86 = scalar_lea.vmem %s1, 9
    %87 = vst.msk [vmem:[%s86] ss:$16 sm:$0x3] %vm85, %v84
    %v88 = vld [vmem:[#allocation0] sm:$0x3]
    %89 = vrot.lane.b32.xlu0 %v88, 28
    %v90 = vpop.permute.xlu0 %89
    %vm91 = vcmask 80896
    %s92 = scalar_lea.vmem %s1, 10
    %93 = vst.msk [vmem:[%s92] ss:$16 sm:$0x3] %vm91, %v90
    %v94 = vld [vmem:[#allocation0] sm:$0x3]
    %95 = vrot.lane.b32.xlu0 %v94, 18
    %v96 = vpop.permute.xlu0 %95
    %vm97 = vcmask 80896
    %s98 = scalar_lea.vmem %s1, 11
    %99 = vst.msk [vmem:[%s98] ss:$16 sm:$0x3] %vm97, %v96
    %v100 = vld [vmem:[#allocation0] sm:$0x3]
    %s101 = scalar_lea.vmem [#allocation0], 8
    %v102 = vld [vmem:[%s101] sm:$0x3]
    %vm103 = vcmask 982016
    %v104 = vsel %vm103, %v102, %v100
    %105 = vrot.lane.b32.xlu0 %v104, 8
    %v106 = vpop.permute.xlu0 %105
    %vm107 = vcmask 64512
    %s108 = scalar_lea.vmem %s1, 12
    %109 = vst.msk [vmem:[%s108] ss:$16 sm:$0x3] %vm107, %v106
    %vm110 = vcmask 80960
    %s111 = scalar_lea.vmem %s1, 12
    %112 = vst.msk [vmem:[%s111] ss:$16 sm:$0x3] %vm110, %v106

// kernel: _lambda_.2
$region0: #{_lambda_.2}
  #allocation0 [shape = 'u32[]', space=smem, size = 0x4, offset = 0x4, fixed_abs, tag = 'smem constant byte address 0x4 - core index']
  #allocation1 [shape = 'u32[72,128]{1,0:T(1,128)}', space=vmem, size = 0x9000, scoped, tag = 'internal scratch']
  #allocation2 [shape = 'f32[2,1]{1,0:T(2,128)}', space=vmem, size = 0x400, scoped, tag = 'scratch operand']
  #allocation3 [shape = 'f32[2,1]{1,0:T(2,128)}', space=vmem, size = 0x400, scoped, tag = 'scratch operand']
  %s0 = inlined_call_operand.vmem [shape: f32[2,160], index: 0, kind: input, shape index: {}]
  %s1 = inlined_call_operand.vmem [shape: f32[2,2], index: 1, kind: output, shape index: {}]
  %s2 = sld [smem:[#allocation0]]
  $region22: #{_lambda_.2} parent=0
    _
  %s4 = ssub.s32 1, %s2
  %s5 = scalar_select 0, %s4, %s2
  // Predicated region
  $region2: #{_lambda_.2} parent=0 // pred_check
    _
  $region3: #{_lambda_.2} parent=0 // pred_check_branch
    %7 = sbr.rel (0) target = $region5
  $region4: #{_lambda_.2} parent=0 // pred_region
    _
  $region5: #{_lambda_.2} parent=0 // pred_fallthru
    _
  %p8 = scmp.eq.s32.totalorder 0, 0
  // Predicated region
  $region6: #{_lambda_.2} parent=0 // pred_check
    %p9 = pneg %p8
  $region7: #{_lambda_.2} parent=0 // pred_check_branch
    %11 = sbr.rel (%p9) target = $region9
  $region8: #{_lambda_.2} parent=0 // pred_region
    %vm12 = vcmask 1024
    %13 = vst.msk [vmem:[#allocation2] sm:$0x3] %vm12, 0.0
    %14 = vst.msk [vmem:[#allocation3] sm:$0x3] %vm12, 0.0
  $region9: #{_lambda_.2} parent=0 // pred_fallthru
    _
  %v15 = vld [vmem:[%s0] sm:$0xf]
  %v16 = vld [vmem:[#allocation2] sm:$0x3]
  %18 = vst [vmem:[#allocation1] ss:$4 sm:$0xff] %v15
  %v19 = vld.sshfl [vmem:[#allocation1] sm:$0xff pattern:$0x73625140]
  %v20 = vld.sshfl [vmem:[#allocation1 + $0x8] sm:$0xff pattern:$0x73625140]
  %vm23 = vcmask 1041408
  %v24 = vsel %vm23, %v19, 0.0
  %vm25 = vcmask 254976
  %v26 = vsel %vm25, %v20, 0.0
  %v27 = vadd.f32 %v24, %v26
  %28 = vadd.xlane.f32.xlu0 %v27
  %v29 = vpop.xlane.xlu0 %28
  %v30 = vadd.f32 %v16, %v29
  %vm31 = vcmask 1024
  %32 = vst.msk [vmem:[#allocation2] sm:$0x3] %vm31, %v30
  %v33 = vld [vmem:[#allocation3] sm:$0x3]
  %v34 = vmul.f32 %v15, %v15
  %36 = vst [vmem:[#allocation1] ss:$4 sm:$0xff] %v34
  %v37 = vld.sshfl [vmem:[#allocation1] sm:$0xff pattern:$0x73625140]
  %v38 = vld.sshfl [vmem:[#allocation1 + $0x8] sm:$0xff pattern:$0x73625140]
  %v41 = vsel %vm23, %v37, 0.0
  %v42 = vsel %vm25, %v38, 0.0
  %v43 = vadd.f32 %v41, %v42
  %44 = vadd.xlane.f32.xlu0 %v43
  %v45 = vpop.xlane.xlu0 %44
  %v46 = vadd.f32 %v33, %v45
  %47 = vst.msk [vmem:[#allocation3] sm:$0x3] %vm31, %v46
  // Predicated region
  $region10: #{_lambda_.2} parent=0 // pred_check
    %p48 = pneg %p8
  $region11: #{_lambda_.2} parent=0 // pred_check_branch
    %50 = sbr.rel (%p48) target = $region13
  $region12: #{_lambda_.2} parent=0 // pred_region
    %v51 = vld [vmem:[#allocation2] sm:$0x3]
    %v52 = vrcp.pop 160.0
    %v53 = vmul.f32 160.0, %v52
    %v54 = vsub.f32 1.0, %v53
    %v55 = vmul.f32 %v52, %v54
    %v56 = vadd.f32 %v52, %v55
    %vm57 = vweird.f32 %v52
    %v58 = vsel %vm57, %v52, %v56
    %v59 = vmul.f32 %v51, %v58
    %v60 = vld [vmem:[#allocation3] sm:$0x3]
    %v61 = vmul.f32 %v59, 160.0
    %v62 = vmul.f32 %v61, %v59
    %v63 = vsub.f32 %v60, %v62
    %v64 = vrcp.pop 159.0
    %v65 = vmul.f32 159.0, %v64
    %v66 = vsub.f32 1.0, %v65
    %v67 = vmul.f32 %v64, %v66
    %v68 = vadd.f32 %v64, %v67
    %vm69 = vweird.f32 %v64
    %v70 = vsel %vm69, %v64, %v68
    %v71 = vmul.f32 %v63, %v70
    %v72 = vmax.f32 %v71, 0.0
    %v73 = vrsqrt.pop %v72
    %v74 = vmul.f32 %v73, %v72
    %v75 = vmul.f32 %v74, %v73
    %v76 = vmul.f32 0.5, %v75
    %v77 = vsub.f32 1.5, %v76
    %v78 = vmul.f32 %v73, %v77
    %v79 = vmul.f32 %v72, %v78
    %vm80 = vcmp.eq.f32.partialorder %v72, inf
    %v81 = vsel %vm80, %v72, %v79
    %vm82 = vcmp.eq.f32.partialorder %v72, 0.0
    %v83 = vand.u32 %v72, 2147483648
    %v84 = vsel %vm82, %v83, %v81
    %v85 = vmax.f32 %v84, 1e-05
    %86 = vst.msk [vmem:[%s1] sm:$0x3] %vm31, %v59
    %v87 = vrcp.pop %v85
    %v88 = vmul.f32 %v85, %v87
    %v89 = vsub.f32 1.0, %v88
    %v90 = vmul.f32 %v87, %v89
    %v91 = vadd.f32 %v87, %v90
    %vm92 = vweird.f32 %v85
    %vm93 = vweird.f32 %v87
    %vm94 = vmor %vm92, %vm93
    %v95 = vsel %vm94, %v87, %v91
    %v96 = vand.u32 2147483647, %v85
    %vm97 = vcmp.eq.f32.partialorder %v96, 8.507059e+37
    %v98 = vand.u32 %v85, 2147483648
    %v99 = vor.u32 1.1754944e-38, %v98
    %v100 = vsel %vm97, %v99, %v95
    %v101 = vmul.f32 1.0, %v100
    %103 = vrot.lane.b32.xlu0 %v101, 1
    %v104 = vpop.permute.xlu0 %103
    %vm106 = vcmask 9224
    %107 = vst.msk [vmem:[%s1] sm:$0x3] %vm106, %v104
  $region13: #{_lambda_.2} parent=0 // pred_fallthru
    _
  // Predicated region
  $region14: #{_lambda_.2} parent=0 // pred_check
    _
  $region15: #{_lambda_.2} parent=0 // pred_check_branch
    %109 = sbr.rel (0) target = $region17
  $region16: #{_lambda_.2} parent=0 // pred_region
    _
  $region17: #{_lambda_.2} parent=0 // pred_fallthru
    _
  // Predicated region
  $region18: #{_lambda_.2} parent=0 // pred_check
    _
  $region19: #{_lambda_.2} parent=0 // pred_check_branch
    %111 = sbr.rel (0) target = $region21
  $region20: #{_lambda_.2} parent=0 // pred_region
    _
  $region21: #{_lambda_.2} parent=0 // pred_fallthru
    _

// kernel: _lambda_.3
$region0: #{_lambda_.3}
  #allocation0 [shape = 'u32[]', space=smem, size = 0x4, offset = 0x4, fixed_abs, tag = 'smem constant byte address 0x4 - core index']
  #allocation1 [shape = 'u32[72,128]{1,0:T(1,128)}', space=vmem, size = 0x9000, scoped, tag = 'internal scratch']
  %s0 = inlined_call_operand.smem [shape: u32[35], index: -1, kind: input, shape index: {}]
  %s1 = sld [smem:[%s0]]
  %s2 = scalar_lea.smem %s0, 1
  %s3 = sld [smem:[%s2]]
  %s4 = scalar_lea.smem %s0, 2
  %s5 = sld [smem:[%s4]]
  %s6 = scalar_lea.smem %s0, 3
  %s7 = sld [smem:[%s6]]
  %s8 = scalar_lea.smem %s0, 4
  %s9 = sld [smem:[%s8]]
  %s10 = scalar_lea.smem %s0, 5
  %s11 = sld [smem:[%s10]]
  %s12 = scalar_lea.smem %s0, 6
  %s13 = sld [smem:[%s12]]
  %s14 = scalar_lea.smem %s0, 7
  %s15 = sld [smem:[%s14]]
  %s16 = scalar_lea.smem %s0, 8
  %s17 = sld [smem:[%s16]]
  %s18 = scalar_lea.smem %s0, 9
  %s19 = sld [smem:[%s18]]
  %s20 = scalar_lea.smem %s0, 10
  %s21 = sld [smem:[%s20]]
  %s22 = scalar_lea.smem %s0, 11
  %s23 = sld [smem:[%s22]]
  %s24 = scalar_lea.smem %s0, 12
  %s25 = sld [smem:[%s24]]
  %s26 = scalar_lea.smem %s0, 13
  %s27 = sld [smem:[%s26]]
  %s28 = scalar_lea.smem %s0, 14
  %s29 = sld [smem:[%s28]]
  %s30 = scalar_lea.smem %s0, 15
  %s31 = sld [smem:[%s30]]
  %s32 = scalar_lea.smem %s0, 16
  %s33 = sld [smem:[%s32]]
  %s34 = scalar_lea.smem %s0, 17
  %s35 = sld [smem:[%s34]]
  %s36 = scalar_lea.smem %s0, 18
  %s37 = sld [smem:[%s36]]
  %s38 = scalar_lea.smem %s0, 19
  %s39 = sld [smem:[%s38]]
  %s40 = scalar_lea.smem %s0, 20
  %s41 = sld [smem:[%s40]]
  %s42 = scalar_lea.smem %s0, 21
  %s43 = sld [smem:[%s42]]
  %s44 = scalar_lea.smem %s0, 22
  %s45 = sld [smem:[%s44]]
  %s46 = scalar_lea.smem %s0, 23
  %s47 = sld [smem:[%s46]]
  %s48 = scalar_lea.smem %s0, 24
  %s49 = sld [smem:[%s48]]
  %s50 = scalar_lea.smem %s0, 25
  %s51 = sld [smem:[%s50]]
  %s52 = scalar_lea.smem %s0, 26
  %s53 = sld [smem:[%s52]]
  %s54 = scalar_lea.smem %s0, 27
  %s55 = sld [smem:[%s54]]
  %s56 = scalar_lea.smem %s0, 28
  %s57 = sld [smem:[%s56]]
  %s58 = scalar_lea.smem %s0, 29
  %s59 = sld [smem:[%s58]]
  %s60 = scalar_lea.smem %s0, 30
  %s61 = sld [smem:[%s60]]
  %s62 = scalar_lea.smem %s0, 31
  %s63 = sld [smem:[%s62]]
  %s64 = scalar_lea.smem %s0, 32
  %s65 = sld [smem:[%s64]]
  %s66 = scalar_lea.smem %s0, 33
  %s67 = sld [smem:[%s66]]
  %s68 = scalar_lea.smem %s0, 34
  %s69 = sld [smem:[%s68]]
  %70 = xla_tuple %s65, %s67, %s69
  %s71 = sld [smem:[#allocation0]]
  $region209: #{_lambda_.3} parent=0
    _
  %s73 = ssub.s32 1, %s71
  %s74 = scalar_select 0, %s73, %s71
  $region1: #{_lambda_.3} parent=0
    #allocation2 [shape = 'u8[16384]{0}', space=vmem, size = 0x4000, scoped, tag = 'input window, operand 6, single buffered']
    #allocation3 [shape = 's32[2]{0}', space=sflag, size = 0x8, scoped, tag = 'scoped memory for _lambda_.3']
    #allocation4 [shape = 's32[2]{0}', space=sflag, size = 0x8, scoped, tag = 'scoped memory for _lambda_.3']
    #allocation5 [shape = 'u8[16384]{0}', space=vmem, size = 0x4000, scoped, tag = 'input window, operand 8, single buffered']
    #allocation6 [shape = 's32[1]{0}', space=sflag, size = 0x4, scoped, tag = 'scoped memory for _lambda_.3']
    #allocation7 [shape = 'u8[16384]{0}', space=vmem, size = 0x4000, scoped, tag = 'input window, operand 10, single buffered']
    #allocation8 [shape = 'u8[16384]{0}', space=vmem, size = 0x4000, scoped, tag = 'input window, operand 14, single buffered']
    #allocation9 [shape = 's32[1]{0}', space=sflag, size = 0x4, scoped, tag = 'scoped memory for _lambda_.3']
    #allocation10 [shape = 'u8[32768]{0}', space=vmem, size = 0x8000, scoped, tag = 'input window, operand 16, single buffered']
    #allocation11 [shape = 'u8[16384]{0}', space=vmem, size = 0x4000, scoped, tag = 'input window, operand 20, single buffered']
    #allocation12 [shape = 's32[1]{0}', space=sflag, size = 0x4, scoped, tag = 'scoped memory for _lambda_.3']
    #allocation13 [shape = 'u8[16384]{0}', space=vmem, size = 0x4000, scoped, tag = 'input window, operand 22, single buffered']
    #allocation14 [shape = 'u8[32768]{0}', space=vmem, size = 0x8000, scoped, tag = 'input window, operand 28, single buffered']
    #allocation15 [shape = 's32[1]{0}', space=sflag, size = 0x4, scoped, tag = 'scoped memory for _lambda_.3']
    #allocation16 [shape = 'u8[16384]{0}', space=vmem, size = 0x4000, scoped, tag = 'output window, operand 0']
    #allocation17 [shape = 'u8[16384]{0}', space=vmem, size = 0x4000, scoped, tag = 'output window, operand 1']
    #allocation18 [shape = 's32[2]{0}', space=sflag, size = 0x8, scoped, tag = 'scoped memory for _lambda_.3']
    #allocation19 [shape = 'u8[16384]{0}', space=vmem, size = 0x4000, scoped, tag = 'output window, operand 2']
    %75 = vsyncpa [#allocation3], 0
    %76 = vsyncpa [#allocation6], 0
    %77 = vsyncpa [#allocation9], 0
    %78 = vsyncpa [#allocation12], 0
    %79 = vsyncpa [#allocation15], 0
    %80 = vsyncpa [#allocation4], 0
    %s81 = scalar_lea.sflag [#allocation4], 1
    %82 = vsyncpa %s81, 0
    %83 = vsyncpa [#allocation18], 0
    %s84 = scalar_lea.sflag [#allocation18], 1
    %85 = vsyncpa %s84, 0
    loop: start=0, step=1, limit=4
    $region2: #{_lambda_.3} parent=1 // loop_pre_header
      _
    $region3: #{_lambda_.3} parent=1 // loop_header
      %s87 = sphi 0, %s91
      %p88 = scmp.ge.s32.totalorder %s87, 4
      %s97 = sphi 0, %s99
      %s100 = sphi 0, %s97
      %s101 = sphi 0, %s100
      %s117 = sphi 0, %s101
      %s123 = sphi 0, %s125
      %s126 = sphi 0, %s123
      %s127 = sphi 0, %s126
      %s143 = sphi 0, %s127
      %s147 = sphi 0, %s147
      %s149 = sphi 0, %s147
      %s150 = sphi 0, %s149
      %s164 = sphi 0, %s150
      %s168 = sphi 0, %s168
      %s170 = sphi 0, %s168
      %s171 = sphi 0, %s170
      %s185 = sphi 0, %s171
      %s189 = sphi 0, %s189
      %s191 = sphi 0, %s189
      %s192 = sphi 0, %s191
      %s206 = sphi 0, %s192
      %s210 = sphi 0, %s210
      %s212 = sphi 0, %s210
      %s213 = sphi 0, %s212
      %s227 = sphi 0, %s213
      %s231 = sphi 0, %s231
      %s233 = sphi 0, %s231
      %s234 = sphi 0, %s233
      %s248 = sphi 0, %s234
      %s252 = sphi 0, %s252
      %s254 = sphi 0, %s252
      %s255 = sphi 0, %s254
      %s269 = sphi 0, %s255
      %s273 = sphi 0, %s273
      %s275 = sphi 0, %s273
      %s276 = sphi 0, %s275
      %s290 = sphi 0, %s276
      %s294 = sphi 0, %s294
      %s296 = sphi 0, %s294
      %s297 = sphi 0, %s296
      %s311 = sphi 0, %s297
      %s315 = sphi 0, %s315
      %s317 = sphi 0, %s315
      %s318 = sphi 0, %s317
      %s332 = sphi 0, %s318
      %s336 = sphi 0, %s336
      %s338 = sphi 0, %s336
      %s339 = sphi 0, %s338
      %s353 = sphi 0, %s339
      %s357 = sphi 0, %s357
      %s359 = sphi 0, %s357
      %s360 = sphi 0, %s359
      %s374 = sphi 0, %s360
      %s378 = sphi 0, %s378
      %s380 = sphi 0, %s378
      %s381 = sphi 0, %s380
      %s395 = sphi 0, %s381
      %s399 = sphi 0, %s399
      %s401 = sphi 0, %s399
      %s402 = sphi 0, %s401
      %s416 = sphi 0, %s402
      %s420 = sphi 0, %s420
      %s422 = sphi 0, %s420
      %s423 = sphi 0, %s422
      %s437 = sphi 0, %s423
      %s441 = sphi 0, %s441
      %s443 = sphi 0, %s441
      %s444 = sphi 0, %s443
      %s458 = sphi 0, %s444
      %s462 = sphi 0, %s462
      %s464 = sphi 0, %s462
      %s465 = sphi 0, %s464
      %s479 = sphi 0, %s465
      %s483 = sphi 0, %s483
      %s485 = sphi 0, %s483
      %s486 = sphi 0, %s485
      %s500 = sphi 0, %s486
      %s504 = sphi 0, %s504
      %s506 = sphi 0, %s504
      %s507 = sphi 0, %s506
      %s521 = sphi 0, %s507
      %s525 = sphi 0, %s525
      %s527 = sphi 0, %s525
      %s528 = sphi 0, %s527
      %s542 = sphi 0, %s528
      %s546 = sphi 0, %s546
      %s548 = sphi 0, %s546
      %s549 = sphi 0, %s548
      %s563 = sphi 0, %s549
      %s567 = sphi 0, %s567
      %s569 = sphi 0, %s567
      %s570 = sphi 0, %s569
      %s584 = sphi 0, %s570
      %s588 = sphi 0, %s588
      %s590 = sphi 0, %s588
      %s591 = sphi 0, %s590
      %s605 = sphi 0, %s591
      %s609 = sphi 0, %s609
      %s611 = sphi 0, %s609
      %s612 = sphi 0, %s611
      %s626 = sphi 0, %s612
      %s630 = sphi 0, %s630
      %s632 = sphi 0, %s630
      %s633 = sphi 0, %s632
      %s647 = sphi 0, %s633
      %s651 = sphi 0, %s651
      %s653 = sphi 0, %s651
      %s654 = sphi 0, %s653
      %s668 = sphi 0, %s654
      %s672 = sphi 0, %s672
      %s674 = sphi 0, %s672
      %s675 = sphi 0, %s674
      %s689 = sphi 0, %s675
      %s693 = sphi 0, %s693
      %s695 = sphi 0, %s693
      %s696 = sphi 0, %s695
      %s710 = sphi 0, %s696
      %s714 = sphi 0, %s714
      %s716 = sphi 0, %s714
      %s717 = sphi 0, %s716
      %s731 = sphi 0, %s717
      %s735 = sphi 0, %s735
      %s737 = sphi 0, %s735
      %s738 = sphi 0, %s737
      %s752 = sphi 0, %s738
      %s756 = sphi 0, %s756
      %s758 = sphi 0, %s756
      %s759 = sphi 0, %s758
      %s773 = sphi 0, %s759
      %s779 = sphi 0, %s781
      %s782 = sphi 0, %s779
      %s783 = sphi 0, %s782
      %s799 = sphi 0, %s783
      %s805 = sphi 0, %s807
      %s808 = sphi 0, %s805
      %s809 = sphi 0, %s808
      %s825 = sphi 0, %s809
      %s831 = sphi 0, %s833
      %s834 = sphi 0, %s831
      %s835 = sphi 0, %s834
      %s851 = sphi 0, %s835
    $region4: #{_lambda_.3} parent=1 // loop_header_branch
      %90 = sbr.rel (%p88) target = $region8
    $region5: #{_lambda_.3} parent=1 // loop_body
      %s92 = ssub.s32 %s87, 1
      %s93 = ssub.s32 %s87, 2
      %s94 = sadd.s32 %s87, 1
      %s95 = ssub.s32 %s87, %s94
      %p96 = scmp.eq.s32.totalorder %s95, 0
      %s98 = sadd.s32 %s97, 1
      %s99 = scalar_select %p96, %s97, %s98
      %p102 = pneg %p96
      %p103 = scmp.eq.s32.totalorder %s87, 1
      %p104 = por %p102, %p103
      %p105 = scmp.ne.s32.totalorder %s97, %s100
      %p106 = scmp.eq.s32.totalorder %s87, 0
      %p107 = por %p105, %p106
      %p108 = scmp.ne.s32.totalorder %s97, %s100
      %p109 = scmp.eq.s32.totalorder %s92, 1
      %p110 = por %p108, %p109
      %p111 = scmp.ne.s32.totalorder %s100, %s101
      %p112 = scmp.eq.s32.totalorder %s92, 0
      %p113 = por %p111, %p112
      %p114 = scmp.ne.s32.totalorder %s100, %s101
      %p115 = scmp.eq.s32.totalorder %s93, 1
      %p116 = por %p114, %p115
      %p118 = scmp.ne.s32.totalorder %s101, %s117
      %p119 = scmp.eq.s32.totalorder %s93, 0
      %p120 = por %p118, %p119
      %s121 = ssub.s32 %s87, %s94
      %p122 = scmp.eq.s32.totalorder %s121, 0
      %s124 = sadd.s32 %s123, 1
      %s125 = scalar_select %p122, %s123, %s124
      %p128 = pneg %p122
      %p129 = scmp.eq.s32.totalorder %s87, 1
      %p130 = por %p128, %p129
      %p131 = scmp.ne.s32.totalorder %s123, %s126
      %p132 = scmp.eq.s32.totalorder %s87, 0
      %p133 = por %p131, %p132
      %p134 = scmp.ne.s32.totalorder %s123, %s126
      %p135 = scmp.eq.s32.totalorder %s92, 1
      %p136 = por %p134, %p135
      %p137 = scmp.ne.s32.totalorder %s126, %s127
      %p138 = scmp.eq.s32.totalorder %s92, 0
      %p139 = por %p137, %p138
      %p140 = scmp.ne.s32.totalorder %s126, %s127
      %p141 = scmp.eq.s32.totalorder %s93, 1
      %p142 = por %p140, %p141
      %p144 = scmp.ne.s32.totalorder %s127, %s143
      %p145 = scmp.eq.s32.totalorder %s93, 0
      %p146 = por %p144, %p145
      %s148 = sadd.s32 %s147, 1
      %p151 = scmp.eq.s32.totalorder %s87, 1
      %p152 = scmp.ne.s32.totalorder %s147, %s149
      %p153 = scmp.eq.s32.totalorder %s87, 0
      %p154 = por %p152, %p153
      %p155 = scmp.ne.s32.totalorder %s147, %s149
      %p156 = scmp.eq.s32.totalorder %s92, 1
      %p157 = por %p155, %p156
      %p158 = scmp.ne.s32.totalorder %s149, %s150
      %p159 = scmp.eq.s32.totalorder %s92, 0
      %p160 = por %p158, %p159
      %p161 = scmp.ne.s32.totalorder %s149, %s150
      %p162 = scmp.eq.s32.totalorder %s93, 1
      %p163 = por %p161, %p162
      %p165 = scmp.ne.s32.totalorder %s150, %s164
      %p166 = scmp.eq.s32.totalorder %s93, 0
      %p167 = por %p165, %p166
      %s169 = sadd.s32 %s168, 1
      %p172 = scmp.eq.s32.totalorder %s87, 1
      %p173 = scmp.ne.s32.totalorder %s168, %s170
      %p174 = scmp.eq.s32.totalorder %s87, 0
      %p175 = por %p173, %p174
      %p176 = scmp.ne.s32.totalorder %s168, %s170
      %p177 = scmp.eq.s32.totalorder %s92, 1
      %p178 = por %p176, %p177
      %p179 = scmp.ne.s32.totalorder %s170, %s171
      %p180 = scmp.eq.s32.totalorder %s92, 0
      %p181 = por %p179, %p180
      %p182 = scmp.ne.s32.totalorder %s170, %s171
      %p183 = scmp.eq.s32.totalorder %s93, 1
      %p184 = por %p182, %p183
      %p186 = scmp.ne.s32.totalorder %s171, %s185
      %p187 = scmp.eq.s32.totalorder %s93, 0
      %p188 = por %p186, %p187
      %s190 = sadd.s32 %s189, 1
      %p193 = scmp.eq.s32.totalorder %s87, 1
      %p194 = scmp.ne.s32.totalorder %s189, %s191
      %p195 = scmp.eq.s32.totalorder %s87, 0
      %p196 = por %p194, %p195
      %p197 = scmp.ne.s32.totalorder %s189, %s191
      %p198 = scmp.eq.s32.totalorder %s92, 1
      %p199 = por %p197, %p198
      %p200 = scmp.ne.s32.totalorder %s191, %s192
      %p201 = scmp.eq.s32.totalorder %s92, 0
      %p202 = por %p200, %p201
      %p203 = scmp.ne.s32.totalorder %s191, %s192
      %p204 = scmp.eq.s32.totalorder %s93, 1
      %p205 = por %p203, %p204
      %p207 = scmp.ne.s32.totalorder %s192, %s206
      %p208 = scmp.eq.s32.totalorder %s93, 0
      %p209 = por %p207, %p208
      %s211 = sadd.s32 %s210, 1
      %p214 = scmp.eq.s32.totalorder %s87, 1
      %p215 = scmp.ne.s32.totalorder %s210, %s212
      %p216 = scmp.eq.s32.totalorder %s87, 0
      %p217 = por %p215, %p216
      %p218 = scmp.ne.s32.totalorder %s210, %s212
      %p219 = scmp.eq.s32.totalorder %s92, 1
      %p220 = por %p218, %p219
      %p221 = scmp.ne.s32.totalorder %s212, %s213
      %p222 = scmp.eq.s32.totalorder %s92, 0
      %p223 = por %p221, %p222
      %p224 = scmp.ne.s32.totalorder %s212, %s213
      %p225 = scmp.eq.s32.totalorder %s93, 1
      %p226 = por %p224, %p225
      %p228 = scmp.ne.s32.totalorder %s213, %s227
      %p229 = scmp.eq.s32.totalorder %s93, 0
      %p230 = por %p228, %p229
      %s232 = sadd.s32 %s231, 1
      %p235 = scmp.eq.s32.totalorder %s87, 1
      %p236 = scmp.ne.s32.totalorder %s231, %s233
      %p237 = scmp.eq.s32.totalorder %s87, 0
      %p238 = por %p236, %p237
      %p239 = scmp.ne.s32.totalorder %s231, %s233
      %p240 = scmp.eq.s32.totalorder %s92, 1
      %p241 = por %p239, %p240
      %p242 = scmp.ne.s32.totalorder %s233, %s234
      %p243 = scmp.eq.s32.totalorder %s92, 0
      %p244 = por %p242, %p243
      %p245 = scmp.ne.s32.totalorder %s233, %s234
      %p246 = scmp.eq.s32.totalorder %s93, 1
      %p247 = por %p245, %p246
      %p249 = scmp.ne.s32.totalorder %s234, %s248
      %p250 = scmp.eq.s32.totalorder %s93, 0
      %p251 = por %p249, %p250
      %s253 = sadd.s32 %s252, 1
      %p256 = scmp.eq.s32.totalorder %s87, 1
      %p257 = scmp.ne.s32.totalorder %s252, %s254
      %p258 = scmp.eq.s32.totalorder %s87, 0
      %p259 = por %p257, %p258
      %p260 = scmp.ne.s32.totalorder %s252, %s254
      %p261 = scmp.eq.s32.totalorder %s92, 1
      %p262 = por %p260, %p261
      %p263 = scmp.ne.s32.totalorder %s254, %s255
      %p264 = scmp.eq.s32.totalorder %s92, 0
      %p265 = por %p263, %p264
      %p266 = scmp.ne.s32.totalorder %s254, %s255
      %p267 = scmp.eq.s32.totalorder %s93, 1
      %p268 = por %p266, %p267
      %p270 = scmp.ne.s32.totalorder %s255, %s269
      %p271 = scmp.eq.s32.totalorder %s93, 0
      %p272 = por %p270, %p271
      %s274 = sadd.s32 %s273, 1
      %p277 = scmp.eq.s32.totalorder %s87, 1
      %p278 = scmp.ne.s32.totalorder %s273, %s275
      %p279 = scmp.eq.s32.totalorder %s87, 0
      %p280 = por %p278, %p279
      %p281 = scmp.ne.s32.totalorder %s273, %s275
      %p282 = scmp.eq.s32.totalorder %s92, 1
      %p283 = por %p281, %p282
      %p284 = scmp.ne.s32.totalorder %s275, %s276
      %p285 = scmp.eq.s32.totalorder %s92, 0
      %p286 = por %p284, %p285
      %p287 = scmp.ne.s32.totalorder %s275, %s276
      %p288 = scmp.eq.s32.totalorder %s93, 1
      %p289 = por %p287, %p288
      %p291 = scmp.ne.s32.totalorder %s276, %s290
      %p292 = scmp.eq.s32.totalorder %s93, 0
      %p293 = por %p291, %p292
      %s295 = sadd.s32 %s294, 1
      %p298 = scmp.eq.s32.totalorder %s87, 1
      %p299 = scmp.ne.s32.totalorder %s294, %s296
      %p300 = scmp.eq.s32.totalorder %s87, 0
      %p301 = por %p299, %p300
      %p302 = scmp.ne.s32.totalorder %s294, %s296
      %p303 = scmp.eq.s32.totalorder %s92, 1
      %p304 = por %p302, %p303
      %p305 = scmp.ne.s32.totalorder %s296, %s297
      %p306 = scmp.eq.s32.totalorder %s92, 0
      %p307 = por %p305, %p306
      %p308 = scmp.ne.s32.totalorder %s296, %s297
      %p309 = scmp.eq.s32.totalorder %s93, 1
      %p310 = por %p308, %p309
      %p312 = scmp.ne.s32.totalorder %s297, %s311
      %p313 = scmp.eq.s32.totalorder %s93, 0
      %p314 = por %p312, %p313
      %s316 = sadd.s32 %s315, 1
      %p319 = scmp.eq.s32.totalorder %s87, 1
      %p320 = scmp.ne.s32.totalorder %s315, %s317
      %p321 = scmp.eq.s32.totalorder %s87, 0
      %p322 = por %p320, %p321
      %p323 = scmp.ne.s32.totalorder %s315, %s317
      %p324 = scmp.eq.s32.totalorder %s92, 1
      %p325 = por %p323, %p324
      %p326 = scmp.ne.s32.totalorder %s317, %s318
      %p327 = scmp.eq.s32.totalorder %s92, 0
      %p328 = por %p326, %p327
      %p329 = scmp.ne.s32.totalorder %s317, %s318
      %p330 = scmp.eq.s32.totalorder %s93, 1
      %p331 = por %p329, %p330
      %p333 = scmp.ne.s32.totalorder %s318, %s332
      %p334 = scmp.eq.s32.totalorder %s93, 0
      %p335 = por %p333, %p334
      %s337 = sadd.s32 %s336, 1
      %p340 = scmp.eq.s32.totalorder %s87, 1
      %p341 = scmp.ne.s32.totalorder %s336, %s338
      %p342 = scmp.eq.s32.totalorder %s87, 0
      %p343 = por %p341, %p342
      %p344 = scmp.ne.s32.totalorder %s336, %s338
      %p345 = scmp.eq.s32.totalorder %s92, 1
      %p346 = por %p344, %p345
      %p347 = scmp.ne.s32.totalorder %s338, %s339
      %p348 = scmp.eq.s32.totalorder %s92, 0
      %p349 = por %p347, %p348
      %p350 = scmp.ne.s32.totalorder %s338, %s339
      %p351 = scmp.eq.s32.totalorder %s93, 1
      %p352 = por %p350, %p351
      %p354 = scmp.ne.s32.totalorder %s339, %s353
      %p355 = scmp.eq.s32.totalorder %s93, 0
      %p356 = por %p354, %p355
      %s358 = sadd.s32 %s357, 1
      %p361 = scmp.eq.s32.totalorder %s87, 1
      %p362 = scmp.ne.s32.totalorder %s357, %s359
      %p363 = scmp.eq.s32.totalorder %s87, 0
      %p364 = por %p362, %p363
      %p365 = scmp.ne.s32.totalorder %s357, %s359
      %p366 = scmp.eq.s32.totalorder %s92, 1
      %p367 = por %p365, %p366
      %p368 = scmp.ne.s32.totalorder %s359, %s360
      %p369 = scmp.eq.s32.totalorder %s92, 0
      %p370 = por %p368, %p369
      %p371 = scmp.ne.s32.totalorder %s359, %s360
      %p372 = scmp.eq.s32.totalorder %s93, 1
      %p373 = por %p371, %p372
      %p375 = scmp.ne.s32.totalorder %s360, %s374
      %p376 = scmp.eq.s32.totalorder %s93, 0
      %p377 = por %p375, %p376
      %s379 = sadd.s32 %s378, 1
      %p382 = scmp.eq.s32.totalorder %s87, 1
      %p383 = scmp.ne.s32.totalorder %s378, %s380
      %p384 = scmp.eq.s32.totalorder %s87, 0
      %p385 = por %p383, %p384
      %p386 = scmp.ne.s32.totalorder %s378, %s380
      %p387 = scmp.eq.s32.totalorder %s92, 1
      %p388 = por %p386, %p387
      %p389 = scmp.ne.s32.totalorder %s380, %s381
      %p390 = scmp.eq.s32.totalorder %s92, 0
      %p391 = por %p389, %p390
      %p392 = scmp.ne.s32.totalorder %s380, %s381
      %p393 = scmp.eq.s32.totalorder %s93, 1
      %p394 = por %p392, %p393
      %p396 = scmp.ne.s32.totalorder %s381, %s395
      %p397 = scmp.eq.s32.totalorder %s93, 0
      %p398 = por %p396, %p397
      %s400 = sadd.s32 %s399, 1
      %p403 = scmp.eq.s32.totalorder %s87, 1
      %p404 = scmp.ne.s32.totalorder %s399, %s401
      %p405 = scmp.eq.s32.totalorder %s87, 0
      %p406 = por %p404, %p405
      %p407 = scmp.ne.s32.totalorder %s399, %s401
      %p408 = scmp.eq.s32.totalorder %s92, 1
      %p409 = por %p407, %p408
      %p410 = scmp.ne.s32.totalorder %s401, %s402
      %p411 = scmp.eq.s32.totalorder %s92, 0
      %p412 = por %p410, %p411
      %p413 = scmp.ne.s32.totalorder %s401, %s402
      %p414 = scmp.eq.s32.totalorder %s93, 1
      %p415 = por %p413, %p414
      %p417 = scmp.ne.s32.totalorder %s402, %s416
      %p418 = scmp.eq.s32.totalorder %s93, 0
      %p419 = por %p417, %p418
      %s421 = sadd.s32 %s420, 1
      %p424 = scmp.eq.s32.totalorder %s87, 1
      %p425 = scmp.ne.s32.totalorder %s420, %s422
      %p426 = scmp.eq.s32.totalorder %s87, 0
      %p427 = por %p425, %p426
      %p428 = scmp.ne.s32.totalorder %s420, %s422
      %p429 = scmp.eq.s32.totalorder %s92, 1
      %p430 = por %p428, %p429
      %p431 = scmp.ne.s32.totalorder %s422, %s423
      %p432 = scmp.eq.s32.totalorder %s92, 0
      %p433 = por %p431, %p432
      %p434 = scmp.ne.s32.totalorder %s422, %s423
      %p435 = scmp.eq.s32.totalorder %s93, 1
      %p436 = por %p434, %p435
      %p438 = scmp.ne.s32.totalorder %s423, %s437
      %p439 = scmp.eq.s32.totalorder %s93, 0
      %p440 = por %p438, %p439
      %s442 = sadd.s32 %s441, 1
      %p445 = scmp.eq.s32.totalorder %s87, 1
      %p446 = scmp.ne.s32.totalorder %s441, %s443
      %p447 = scmp.eq.s32.totalorder %s87, 0
      %p448 = por %p446, %p447
      %p449 = scmp.ne.s32.totalorder %s441, %s443
      %p450 = scmp.eq.s32.totalorder %s92, 1
      %p451 = por %p449, %p450
      %p452 = scmp.ne.s32.totalorder %s443, %s444
      %p453 = scmp.eq.s32.totalorder %s92, 0
      %p454 = por %p452, %p453
      %p455 = scmp.ne.s32.totalorder %s443, %s444
      %p456 = scmp.eq.s32.totalorder %s93, 1
      %p457 = por %p455, %p456
      %p459 = scmp.ne.s32.totalorder %s444, %s458
      %p460 = scmp.eq.s32.totalorder %s93, 0
      %p461 = por %p459, %p460
      %s463 = sadd.s32 %s462, 1
      %p466 = scmp.eq.s32.totalorder %s87, 1
      %p467 = scmp.ne.s32.totalorder %s462, %s464
      %p468 = scmp.eq.s32.totalorder %s87, 0
      %p469 = por %p467, %p468
      %p470 = scmp.ne.s32.totalorder %s462, %s464
      %p471 = scmp.eq.s32.totalorder %s92, 1
      %p472 = por %p470, %p471
      %p473 = scmp.ne.s32.totalorder %s464, %s465
      %p474 = scmp.eq.s32.totalorder %s92, 0
      %p475 = por %p473, %p474
      %p476 = scmp.ne.s32.totalorder %s464, %s465
      %p477 = scmp.eq.s32.totalorder %s93, 1
      %p478 = por %p476, %p477
      %p480 = scmp.ne.s32.totalorder %s465, %s479
      %p481 = scmp.eq.s32.totalorder %s93, 0
      %p482 = por %p480, %p481
      %s484 = sadd.s32 %s483, 1
      %p487 = scmp.eq.s32.totalorder %s87, 1
      %p488 = scmp.ne.s32.totalorder %s483, %s485
      %p489 = scmp.eq.s32.totalorder %s87, 0
      %p490 = por %p488, %p489
      %p491 = scmp.ne.s32.totalorder %s483, %s485
      %p492 = scmp.eq.s32.totalorder %s92, 1
      %p493 = por %p491, %p492
      %p494 = scmp.ne.s32.totalorder %s485, %s486
      %p495 = scmp.eq.s32.totalorder %s92, 0
      %p496 = por %p494, %p495
      %p497 = scmp.ne.s32.totalorder %s485, %s486
      %p498 = scmp.eq.s32.totalorder %s93, 1
      %p499 = por %p497, %p498
      %p501 = scmp.ne.s32.totalorder %s486, %s500
      %p502 = scmp.eq.s32.totalorder %s93, 0
      %p503 = por %p501, %p502
      %s505 = sadd.s32 %s504, 1
      %p508 = scmp.eq.s32.totalorder %s87, 1
      %p509 = scmp.ne.s32.totalorder %s504, %s506
      %p510 = scmp.eq.s32.totalorder %s87, 0
      %p511 = por %p509, %p510
      %p512 = scmp.ne.s32.totalorder %s504, %s506
      %p513 = scmp.eq.s32.totalorder %s92, 1
      %p514 = por %p512, %p513
      %p515 = scmp.ne.s32.totalorder %s506, %s507
      %p516 = scmp.eq.s32.totalorder %s92, 0
      %p517 = por %p515, %p516
      %p518 = scmp.ne.s32.totalorder %s506, %s507
      %p519 = scmp.eq.s32.totalorder %s93, 1
      %p520 = por %p518, %p519
      %p522 = scmp.ne.s32.totalorder %s507, %s521
      %p523 = scmp.eq.s32.totalorder %s93, 0
      %p524 = por %p522, %p523
      %s526 = sadd.s32 %s525, 1
      %p529 = scmp.eq.s32.totalorder %s87, 1
      %p530 = scmp.ne.s32.totalorder %s525, %s527
      %p531 = scmp.eq.s32.totalorder %s87, 0
      %p532 = por %p530, %p531
      %p533 = scmp.ne.s32.totalorder %s525, %s527
      %p534 = scmp.eq.s32.totalorder %s92, 1
      %p535 = por %p533, %p534
      %p536 = scmp.ne.s32.totalorder %s527, %s528
      %p537 = scmp.eq.s32.totalorder %s92, 0
      %p538 = por %p536, %p537
      %p539 = scmp.ne.s32.totalorder %s527, %s528
      %p540 = scmp.eq.s32.totalorder %s93, 1
      %p541 = por %p539, %p540
      %p543 = scmp.ne.s32.totalorder %s528, %s542
      %p544 = scmp.eq.s32.totalorder %s93, 0
      %p545 = por %p543, %p544
      %s547 = sadd.s32 %s546, 1
      %p550 = scmp.eq.s32.totalorder %s87, 1
      %p551 = scmp.ne.s32.totalorder %s546, %s548
      %p552 = scmp.eq.s32.totalorder %s87, 0
      %p553 = por %p551, %p552
      %p554 = scmp.ne.s32.totalorder %s546, %s548
      %p555 = scmp.eq.s32.totalorder %s92, 1
      %p556 = por %p554, %p555
      %p557 = scmp.ne.s32.totalorder %s548, %s549
      %p558 = scmp.eq.s32.totalorder %s92, 0
      %p559 = por %p557, %p558
      %p560 = scmp.ne.s32.totalorder %s548, %s549
      %p561 = scmp.eq.s32.totalorder %s93, 1
      %p562 = por %p560, %p561
      %p564 = scmp.ne.s32.totalorder %s549, %s563
      %p565 = scmp.eq.s32.totalorder %s93, 0
      %p566 = por %p564, %p565
      %s568 = sadd.s32 %s567, 1
      %p571 = scmp.eq.s32.totalorder %s87, 1
      %p572 = scmp.ne.s32.totalorder %s567, %s569
      %p573 = scmp.eq.s32.totalorder %s87, 0
      %p574 = por %p572, %p573
      %p575 = scmp.ne.s32.totalorder %s567, %s569
      %p576 = scmp.eq.s32.totalorder %s92, 1
      %p577 = por %p575, %p576
      %p578 = scmp.ne.s32.totalorder %s569, %s570
      %p579 = scmp.eq.s32.totalorder %s92, 0
      %p580 = por %p578, %p579
      %p581 = scmp.ne.s32.totalorder %s569, %s570
      %p582 = scmp.eq.s32.totalorder %s93, 1
      %p583 = por %p581, %p582
      %p585 = scmp.ne.s32.totalorder %s570, %s584
      %p586 = scmp.eq.s32.totalorder %s93, 0
      %p587 = por %p585, %p586
      %s589 = sadd.s32 %s588, 1
      %p592 = scmp.eq.s32.totalorder %s87, 1
      %p593 = scmp.ne.s32.totalorder %s588, %s590
      %p594 = scmp.eq.s32.totalorder %s87, 0
      %p595 = por %p593, %p594
      %p596 = scmp.ne.s32.totalorder %s588, %s590
      %p597 = scmp.eq.s32.totalorder %s92, 1
      %p598 = por %p596, %p597
      %p599 = scmp.ne.s32.totalorder %s590, %s591
      %p600 = scmp.eq.s32.totalorder %s92, 0
      %p601 = por %p599, %p600
      %p602 = scmp.ne.s32.totalorder %s590, %s591
      %p603 = scmp.eq.s32.totalorder %s93, 1
      %p604 = por %p602, %p603
      %p606 = scmp.ne.s32.totalorder %s591, %s605
      %p607 = scmp.eq.s32.totalorder %s93, 0
      %p608 = por %p606, %p607
      %s610 = sadd.s32 %s609, 1
      %p613 = scmp.eq.s32.totalorder %s87, 1
      %p614 = scmp.ne.s32.totalorder %s609, %s611
      %p615 = scmp.eq.s32.totalorder %s87, 0
      %p616 = por %p614, %p615
      %p617 = scmp.ne.s32.totalorder %s609, %s611
      %p618 = scmp.eq.s32.totalorder %s92, 1
      %p619 = por %p617, %p618
      %p620 = scmp.ne.s32.totalorder %s611, %s612
      %p621 = scmp.eq.s32.totalorder %s92, 0
      %p622 = por %p620, %p621
      %p623 = scmp.ne.s32.totalorder %s611, %s612
      %p624 = scmp.eq.s32.totalorder %s93, 1
      %p625 = por %p623, %p624
      %p627 = scmp.ne.s32.totalorder %s612, %s626
      %p628 = scmp.eq.s32.totalorder %s93, 0
      %p629 = por %p627, %p628
      %s631 = sadd.s32 %s630, 1
      %p634 = scmp.eq.s32.totalorder %s87, 1
      %p635 = scmp.ne.s32.totalorder %s630, %s632
      %p636 = scmp.eq.s32.totalorder %s87, 0
      %p637 = por %p635, %p636
      %p638 = scmp.ne.s32.totalorder %s630, %s632
      %p639 = scmp.eq.s32.totalorder %s92, 1
      %p640 = por %p638, %p639
      %p641 = scmp.ne.s32.totalorder %s632, %s633
      %p642 = scmp.eq.s32.totalorder %s92, 0
      %p643 = por %p641, %p642
      %p644 = scmp.ne.s32.totalorder %s632, %s633
      %p645 = scmp.eq.s32.totalorder %s93, 1
      %p646 = por %p644, %p645
      %p648 = scmp.ne.s32.totalorder %s633, %s647
      %p649 = scmp.eq.s32.totalorder %s93, 0
      %p650 = por %p648, %p649
      %s652 = sadd.s32 %s651, 1
      %p655 = scmp.eq.s32.totalorder %s87, 1
      %p656 = scmp.ne.s32.totalorder %s651, %s653
      %p657 = scmp.eq.s32.totalorder %s87, 0
      %p658 = por %p656, %p657
      %p659 = scmp.ne.s32.totalorder %s651, %s653
      %p660 = scmp.eq.s32.totalorder %s92, 1
      %p661 = por %p659, %p660
      %p662 = scmp.ne.s32.totalorder %s653, %s654
      %p663 = scmp.eq.s32.totalorder %s92, 0
      %p664 = por %p662, %p663
      %p665 = scmp.ne.s32.totalorder %s653, %s654
      %p666 = scmp.eq.s32.totalorder %s93, 1
      %p667 = por %p665, %p666
      %p669 = scmp.ne.s32.totalorder %s654, %s668
      %p670 = scmp.eq.s32.totalorder %s93, 0
      %p671 = por %p669, %p670
      %s673 = sadd.s32 %s672, 1
      %p676 = scmp.eq.s32.totalorder %s87, 1
      %p677 = scmp.ne.s32.totalorder %s672, %s674
      %p678 = scmp.eq.s32.totalorder %s87, 0
      %p679 = por %p677, %p678
      %p680 = scmp.ne.s32.totalorder %s672, %s674
      %p681 = scmp.eq.s32.totalorder %s92, 1
      %p682 = por %p680, %p681
      %p683 = scmp.ne.s32.totalorder %s674, %s675
      %p684 = scmp.eq.s32.totalorder %s92, 0
      %p685 = por %p683, %p684
      %p686 = scmp.ne.s32.totalorder %s674, %s675
      %p687 = scmp.eq.s32.totalorder %s93, 1
      %p688 = por %p686, %p687
      %p690 = scmp.ne.s32.totalorder %s675, %s689
      %p691 = scmp.eq.s32.totalorder %s93, 0
      %p692 = por %p690, %p691
      %s694 = sadd.s32 %s693, 1
      %p697 = scmp.eq.s32.totalorder %s87, 1
      %p698 = scmp.ne.s32.totalorder %s693, %s695
      %p699 = scmp.eq.s32.totalorder %s87, 0
      %p700 = por %p698, %p699
      %p701 = scmp.ne.s32.totalorder %s693, %s695
      %p702 = scmp.eq.s32.totalorder %s92, 1
      %p703 = por %p701, %p702
      %p704 = scmp.ne.s32.totalorder %s695, %s696
      %p705 = scmp.eq.s32.totalorder %s92, 0
      %p706 = por %p704, %p705
      %p707 = scmp.ne.s32.totalorder %s695, %s696
      %p708 = scmp.eq.s32.totalorder %s93, 1
      %p709 = por %p707, %p708
      %p711 = scmp.ne.s32.totalorder %s696, %s710
      %p712 = scmp.eq.s32.totalorder %s93, 0
      %p713 = por %p711, %p712
      %s715 = sadd.s32 %s714, 1
      %p718 = scmp.eq.s32.totalorder %s87, 1
      %p719 = scmp.ne.s32.totalorder %s714, %s716
      %p720 = scmp.eq.s32.totalorder %s87, 0
      %p721 = por %p719, %p720
      %p722 = scmp.ne.s32.totalorder %s714, %s716
      %p723 = scmp.eq.s32.totalorder %s92, 1
      %p724 = por %p722, %p723
      %p725 = scmp.ne.s32.totalorder %s716, %s717
      %p726 = scmp.eq.s32.totalorder %s92, 0
      %p727 = por %p725, %p726
      %p728 = scmp.ne.s32.totalorder %s716, %s717
      %p729 = scmp.eq.s32.totalorder %s93, 1
      %p730 = por %p728, %p729
      %p732 = scmp.ne.s32.totalorder %s717, %s731
      %p733 = scmp.eq.s32.totalorder %s93, 0
      %p734 = por %p732, %p733
      %s736 = sadd.s32 %s735, 1
      %p739 = scmp.eq.s32.totalorder %s87, 1
      %p740 = scmp.ne.s32.totalorder %s735, %s737
      %p741 = scmp.eq.s32.totalorder %s87, 0
      %p742 = por %p740, %p741
      %p743 = scmp.ne.s32.totalorder %s735, %s737
      %p744 = scmp.eq.s32.totalorder %s92, 1
      %p745 = por %p743, %p744
      %p746 = scmp.ne.s32.totalorder %s737, %s738
      %p747 = scmp.eq.s32.totalorder %s92, 0
      %p748 = por %p746, %p747
      %p749 = scmp.ne.s32.totalorder %s737, %s738
      %p750 = scmp.eq.s32.totalorder %s93, 1
      %p751 = por %p749, %p750
      %p753 = scmp.ne.s32.totalorder %s738, %s752
      %p754 = scmp.eq.s32.totalorder %s93, 0
      %p755 = por %p753, %p754
      %s757 = sadd.s32 %s756, 1
      %p760 = scmp.eq.s32.totalorder %s87, 1
      %p761 = scmp.ne.s32.totalorder %s756, %s758
      %p762 = scmp.eq.s32.totalorder %s87, 0
      %p763 = por %p761, %p762
      %p764 = scmp.ne.s32.totalorder %s756, %s758
      %p765 = scmp.eq.s32.totalorder %s92, 1
      %p766 = por %p764, %p765
      %p767 = scmp.ne.s32.totalorder %s758, %s759
      %p768 = scmp.eq.s32.totalorder %s92, 0
      %p769 = por %p767, %p768
      %p770 = scmp.ne.s32.totalorder %s758, %s759
      %p771 = scmp.eq.s32.totalorder %s93, 1
      %p772 = por %p770, %p771
      %p774 = scmp.ne.s32.totalorder %s759, %s773
      %p775 = scmp.eq.s32.totalorder %s93, 0
      %p776 = por %p774, %p775
      %s777 = ssub.s32 %s87, %s94
      %p778 = scmp.eq.s32.totalorder %s777, 0
      %s780 = sadd.s32 %s779, 1
      %s781 = scalar_select %p778, %s779, %s780
      %p784 = pneg %p778
      %p785 = scmp.eq.s32.totalorder %s87, 1
      %p786 = por %p784, %p785
      %p787 = scmp.ne.s32.totalorder %s779, %s782
      %p788 = scmp.eq.s32.totalorder %s87, 0
      %p789 = por %p787, %p788
      %p790 = scmp.ne.s32.totalorder %s779, %s782
      %p791 = scmp.eq.s32.totalorder %s92, 1
      %p792 = por %p790, %p791
      %p793 = scmp.ne.s32.totalorder %s782, %s783
      %p794 = scmp.eq.s32.totalorder %s92, 0
      %p795 = por %p793, %p794
      %p796 = scmp.ne.s32.totalorder %s782, %s783
      %p797 = scmp.eq.s32.totalorder %s93, 1
      %p798 = por %p796, %p797
      %p800 = scmp.ne.s32.totalorder %s783, %s799
      %p801 = scmp.eq.s32.totalorder %s93, 0
      %p802 = por %p800, %p801
      %s803 = ssub.s32 %s87, %s94
      %p804 = scmp.eq.s32.totalorder %s803, 0
      %s806 = sadd.s32 %s805, 1
      %s807 = scalar_select %p804, %s805, %s806
      %p810 = pneg %p804
      %p811 = scmp.eq.s32.totalorder %s87, 1
      %p812 = por %p810, %p811
      %p813 = scmp.ne.s32.totalorder %s805, %s808
      %p814 = scmp.eq.s32.totalorder %s87, 0
      %p815 = por %p813, %p814
      %p816 = scmp.ne.s32.totalorder %s805, %s808
      %p817 = scmp.eq.s32.totalorder %s92, 1
      %p818 = por %p816, %p817
      %p819 = scmp.ne.s32.totalorder %s808, %s809
      %p820 = scmp.eq.s32.totalorder %s92, 0
      %p821 = por %p819, %p820
      %p822 = scmp.ne.s32.totalorder %s808, %s809
      %p823 = scmp.eq.s32.totalorder %s93, 1
      %p824 = por %p822, %p823
      %p826 = scmp.ne.s32.totalorder %s809, %s825
      %p827 = scmp.eq.s32.totalorder %s93, 0
      %p828 = por %p826, %p827
      %s829 = ssub.s32 %s87, %s94
      %p830 = scmp.eq.s32.totalorder %s829, 0
      %s832 = sadd.s32 %s831, 1
      %s833 = scalar_select %p830, %s831, %s832
      %p836 = pneg %p830
      %p837 = scmp.eq.s32.totalorder %s87, 1
      %p838 = por %p836, %p837
      %p839 = scmp.ne.s32.totalorder %s831, %s834
      %p840 = scmp.eq.s32.totalorder %s87, 0
      %p841 = por %p839, %p840
      %p842 = scmp.ne.s32.totalorder %s831, %s834
      %p843 = scmp.eq.s32.totalorder %s92, 1
      %p844 = por %p842, %p843
      %p845 = scmp.ne.s32.totalorder %s834, %s835
      %p846 = scmp.eq.s32.totalorder %s92, 0
      %p847 = por %p845, %p846
      %p848 = scmp.ne.s32.totalorder %s834, %s835
      %p849 = scmp.eq.s32.totalorder %s93, 1
      %p850 = por %p848, %p849
      %p852 = scmp.ne.s32.totalorder %s835, %s851
      %p853 = scmp.eq.s32.totalorder %s93, 0
      %p854 = por %p852, %p853
      %p855 = scmp.le.s32.totalorder 1, %s87
      %p856 = scmp.lt.s32.totalorder %s87, 3
      %p857 = pnand %p855, %p856
      %p858 = pneg %p857
      // Predicated region
      $region9: #{_lambda_.3} parent=5 // pred_check
        _
      $region10: #{_lambda_.3} parent=5 // pred_check_branch
        %860 = sbr.rel (%p857) target = $region12
      $region11: #{_lambda_.3} parent=5 // pred_region
        %s861 = ssub.s32 %s87, 1
        // Predicated region
        $region13: #{_lambda_.3} parent=11 // pred_check
          %p862 = pneg %p160
        $region14: #{_lambda_.3} parent=11 // pred_check_branch
          %864 = sbr.rel (%p862) target = $region16
        $region15: #{_lambda_.3} parent=11 // pred_region
          _
        $region16: #{_lambda_.3} parent=11 // pred_fallthru
          _
        // Predicated region
        $region17: #{_lambda_.3} parent=11 // pred_check
          %p865 = pneg %p181
        $region18: #{_lambda_.3} parent=11 // pred_check_branch
          %867 = sbr.rel (%p865) target = $region20
        $region19: #{_lambda_.3} parent=11 // pred_region
          _
        $region20: #{_lambda_.3} parent=11 // pred_fallthru
          _
        // Predicated region
        $region21: #{_lambda_.3} parent=11 // pred_check
          %p868 = pneg %p202
        $region22: #{_lambda_.3} parent=11 // pred_check_branch
          %870 = sbr.rel (%p868) target = $region24
        $region23: #{_lambda_.3} parent=11 // pred_region
          _
        $region24: #{_lambda_.3} parent=11 // pred_fallthru
          _
        // Predicated region
        $region25: #{_lambda_.3} parent=11 // pred_check
          %p871 = pneg %p223
        $region26: #{_lambda_.3} parent=11 // pred_check_branch
          %873 = sbr.rel (%p871) target = $region28
        $region27: #{_lambda_.3} parent=11 // pred_region
          _
        $region28: #{_lambda_.3} parent=11 // pred_fallthru
          _
        // Predicated region
        $region29: #{_lambda_.3} parent=11 // pred_check
          %p874 = pneg %p244
        $region30: #{_lambda_.3} parent=11 // pred_check_branch
          %876 = sbr.rel (%p874) target = $region32
        $region31: #{_lambda_.3} parent=11 // pred_region
          %878 = vsyncadd [#allocation3], 0
          %s879 = sshll.u32 %s13, 4
          %s880 = int_to_ptr.hbm [resolvable:$true] %s879
          %s881 = sshll.u32 [#allocation2], 4
          %s882 = int_to_ptr.vmem [resolvable:$true] %s881
          %887 = dma.hbm_to_vmem [thread:$0]  %s880, 512, %s882, [#allocation3], 128, 128, 8
        $region32: #{_lambda_.3} parent=11 // pred_fallthru
          _
        // Predicated region
        $region33: #{_lambda_.3} parent=11 // pred_check
          %p888 = pneg %p265
        $region34: #{_lambda_.3} parent=11 // pred_check_branch
          %890 = sbr.rel (%p888) target = $region36
        $region35: #{_lambda_.3} parent=11 // pred_region
          _
        $region36: #{_lambda_.3} parent=11 // pred_fallthru
          _
        // Predicated region
        $region37: #{_lambda_.3} parent=11 // pred_check
          %p891 = pneg %p286
        $region38: #{_lambda_.3} parent=11 // pred_check_branch
          %893 = sbr.rel (%p891) target = $region40
        $region39: #{_lambda_.3} parent=11 // pred_region
          %895 = vsyncadd [#allocation6], 0
          %s896 = sshll.u32 %s17, 4
          %s897 = int_to_ptr.hbm [resolvable:$true] %s896
          %s898 = sshll.u32 [#allocation5], 4
          %s899 = int_to_ptr.vmem [resolvable:$true] %s898
          %904 = dma.hbm_to_vmem [thread:$0]  %s897, 512, %s899, [#allocation6], 128, 128, 8
        $region40: #{_lambda_.3} parent=11 // pred_fallthru
          _
        // Predicated region
        $region41: #{_lambda_.3} parent=11 // pred_check
          %p905 = pneg %p307
        $region42: #{_lambda_.3} parent=11 // pred_check_branch
          %907 = sbr.rel (%p905) target = $region44
        $region43: #{_lambda_.3} parent=11 // pred_region
          _
        $region44: #{_lambda_.3} parent=11 // pred_fallthru
          _
        // Predicated region
        $region45: #{_lambda_.3} parent=11 // pred_check
          %p908 = pneg %p328
        $region46: #{_lambda_.3} parent=11 // pred_check_branch
          %910 = sbr.rel (%p908) target = $region48
        $region47: #{_lambda_.3} parent=11 // pred_region
          %912 = vsyncadd [#allocation6], 0
          %s913 = sshll.u32 %s21, 4
          %s914 = int_to_ptr.hbm [resolvable:$true] %s913
          %s915 = sshll.u32 [#allocation7], 4
          %s916 = int_to_ptr.vmem [resolvable:$true] %s915
          %921 = dma.hbm_to_vmem [thread:$0]  %s914, 512, %s916, [#allocation6], 128, 128, 8
        $region48: #{_lambda_.3} parent=11 // pred_fallthru
          _
        // Predicated region
        $region49: #{_lambda_.3} parent=11 // pred_check
          %p922 = pneg %p349
        $region50: #{_lambda_.3} parent=11 // pred_check_branch
          %924 = sbr.rel (%p922) target = $region52
        $region51: #{_lambda_.3} parent=11 // pred_region
          _
        $region52: #{_lambda_.3} parent=11 // pred_fallthru
          _
        // Predicated region
        $region53: #{_lambda_.3} parent=11 // pred_check
          %p925 = pneg %p370
        $region54: #{_lambda_.3} parent=11 // pred_check_branch
          %927 = sbr.rel (%p925) target = $region56
        $region55: #{_lambda_.3} parent=11 // pred_region
          _
        $region56: #{_lambda_.3} parent=11 // pred_fallthru
          _
        // Predicated region
        $region57: #{_lambda_.3} parent=11 // pred_check
          %p928 = pneg %p391
        $region58: #{_lambda_.3} parent=11 // pred_check_branch
          %930 = sbr.rel (%p928) target = $region60
        $region59: #{_lambda_.3} parent=11 // pred_region
          _
        $region60: #{_lambda_.3} parent=11 // pred_fallthru
          _
        // Predicated region
        $region61: #{_lambda_.3} parent=11 // pred_check
          %p931 = pneg %p412
        $region62: #{_lambda_.3} parent=11 // pred_check_branch
          %933 = sbr.rel (%p931) target = $region64
        $region63: #{_lambda_.3} parent=11 // pred_region
          %935 = vsyncadd [#allocation9], 0
          %s936 = sshll.u32 %s29, 4
          %s937 = int_to_ptr.hbm [resolvable:$true] %s936
          %s938 = sshll.u32 [#allocation8], 4
          %s939 = int_to_ptr.vmem [resolvable:$true] %s938
          %944 = dma.hbm_to_vmem [thread:$0]  %s937, 512, %s939, [#allocation9], 128, 128, 8
        $region64: #{_lambda_.3} parent=11 // pred_fallthru
          _
        // Predicated region
        $region65: #{_lambda_.3} parent=11 // pred_check
          %p945 = pneg %p433
        $region66: #{_lambda_.3} parent=11 // pred_check_branch
          %947 = sbr.rel (%p945) target = $region68
        $region67: #{_lambda_.3} parent=11 // pred_region
          _
        $region68: #{_lambda_.3} parent=11 // pred_fallthru
          _
        // Predicated region
        $region69: #{_lambda_.3} parent=11 // pred_check
          %p948 = pneg %p454
        $region70: #{_lambda_.3} parent=11 // pred_check_branch
          %950 = sbr.rel (%p948) target = $region72
        $region71: #{_lambda_.3} parent=11 // pred_region
          %952 = vsyncadd [#allocation9], 0
          %s953 = sshll.u32 %s33, 4
          %s954 = int_to_ptr.hbm [resolvable:$true] %s953
          %s955 = sshll.u32 [#allocation10], 4
          %s956 = int_to_ptr.vmem [resolvable:$true] %s955
          %961 = dma.hbm_to_vmem [thread:$0]  %s954, 1024, %s956, [#allocation9], 128, 128, 8
        $region72: #{_lambda_.3} parent=11 // pred_fallthru
          _
        // Predicated region
        $region73: #{_lambda_.3} parent=11 // pred_check
          %p962 = pneg %p475
        $region74: #{_lambda_.3} parent=11 // pred_check_branch
          %964 = sbr.rel (%p962) target = $region76
        $region75: #{_lambda_.3} parent=11 // pred_region
          _
        $region76: #{_lambda_.3} parent=11 // pred_fallthru
          _
        // Predicated region
        $region77: #{_lambda_.3} parent=11 // pred_check
          %p965 = pneg %p496
        $region78: #{_lambda_.3} parent=11 // pred_check_branch
          %967 = sbr.rel (%p965) target = $region80
        $region79: #{_lambda_.3} parent=11 // pred_region
          _
        $region80: #{_lambda_.3} parent=11 // pred_fallthru
          _
        // Predicated region
        $region81: #{_lambda_.3} parent=11 // pred_check
          %p968 = pneg %p517
        $region82: #{_lambda_.3} parent=11 // pred_check_branch
          %970 = sbr.rel (%p968) target = $region84
        $region83: #{_lambda_.3} parent=11 // pred_region
          _
        $region84: #{_lambda_.3} parent=11 // pred_fallthru
          _
        // Predicated region
        $region85: #{_lambda_.3} parent=11 // pred_check
          %p971 = pneg %p538
        $region86: #{_lambda_.3} parent=11 // pred_check_branch
          %973 = sbr.rel (%p971) target = $region88
        $region87: #{_lambda_.3} parent=11 // pred_region
          %975 = vsyncadd [#allocation12], 0
          %s976 = sshll.u32 %s41, 4
          %s977 = int_to_ptr.hbm [resolvable:$true] %s976
          %s978 = sshll.u32 [#allocation11], 4
          %s979 = int_to_ptr.vmem [resolvable:$true] %s978
          %984 = dma.hbm_to_vmem [thread:$0]  %s977, 512, %s979, [#allocation12], 128, 128, 8
        $region88: #{_lambda_.3} parent=11 // pred_fallthru
          _
        // Predicated region
        $region89: #{_lambda_.3} parent=11 // pred_check
          %p985 = pneg %p559
        $region90: #{_lambda_.3} parent=11 // pred_check_branch
          %987 = sbr.rel (%p985) target = $region92
        $region91: #{_lambda_.3} parent=11 // pred_region
          _
        $region92: #{_lambda_.3} parent=11 // pred_fallthru
          _
        // Predicated region
        $region93: #{_lambda_.3} parent=11 // pred_check
          %p988 = pneg %p580
        $region94: #{_lambda_.3} parent=11 // pred_check_branch
          %990 = sbr.rel (%p988) target = $region96
        $region95: #{_lambda_.3} parent=11 // pred_region
          %992 = vsyncadd [#allocation12], 0
          %s993 = sshll.u32 %s45, 4
          %s994 = int_to_ptr.hbm [resolvable:$true] %s993
          %s995 = sshll.u32 [#allocation13], 4
          %s996 = int_to_ptr.vmem [resolvable:$true] %s995
          %1001 = dma.hbm_to_vmem [thread:$0]  %s994, 512, %s996, [#allocation12], 128, 128, 8
        $region96: #{_lambda_.3} parent=11 // pred_fallthru
          _
        // Predicated region
        $region97: #{_lambda_.3} parent=11 // pred_check
          %p1002 = pneg %p601
        $region98: #{_lambda_.3} parent=11 // pred_check_branch
          %1004 = sbr.rel (%p1002) target = $region100
        $region99: #{_lambda_.3} parent=11 // pred_region
          _
        $region100: #{_lambda_.3} parent=11 // pred_fallthru
          _
        // Predicated region
        $region101: #{_lambda_.3} parent=11 // pred_check
          %p1005 = pneg %p622
        $region102: #{_lambda_.3} parent=11 // pred_check_branch
          %1007 = sbr.rel (%p1005) target = $region104
        $region103: #{_lambda_.3} parent=11 // pred_region
          _
        $region104: #{_lambda_.3} parent=11 // pred_fallthru
          _
        // Predicated region
        $region105: #{_lambda_.3} parent=11 // pred_check
          %p1008 = pneg %p643
        $region106: #{_lambda_.3} parent=11 // pred_check_branch
          %1010 = sbr.rel (%p1008) target = $region108
        $region107: #{_lambda_.3} parent=11 // pred_region
          _
        $region108: #{_lambda_.3} parent=11 // pred_fallthru
          _
        // Predicated region
        $region109: #{_lambda_.3} parent=11 // pred_check
          %p1011 = pneg %p664
        $region110: #{_lambda_.3} parent=11 // pred_check_branch
          %1013 = sbr.rel (%p1011) target = $region112
        $region111: #{_lambda_.3} parent=11 // pred_region
          _
        $region112: #{_lambda_.3} parent=11 // pred_fallthru
          _
        // Predicated region
        $region113: #{_lambda_.3} parent=11 // pred_check
          %p1014 = pneg %p685
        $region114: #{_lambda_.3} parent=11 // pred_check_branch
          %1016 = sbr.rel (%p1014) target = $region116
        $region115: #{_lambda_.3} parent=11 // pred_region
          _
        $region116: #{_lambda_.3} parent=11 // pred_fallthru
          _
        // Predicated region
        $region117: #{_lambda_.3} parent=11 // pred_check
          %p1017 = pneg %p706
        $region118: #{_lambda_.3} parent=11 // pred_check_branch
          %1019 = sbr.rel (%p1017) target = $region120
        $region119: #{_lambda_.3} parent=11 // pred_region
          %1021 = vsyncadd [#allocation15], 0
          %s1022 = sshll.u32 %s57, 4
          %s1023 = int_to_ptr.hbm [resolvable:$true] %s1022
          %s1024 = sshll.u32 [#allocation14], 4
          %s1025 = int_to_ptr.vmem [resolvable:$true] %s1024
          %1030 = dma.hbm_to_vmem [thread:$0]  %s1023, 1024, %s1025, [#allocation15], 128, 128, 8
        $region120: #{_lambda_.3} parent=11 // pred_fallthru
          _
        // Predicated region
        $region121: #{_lambda_.3} parent=11 // pred_check
          %p1031 = pneg %p727
        $region122: #{_lambda_.3} parent=11 // pred_check_branch
          %1033 = sbr.rel (%p1031) target = $region124
        $region123: #{_lambda_.3} parent=11 // pred_region
          _
        $region124: #{_lambda_.3} parent=11 // pred_fallthru
          _
        // Predicated region
        $region125: #{_lambda_.3} parent=11 // pred_check
          %p1034 = pneg %p748
        $region126: #{_lambda_.3} parent=11 // pred_check_branch
          %1036 = sbr.rel (%p1034) target = $region128
        $region127: #{_lambda_.3} parent=11 // pred_region
          _
        $region128: #{_lambda_.3} parent=11 // pred_fallthru
          _
        // Predicated region
        $region129: #{_lambda_.3} parent=11 // pred_check
          %p1037 = pneg %p769
        $region130: #{_lambda_.3} parent=11 // pred_check_branch
          %1039 = sbr.rel (%p1037) target = $region132
        $region131: #{_lambda_.3} parent=11 // pred_region
          _
        $region132: #{_lambda_.3} parent=11 // pred_fallthru
          _
      $region12: #{_lambda_.3} parent=5 // pred_fallthru
        _
      %p1040 = scmp.lt.s32.totalorder %s87, 2
      // Predicated region
      $region133: #{_lambda_.3} parent=5 // pred_check
        %p1041 = pneg %p1040
      $region134: #{_lambda_.3} parent=5 // pred_check_branch
        %1043 = sbr.rel (%p1041) target = $region136
      $region135: #{_lambda_.3} parent=5 // pred_region
        // Predicated region
        $region137: #{_lambda_.3} parent=135 // pred_check
          %p1044 = pneg %p107
        $region138: #{_lambda_.3} parent=135 // pred_check_branch
          %1046 = sbr.rel (%p1044) target = $region140
        $region139: #{_lambda_.3} parent=135 // pred_region
          %p1047 = scmp.lt.s32.totalorder %s87, 1
          %s1048 = scalar_select %p1047, %s87, 1
          %s1049 = smul.addr %s1048, 2
          %s1050 = smul.addr %s1049, 8
          %s1051 = scalar_lea.vmem %s1, %s1050
        $region140: #{_lambda_.3} parent=135 // pred_fallthru
          _
        // Predicated region
        $region141: #{_lambda_.3} parent=135 // pred_check
          %p1052 = pneg %p133
        $region142: #{_lambda_.3} parent=135 // pred_check_branch
          %1054 = sbr.rel (%p1052) target = $region144
        $region143: #{_lambda_.3} parent=135 // pred_region
          %p1055 = scmp.lt.s32.totalorder %s87, 1
          %s1056 = scalar_select %p1055, %s87, 1
          %s1057 = scalar_lea.vmem %s3, %s1056
        $region144: #{_lambda_.3} parent=135 // pred_fallthru
          _
      $region136: #{_lambda_.3} parent=5 // pred_fallthru
        _
      %p1058 = scmp.le.s32.totalorder 1, %s87
      %p1059 = scmp.lt.s32.totalorder %s87, 3
      %p1060 = pnand %p1058, %p1059
      %p1061 = pneg %p1060
      // Predicated region
      $region145: #{_lambda_.3} parent=5 // pred_check
        _
      $region146: #{_lambda_.3} parent=5 // pred_check_branch
        %1063 = sbr.rel (%p1060) target = $region148
      $region147: #{_lambda_.3} parent=5 // pred_region
        %s1064 = ssub.s32 %s87, 1
        // Predicated region
        $region149: #{_lambda_.3} parent=147 // pred_check
          %p1065 = pneg %p244
        $region150: #{_lambda_.3} parent=147 // pred_check_branch
          %1067 = sbr.rel (%p1065) target = $region152
        $region151: #{_lambda_.3} parent=147 // pred_region
          %1069 = dma.done [#allocation3], 512
        $region152: #{_lambda_.3} parent=147 // pred_fallthru
          _
        // Predicated region
        $region153: #{_lambda_.3} parent=147 // pred_check
          %p1070 = pneg %p286
        $region154: #{_lambda_.3} parent=147 // pred_check_branch
          %1072 = sbr.rel (%p1070) target = $region156
        $region155: #{_lambda_.3} parent=147 // pred_region
          %1074 = dma.done [#allocation6], 512
        $region156: #{_lambda_.3} parent=147 // pred_fallthru
          _
        // Predicated region
        $region157: #{_lambda_.3} parent=147 // pred_check
          %p1075 = pneg %p328
        $region158: #{_lambda_.3} parent=147 // pred_check_branch
          %1077 = sbr.rel (%p1075) target = $region160
        $region159: #{_lambda_.3} parent=147 // pred_region
          %1079 = dma.done [#allocation6], 512
        $region160: #{_lambda_.3} parent=147 // pred_fallthru
          _
        // Predicated region
        $region161: #{_lambda_.3} parent=147 // pred_check
          %p1080 = pneg %p412
        $region162: #{_lambda_.3} parent=147 // pred_check_branch
          %1082 = sbr.rel (%p1080) target = $region164
        $region163: #{_lambda_.3} parent=147 // pred_region
          %1084 = dma.done [#allocation9], 512
        $region164: #{_lambda_.3} parent=147 // pred_fallthru
          _
        // Predicated region
        $region165: #{_lambda_.3} parent=147 // pred_check
          %p1085 = pneg %p454
        $region166: #{_lambda_.3} parent=147 // pred_check_branch
          %1087 = sbr.rel (%p1085) target = $region168
        $region167: #{_lambda_.3} parent=147 // pred_region
          %1089 = dma.done [#allocation9], 1024
        $region168: #{_lambda_.3} parent=147 // pred_fallthru
          _
        // Predicated region
        $region169: #{_lambda_.3} parent=147 // pred_check
          %p1090 = pneg %p538
        $region170: #{_lambda_.3} parent=147 // pred_check_branch
          %1092 = sbr.rel (%p1090) target = $region172
        $region171: #{_lambda_.3} parent=147 // pred_region
          %1094 = dma.done [#allocation12], 512
        $region172: #{_lambda_.3} parent=147 // pred_fallthru
          _
        // Predicated region
        $region173: #{_lambda_.3} parent=147 // pred_check
          %p1095 = pneg %p580
        $region174: #{_lambda_.3} parent=147 // pred_check_branch
          %1097 = sbr.rel (%p1095) target = $region176
        $region175: #{_lambda_.3} parent=147 // pred_region
          %1099 = dma.done [#allocation12], 512
        $region176: #{_lambda_.3} parent=147 // pred_fallthru
          _
        // Predicated region
        $region177: #{_lambda_.3} parent=147 // pred_check
          %p1100 = pneg %p706
        $region178: #{_lambda_.3} parent=147 // pred_check_branch
          %1102 = sbr.rel (%p1100) target = $region180
        $region179: #{_lambda_.3} parent=147 // pred_region
          %1104 = dma.done [#allocation15], 1024
        $region180: #{_lambda_.3} parent=147 // pred_fallthru
          _
        %p1105 = scmp.lt.s32.totalorder %s92, 1
        %s1106 = scalar_select %p1105, %s92, 1
        %s1107 = smul.addr %s1106, 2
        %s1108 = smul.addr %s1107, 8
        %s1109 = scalar_lea.vmem %s1, %s1108
        %p1110 = pneg %p113
        %p1111 = pneg %p110
        %p1112 = scmp.lt.s32.totalorder %s92, 1
        %s1113 = scalar_select %p1112, %s92, 1
        %s1114 = scalar_lea.vmem %s3, %s1113
        %p1115 = pneg %p139
        %p1116 = pneg %p136
        %p1117 = pneg %p160
        %p1118 = pneg %p157
        %p1119 = pneg %p181
        %p1120 = pneg %p178
        %p1121 = pneg %p202
        %p1122 = pneg %p199
        %p1123 = pneg %p223
        %p1124 = pneg %p220
        %p1125 = pneg %p244
        %p1126 = pneg %p241
        %p1127 = pneg %p265
        %p1128 = pneg %p262
        %p1129 = pneg %p286
        %p1130 = pneg %p283
        %p1131 = pneg %p307
        %p1132 = pneg %p304
        %p1133 = pneg %p328
        %p1134 = pneg %p325
        %p1135 = pneg %p349
        %p1136 = pneg %p346
        %p1137 = pneg %p370
        %p1138 = pneg %p367
        %p1139 = pneg %p391
        %p1140 = pneg %p388
        %p1141 = pneg %p412
        %p1142 = pneg %p409
        %p1143 = pneg %p433
        %p1144 = pneg %p430
        %p1145 = pneg %p454
        %p1146 = pneg %p451
        %p1147 = pneg %p475
        %p1148 = pneg %p472
        %p1149 = pneg %p496
        %p1150 = pneg %p493
        %p1151 = pneg %p517
        %p1152 = pneg %p514
        %p1153 = pneg %p538
        %p1154 = pneg %p535
        %p1155 = pneg %p559
        %p1156 = pneg %p556
        %p1157 = pneg %p580
        %p1158 = pneg %p577
        %p1159 = pneg %p601
        %p1160 = pneg %p598
        %p1161 = pneg %p622
        %p1162 = pneg %p619
        %p1163 = pneg %p643
        %p1164 = pneg %p640
        %p1165 = pneg %p664
        %p1166 = pneg %p661
        %p1167 = pneg %p685
        %p1168 = pneg %p682
        %p1169 = pneg %p706
        %p1170 = pneg %p703
        %p1171 = pneg %p727
        %p1172 = pneg %p724
        %p1173 = pneg %p748
        %p1174 = pneg %p745
        %p1175 = pneg %p769
        %p1176 = pneg %p766
        %p1177 = pneg %p795
        %p1178 = pneg %p792
        %s1179 = sand.u32 %s782, 1
        %s1180 = scalar_lea.sflag [#allocation4], %s1179
        %s1181 = sand.u32 %s782, 1
        %s1182 = smul.addr %s1181, 16
        %s1183 = scalar_lea.vmem [#allocation16], %s1182
        %p1184 = pneg %p821
        %p1185 = pneg %p818
        %s1186 = sand.u32 %s92, 1
        %s1187 = scalar_lea.sflag [#allocation18], %s1186
        %s1188 = sand.u32 %s808, 1
        %s1189 = smul.addr %s1188, 16
        %s1190 = scalar_lea.vmem [#allocation17], %s1189
        %p1191 = pneg %p847
        %p1192 = pneg %p844
        %s1193 = sand.u32 %s92, 1
        %s1194 = scalar_lea.sflag [#allocation18], %s1193
        %s1195 = sand.u32 %s834, 1
        %s1196 = smul.addr %s1195, 16
        %s1197 = scalar_lea.vmem [#allocation19], %s1196
        %p1198 = scmp.lt.s32.totalorder %s92, 1
        %s1199 = scalar_select %p1198, %s92, 1
        %s1200 = smul.addr %s1199, 2
        %s1201 = smul.addr %s1200, 8
        %s1202 = scalar_lea.vmem %s1, %s1201
        %p1203 = scmp.lt.s32.totalorder %s92, 1
        %s1204 = scalar_select %p1203, %s92, 1
        %s1205 = scalar_lea.vmem %s3, %s1204
        %v1206 = vld [vmem:[%s5] sm:$0xff]
        %v1207 = vld [vmem:[%s5 + $0x8] sm:$0x3]
        %v1208 = vld [vmem:[%s7] sm:$0x1]
        %v1209 = vld [vmem:[%s9] sm:$0x1]
        %v1210 = vld [vmem:[%s11] sm:$0x1]
        %v1211 = vld [vmem:[#allocation2] sm:$0xff]
        %v1212 = vld [vmem:[#allocation2 + $0x8] sm:$0xff]
        %v1213 = vld [vmem:[#allocation2 + $0x10] sm:$0xff]
        %v1214 = vld [vmem:[#allocation2 + $0x18] sm:$0xff]
        %v1215 = vld [vmem:[%s15] sm:$0x1]
        %v1216 = vld [vmem:[%s1205] sm:$0x1]
        %v1217 = vld [vmem:[%s1202] sm:$0xff]
        %v1218 = vld [vmem:[%s1202 + $0x8] sm:$0xff]
        %v1220 = vperm.slane %v1216, 0
        %1221 = vset.pattern.permute.xlu0 0
        %1222 = vperm.xlu0 %1221, %v1220
        %v1223 = vpop.permute.xlu0 %1222
        %v1225 = vsub.f32 %v1217, %v1223
        %v1226 = vsub.f32 %v1218, %v1223
        %1227 = vset.pattern.permute.xlu0 1
        %1228 = vperm.xlu0 %1227, %v1220
        %v1229 = vpop.permute.xlu0 %1228
        %v1231 = vmul.f32 %v1225, %v1229
        %v1232 = vmul.f32 %v1226, %v1229
        %v1234 = vperm.slane %v1208, 0
        %vm1236 = vcmask 80896
        %v1238 = vsel %vm1236, %v1231, 0
        %v1241 = vsel %vm1236, %v1232, 0
        %vm1243 = vcmask 1041408
        %v1245 = vsel %vm1243, %v1207, 0
        %1247 = vmatpush.msra.mxu0 0.0
        %1248 = vmatpush.msra.mxu0 0.0
        %1249 = vmatpush.msra.mxu0 0.0
        %1250 = vmatpush.msra.mxu0 0.0
        %1251 = vmatpush.msra.mxu0 0.0
        %1252 = vmatpush.msra.mxu0 0.0
        %1253 = vmatpush.msra.mxu0 0.0
        %1254 = vmatpush.msra.mxu0 0.0
        %1255 = vmatpush.msra.mxu0 0.0
        %1256 = vmatpush.msra.mxu0 0.0
        %1257 = vmatpush.msra.mxu0 0.0
        %1258 = vmatpush.msra.mxu0 0.0
        %1259 = vmatpush.msra.mxu0 0.0
        %1260 = vmatpush.msra.mxu0 0.0
        %1261 = vmatpush.msra.mxu0 %v1245
        %1262 = vmatpush.msra.mxu0 %v1206
        %1263 = vmatmul.f32.gmra.mxu0 %v1238
        %v1264 = vpop.f32.mrf.mxu0
        %v1265 = vadd.f32 %v1234, %v1264
        %1266 = vmatmul.f32.gmra.mxu0 %v1241
        %v1267 = vpop.f32.mrf.mxu0
        %v1268 = vadd.f32 %v1234, %v1267
        %1269 = vdwg.mxu0
        %v1270 = vmul.f32 %v1265, %v1265
        %v1271 = vmul.f32 %v1268, %v1268
        %v1272 = vmul.f32 %v1265, %v1270
        %v1273 = vmul.f32 %v1268, %v1271
        %v1274 = vmul.f32 %v1272, 0.044715
        %v1275 = vmul.f32 %v1273, 0.044715
        %v1276 = vadd.f32 %v1265, %v1274
        %v1277 = vadd.f32 %v1268, %v1275
        %v1278 = vmul.f32 %v1276, 0.7978846
        %v1279 = vmul.f32 %v1277, 0.7978846
        %v1280 = vtanh.pop %v1278
        %v1281 = vtanh.pop %v1279
        %v1282 = vadd.f32 %v1280, 1.0
        %v1283 = vadd.f32 %v1281, 1.0
        %v1284 = vmul.f32 %v1282, 0.5
        %v1285 = vmul.f32 %v1283, 0.5
        %v1286 = vmul.f32 %v1265, %v1284
        %v1287 = vmul.f32 %v1268, %v1285
        %vm1288 = vcmask 261120
        %v1289 = vsel %vm1288, %v1286, 0.0
        %1290 = vadd.xlane.f32.xlu0 %v1289
        %v1291 = vpop.xlane.xlu0 %1290
        %v1292 = vsel %vm1288, %v1287, 0.0
        %1293 = vadd.xlane.f32.xlu0 %v1292
        %v1294 = vpop.xlane.xlu0 %1293
        %v1295 = vrcp.pop 32.0
        %v1296 = vmul.f32 32.0, %v1295
        %v1297 = vsub.f32 1.0, %v1296
        %v1298 = vmul.f32 %v1295, %v1297
        %v1299 = vadd.f32 %v1295, %v1298
        %vm1300 = vweird.f32 %v1295
        %v1301 = vsel %vm1300, %v1295, %v1299
        %v1302 = vmul.f32 %v1291, %v1301
        %v1303 = vmul.f32 %v1294, %v1301
        %v1304 = vsub.f32 %v1286, %v1302
        %v1305 = vsub.f32 %v1287, %v1303
        %v1306 = vmul.f32 %v1304, %v1304
        %v1307 = vmul.f32 %v1305, %v1305
        %v1308 = vsel %vm1288, %v1306, 0.0
        %1309 = vadd.xlane.f32.xlu0 %v1308
        %v1310 = vpop.xlane.xlu0 %1309
        %v1311 = vsel %vm1288, %v1307, 0.0
        %1312 = vadd.xlane.f32.xlu0 %v1311
        %v1313 = vpop.xlane.xlu0 %1312
        %v1314 = vmul.f32 %v1310, %v1301
        %v1315 = vmul.f32 %v1313, %v1301
        %v1316 = vadd.f32 %v1314, 1e-05
        %v1317 = vadd.f32 %v1315, 1e-05
        %v1318 = vrsqrt.pop %v1316
        %v1319 = vmul.f32 %v1318, %v1316
        %v1320 = vmul.f32 %v1319, %v1318
        %v1321 = vmul.f32 0.5, %v1320
        %v1322 = vsub.f32 1.5, %v1321
        %v1323 = vmul.f32 %v1318, %v1322
        %vm1324 = vweird.f32 %v1316
        %vm1325 = vweird.f32 %v1318
        %vm1326 = vmor %vm1324, %vm1325
        %v1327 = vsel %vm1326, %v1318, %v1323
        %v1328 = vrsqrt.pop %v1317
        %v1329 = vmul.f32 %v1328, %v1317
        %v1330 = vmul.f32 %v1329, %v1328
        %v1331 = vmul.f32 0.5, %v1330
        %v1332 = vsub.f32 1.5, %v1331
        %v1333 = vmul.f32 %v1328, %v1332
        %vm1334 = vweird.f32 %v1317
        %vm1335 = vweird.f32 %v1328
        %vm1336 = vmor %vm1334, %vm1335
        %v1337 = vsel %vm1336, %v1328, %v1333
        %v1338 = vmul.f32 %v1304, %v1327
        %v1339 = vmul.f32 %v1305, %v1337
        %v1341 = vperm.slane %v1209, 0
        %v1343 = vmul.f32 %v1338, %v1341
        %v1344 = vmul.f32 %v1339, %v1341
        %v1346 = vperm.slane %v1210, 0
        %v1348 = vadd.f32 %v1343, %v1346
        %v1349 = vadd.f32 %v1344, %v1346
        %v1351 = vperm.slane %v1215, 0
        %v1354 = vsel %vm1288, %v1348, 0
        %v1357 = vsel %vm1288, %v1349, 0
        %1359 = vmatpush.msra.mxu0 0.0
        %1360 = vmatpush.msra.mxu0 0.0
        %1361 = vmatpush.msra.mxu0 0.0
        %1362 = vmatpush.msra.mxu0 0.0
        %1363 = vmatpush.msra.mxu0 0.0
        %1364 = vmatpush.msra.mxu0 0.0
        %1365 = vmatpush.msra.mxu0 0.0
        %1366 = vmatpush.msra.mxu0 0.0
        %1367 = vmatpush.msra.mxu0 0.0
        %1368 = vmatpush.msra.mxu0 0.0
        %1369 = vmatpush.msra.mxu0 0.0
        %1370 = vmatpush.msra.mxu0 0.0
        %1371 = vmatpush.msra.mxu0 %v1214
        %1372 = vmatpush.msra.mxu0 %v1213
        %1373 = vmatpush.msra.mxu0 %v1212
        %1374 = vmatpush.msra.mxu0 %v1211
        %1375 = vmatmul.f32.gmra.mxu0 %v1354
        %v1376 = vpop.f32.mrf.mxu0
        %v1377 = vadd.f32 %v1351, %v1376
        %1378 = vmatmul.f32.gmra.mxu0 %v1357
        %v1379 = vpop.f32.mrf.mxu0
        %v1380 = vadd.f32 %v1351, %v1379
        %1381 = vdwg.mxu0
        %1382 = vst.msk [vmem:[%s1183] sm:$0xff] %vm1288, %v1377
        %1383 = vst.msk [vmem:[%s1183 + $0x8] sm:$0xff] %vm1288, %v1380
        %v1384 = vld [vmem:[#allocation5] sm:$0xff]
        %v1385 = vld [vmem:[#allocation5 + $0x8] sm:$0xff]
        %v1386 = vld [vmem:[#allocation5 + $0x10] sm:$0xff]
        %v1387 = vld [vmem:[#allocation5 + $0x18] sm:$0xff]
        %v1388 = vld [vmem:[%s19] sm:$0x1]
        %v1389 = vld [vmem:[#allocation7] sm:$0xff]
        %v1390 = vld [vmem:[#allocation7 + $0x8] sm:$0xff]
        %v1391 = vld [vmem:[#allocation7 + $0x10] sm:$0xff]
        %v1392 = vld [vmem:[#allocation7 + $0x18] sm:$0xff]
        %v1393 = vld [vmem:[%s23] sm:$0x1]
        %v1394 = vld [vmem:[%s25] sm:$0x1]
        %v1395 = vld [vmem:[%s27] sm:$0x1]
        %v1396 = vld [vmem:[#allocation8] sm:$0xff]
        %v1397 = vld [vmem:[#allocation8 + $0x8] sm:$0xff]
        %v1398 = vld [vmem:[#allocation8 + $0x10] sm:$0xff]
        %v1399 = vld [vmem:[#allocation8 + $0x18] sm:$0xff]
        %v1400 = vld [vmem:[%s31] sm:$0x1]
        %v1401 = vld [vmem:[#allocation10] sm:$0xff]
        %v1402 = vld [vmem:[#allocation10 + $0x8] sm:$0xff]
        %v1403 = vld [vmem:[#allocation10 + $0x10] sm:$0xff]
        %v1404 = vld [vmem:[#allocation10 + $0x18] sm:$0xff]
        %v1405 = vld [vmem:[#allocation10 + $0x20] sm:$0xff]
        %v1406 = vld [vmem:[#allocation10 + $0x28] sm:$0xff]
        %v1407 = vld [vmem:[#allocation10 + $0x30] sm:$0xff]
        %v1408 = vld [vmem:[#allocation10 + $0x38] sm:$0xff]
        %v1409 = vld [vmem:[%s35] sm:$0x1]
        %v1410 = vld [vmem:[%s37] sm:$0x1]
        %v1411 = vld [vmem:[%s39] sm:$0x1]
        %v1413 = vperm.slane %v1388, 0
        %v1416 = vsel %vm1288, %v1377, 0
        %v1419 = vsel %vm1288, %v1380, 0
        %1421 = vmatpush.msra.mxu0 0.0
        %1422 = vmatpush.msra.mxu0 0.0
        %1423 = vmatpush.msra.mxu0 0.0
        %1424 = vmatpush.msra.mxu0 0.0
        %1425 = vmatpush.msra.mxu0 0.0
        %1426 = vmatpush.msra.mxu0 0.0
        %1427 = vmatpush.msra.mxu0 0.0
        %1428 = vmatpush.msra.mxu0 0.0
        %1429 = vmatpush.msra.mxu0 0.0
        %1430 = vmatpush.msra.mxu0 0.0
        %1431 = vmatpush.msra.mxu0 0.0
        %1432 = vmatpush.msra.mxu0 0.0
        %1433 = vmatpush.msra.mxu0 %v1387
        %1434 = vmatpush.msra.mxu0 %v1386
        %1435 = vmatpush.msra.mxu0 %v1385
        %1436 = vmatpush.msra.mxu0 %v1384
        %1437 = vmatmul.f32.gmra.mxu0 %v1416
        %v1438 = vpop.f32.mrf.mxu0
        %v1439 = vadd.f32 %v1413, %v1438
        %1440 = vmatmul.f32.gmra.mxu0 %v1419
        %v1441 = vpop.f32.mrf.mxu0
        %v1442 = vadd.f32 %v1413, %v1441
        %1443 = vdwg.mxu0
        %1446 = vrot.lane.b32.xlu0 %v1439, 120
        %v1447 = vpop.permute.xlu0 %1446
        %1448 = vrot.lane.b32.xlu0 %v1442, 120
        %v1449 = vpop.permute.xlu0 %1448
        %1450 = vrot.lane.b32.xlu0 %v1439, 112
        %v1451 = vpop.permute.xlu0 %1450
        %1452 = vrot.lane.b32.xlu0 %v1442, 112
        %v1453 = vpop.permute.xlu0 %1452
        %1454 = vrot.lane.b32.xlu0 %v1439, 104
        %v1455 = vpop.permute.xlu0 %1454
        %1456 = vrot.lane.b32.xlu0 %v1442, 104
        %v1457 = vpop.permute.xlu0 %1456
        %1458 = vrot.lane.b32.xlu0 %v1439, 96
        %v1459 = vpop.permute.xlu0 %1458
        %1460 = vrot.lane.b32.xlu0 %v1442, 96
        %v1461 = vpop.permute.xlu0 %1460
        %1462 = vrot.lane.b32.xlu0 %v1447, 96
        %v1463 = vpop.permute.xlu0 %1462
        %1464 = vrot.lane.b32.xlu0 %v1449, 96
        %v1465 = vpop.permute.xlu0 %1464
        %1466 = vrot.lane.b32.xlu0 %v1451, 96
        %v1467 = vpop.permute.xlu0 %1466
        %1468 = vrot.lane.b32.xlu0 %v1453, 96
        %v1469 = vpop.permute.xlu0 %1468
        %1470 = vrot.lane.b32.xlu0 %v1455, 96
        %v1471 = vpop.permute.xlu0 %1470
        %1472 = vrot.lane.b32.xlu0 %v1457, 96
        %v1473 = vpop.permute.xlu0 %1472
        %1482 = vxpose.xlu0.b32.start [1/16] %v1459, 128
        %1483 = vxpose.xlu0.b32.cont [2/16] %v1461, 128
        %1484 = vxpose.xlu0.b32.cont [3/16] 0.0, 128
        %1485 = vxpose.xlu0.b32.cont [4/16] 0.0, 128
        %1486 = vxpose.xlu0.b32.cont [5/16] 0.0, 128
        %1487 = vxpose.xlu0.b32.cont [6/16] 0.0, 128
        %1488 = vxpose.xlu0.b32.cont [7/16] 0.0, 128
        %1489 = vxpose.xlu0.b32.cont [8/16] 0.0, 128
        %1490 = vxpose.xlu0.b32.cont [9/16] 0.0, 128
        %1491 = vxpose.xlu0.b32.cont [10/16] 0.0, 128
        %1492 = vxpose.xlu0.b32.cont [11/16] 0.0, 128
        %1493 = vxpose.xlu0.b32.cont [12/16] 0.0, 128
        %1494 = vxpose.xlu0.b32.cont [13/16] 0.0, 128
        %1495 = vxpose.xlu0.b32.cont [14/16] 0.0, 128
        %1496 = vxpose.xlu0.b32.cont [15/16] 0.0, 128
        %1497 = vxpose.xlu0.b32.end [16/16] 0.0, 128
        %v1498 = vpop.trf.xlu0
        %v1499 = vpop.trf.xlu0
        %v1500 = vpop.trf.xlu0
        %v1501 = vpop.trf.xlu0
        %v1502 = vpop.trf.xlu0
        %v1503 = vpop.trf.xlu0
        %v1504 = vpop.trf.xlu0
        %v1505 = vpop.trf.xlu0
        %v1506 = vpop.trf.xlu0
        %v1507 = vpop.trf.xlu0
        %v1508 = vpop.trf.xlu0
        %v1509 = vpop.trf.xlu0
        %v1510 = vpop.trf.xlu0
        %v1511 = vpop.trf.xlu0
        %v1512 = vpop.trf.xlu0
        %v1513 = vpop.trf.xlu0
        %1514 = vxpose.xlu0.b32.start [1/16] %v1463, 128
        %1515 = vxpose.xlu0.b32.cont [2/16] %v1465, 128
        %1516 = vxpose.xlu0.b32.cont [3/16] 0.0, 128
        %1517 = vxpose.xlu0.b32.cont [4/16] 0.0, 128
        %1518 = vxpose.xlu0.b32.cont [5/16] 0.0, 128
        %1519 = vxpose.xlu0.b32.cont [6/16] 0.0, 128
        %1520 = vxpose.xlu0.b32.cont [7/16] 0.0, 128
        %1521 = vxpose.xlu0.b32.cont [8/16] 0.0, 128
        %1522 = vxpose.xlu0.b32.cont [9/16] 0.0, 128
        %1523 = vxpose.xlu0.b32.cont [10/16] 0.0, 128
        %1524 = vxpose.xlu0.b32.cont [11/16] 0.0, 128
        %1525 = vxpose.xlu0.b32.cont [12/16] 0.0, 128
        %1526 = vxpose.xlu0.b32.cont [13/16] 0.0, 128
        %1527 = vxpose.xlu0.b32.cont [14/16] 0.0, 128
        %1528 = vxpose.xlu0.b32.cont [15/16] 0.0, 128
        %1529 = vxpose.xlu0.b32.end [16/16] 0.0, 128
        %v1530 = vpop.trf.xlu0
        %v1531 = vpop.trf.xlu0
        %v1532 = vpop.trf.xlu0
        %v1533 = vpop.trf.xlu0
        %v1534 = vpop.trf.xlu0
        %v1535 = vpop.trf.xlu0
        %v1536 = vpop.trf.xlu0
        %v1537 = vpop.trf.xlu0
        %v1538 = vpop.trf.xlu0
        %v1539 = vpop.trf.xlu0
        %v1540 = vpop.trf.xlu0
        %v1541 = vpop.trf.xlu0
        %v1542 = vpop.trf.xlu0
        %v1543 = vpop.trf.xlu0
        %v1544 = vpop.trf.xlu0
        %v1545 = vpop.trf.xlu0
        %1546 = vxpose.xlu0.b32.start [1/16] %v1467, 128
        %1547 = vxpose.xlu0.b32.cont [2/16] %v1469, 128
        %1548 = vxpose.xlu0.b32.cont [3/16] 0.0, 128
        %1549 = vxpose.xlu0.b32.cont [4/16] 0.0, 128
        %1550 = vxpose.xlu0.b32.cont [5/16] 0.0, 128
        %1551 = vxpose.xlu0.b32.cont [6/16] 0.0, 128
        %1552 = vxpose.xlu0.b32.cont [7/16] 0.0, 128
        %1553 = vxpose.xlu0.b32.cont [8/16] 0.0, 128
        %1554 = vxpose.xlu0.b32.cont [9/16] 0.0, 128
        %1555 = vxpose.xlu0.b32.cont [10/16] 0.0, 128
        %1556 = vxpose.xlu0.b32.cont [11/16] 0.0, 128
        %1557 = vxpose.xlu0.b32.cont [12/16] 0.0, 128
        %1558 = vxpose.xlu0.b32.cont [13/16] 0.0, 128
        %1559 = vxpose.xlu0.b32.cont [14/16] 0.0, 128
        %1560 = vxpose.xlu0.b32.cont [15/16] 0.0, 128
        %1561 = vxpose.xlu0.b32.end [16/16] 0.0, 128
        %v1562 = vpop.trf.xlu0
        %v1563 = vpop.trf.xlu0
        %v1564 = vpop.trf.xlu0
        %v1565 = vpop.trf.xlu0
        %v1566 = vpop.trf.xlu0
        %v1567 = vpop.trf.xlu0
        %v1568 = vpop.trf.xlu0
        %v1569 = vpop.trf.xlu0
        %v1570 = vpop.trf.xlu0
        %v1571 = vpop.trf.xlu0
        %v1572 = vpop.trf.xlu0
        %v1573 = vpop.trf.xlu0
        %v1574 = vpop.trf.xlu0
        %v1575 = vpop.trf.xlu0
        %v1576 = vpop.trf.xlu0
        %v1577 = vpop.trf.xlu0
        %1578 = vxpose.xlu0.b32.start [1/16] %v1471, 128
        %1579 = vxpose.xlu0.b32.cont [2/16] %v1473, 128
        %1580 = vxpose.xlu0.b32.cont [3/16] 0.0, 128
        %1581 = vxpose.xlu0.b32.cont [4/16] 0.0, 128
        %1582 = vxpose.xlu0.b32.cont [5/16] 0.0, 128
        %1583 = vxpose.xlu0.b32.cont [6/16] 0.0, 128
        %1584 = vxpose.xlu0.b32.cont [7/16] 0.0, 128
        %1585 = vxpose.xlu0.b32.cont [8/16] 0.0, 128
        %1586 = vxpose.xlu0.b32.cont [9/16] 0.0, 128
        %1587 = vxpose.xlu0.b32.cont [10/16] 0.0, 128
        %1588 = vxpose.xlu0.b32.cont [11/16] 0.0, 128
        %1589 = vxpose.xlu0.b32.cont [12/16] 0.0, 128
        %1590 = vxpose.xlu0.b32.cont [13/16] 0.0, 128
        %1591 = vxpose.xlu0.b32.cont [14/16] 0.0, 128
        %1592 = vxpose.xlu0.b32.cont [15/16] 0.0, 128
        %1593 = vxpose.xlu0.b32.end [16/16] 0.0, 128
        %v1594 = vpop.trf.xlu0
        %v1595 = vpop.trf.xlu0
        %v1596 = vpop.trf.xlu0
        %v1597 = vpop.trf.xlu0
        %v1598 = vpop.trf.xlu0
        %v1599 = vpop.trf.xlu0
        %v1600 = vpop.trf.xlu0
        %v1601 = vpop.trf.xlu0
        %v1602 = vpop.trf.xlu0
        %v1603 = vpop.trf.xlu0
        %v1604 = vpop.trf.xlu0
        %v1605 = vpop.trf.xlu0
        %v1606 = vpop.trf.xlu0
        %v1607 = vpop.trf.xlu0
        %v1608 = vpop.trf.xlu0
        %v1609 = vpop.trf.xlu0
        %vm1610 = vcmask 64512
        %v1611 = vsel %vm1610, %v1439, 0
        %v1613 = vsel %vm1610, %v1442, 0
        %1615 = vmatpush.msra.mxu0 0.0
        %1616 = vmatpush.msra.mxu0 0.0
        %1617 = vmatpush.msra.mxu0 0.0
        %1618 = vmatpush.msra.mxu0 0.0
        %1619 = vmatpush.msra.mxu0 0.0
        %1620 = vmatpush.msra.mxu0 0.0
        %1621 = vmatpush.msra.mxu0 0.0
        %1622 = vmatpush.msra.mxu0 0.0
        %1623 = vmatpush.msra.mxu0 0.0
        %1624 = vmatpush.msra.mxu0 0.0
        %1625 = vmatpush.msra.mxu0 0.0
        %1626 = vmatpush.msra.mxu0 0.0
        %1627 = vmatpush.msra.mxu0 0.0
        %1628 = vmatpush.msra.mxu0 0.0
        %1629 = vmatpush.msra.mxu0 0.0
        %1630 = vmatpush.msra.mxu0 %v1498
        %1631 = vmatmul.f32.gmra.mxu0 %v1611
        %v1632 = vpop.f32.mrf.mxu0
        %v1633 = vadd.f32 0.0, %v1632
        %1634 = vmatmul.f32.gmra.mxu0 %v1613
        %v1635 = vpop.f32.mrf.mxu0
        %v1636 = vadd.f32 0.0, %v1635
        %1637 = vdwg.mxu0
        %v1638 = vsel %vm1610, %v1447, 0
        %v1640 = vsel %vm1610, %v1449, 0
        %1642 = vmatpush.msra.mxu0 0.0
        %1643 = vmatpush.msra.mxu0 0.0
        %1644 = vmatpush.msra.mxu0 0.0
        %1645 = vmatpush.msra.mxu0 0.0
        %1646 = vmatpush.msra.mxu0 0.0
        %1647 = vmatpush.msra.mxu0 0.0
        %1648 = vmatpush.msra.mxu0 0.0
        %1649 = vmatpush.msra.mxu0 0.0
        %1650 = vmatpush.msra.mxu0 0.0
        %1651 = vmatpush.msra.mxu0 0.0
        %1652 = vmatpush.msra.mxu0 0.0
        %1653 = vmatpush.msra.mxu0 0.0
        %1654 = vmatpush.msra.mxu0 0.0
        %1655 = vmatpush.msra.mxu0 0.0
        %1656 = vmatpush.msra.mxu0 0.0
        %1657 = vmatpush.msra.mxu0 %v1530
        %1658 = vmatmul.f32.gmra.mxu0 %v1638
        %v1659 = vpop.f32.mrf.mxu0
        %v1660 = vadd.f32 0.0, %v1659
        %1661 = vmatmul.f32.gmra.mxu0 %v1640
        %v1662 = vpop.f32.mrf.mxu0
        %v1663 = vadd.f32 0.0, %v1662
        %1664 = vdwg.mxu0
        %v1665 = vsel %vm1610, %v1451, 0
        %v1667 = vsel %vm1610, %v1453, 0
        %1669 = vmatpush.msra.mxu0 0.0
        %1670 = vmatpush.msra.mxu0 0.0
        %1671 = vmatpush.msra.mxu0 0.0
        %1672 = vmatpush.msra.mxu0 0.0
        %1673 = vmatpush.msra.mxu0 0.0
        %1674 = vmatpush.msra.mxu0 0.0
        %1675 = vmatpush.msra.mxu0 0.0
        %1676 = vmatpush.msra.mxu0 0.0
        %1677 = vmatpush.msra.mxu0 0.0
        %1678 = vmatpush.msra.mxu0 0.0
        %1679 = vmatpush.msra.mxu0 0.0
        %1680 = vmatpush.msra.mxu0 0.0
        %1681 = vmatpush.msra.mxu0 0.0
        %1682 = vmatpush.msra.mxu0 0.0
        %1683 = vmatpush.msra.mxu0 0.0
        %1684 = vmatpush.msra.mxu0 %v1562
        %1685 = vmatmul.f32.gmra.mxu0 %v1665
        %v1686 = vpop.f32.mrf.mxu0
        %v1687 = vadd.f32 0.0, %v1686
        %1688 = vmatmul.f32.gmra.mxu0 %v1667
        %v1689 = vpop.f32.mrf.mxu0
        %v1690 = vadd.f32 0.0, %v1689
        %1691 = vdwg.mxu0
        %v1692 = vsel %vm1610, %v1455, 0
        %v1694 = vsel %vm1610, %v1457, 0
        %1696 = vmatpush.msra.mxu0 0.0
        %1697 = vmatpush.msra.mxu0 0.0
        %1698 = vmatpush.msra.mxu0 0.0
        %1699 = vmatpush.msra.mxu0 0.0
        %1700 = vmatpush.msra.mxu0 0.0
        %1701 = vmatpush.msra.mxu0 0.0
        %1702 = vmatpush.msra.mxu0 0.0
        %1703 = vmatpush.msra.mxu0 0.0
        %1704 = vmatpush.msra.mxu0 0.0
        %1705 = vmatpush.msra.mxu0 0.0
        %1706 = vmatpush.msra.mxu0 0.0
        %1707 = vmatpush.msra.mxu0 0.0
        %1708 = vmatpush.msra.mxu0 0.0
        %1709 = vmatpush.msra.mxu0 0.0
        %1710 = vmatpush.msra.mxu0 0.0
        %1711 = vmatpush.msra.mxu0 %v1594
        %1712 = vmatmul.f32.gmra.mxu0 %v1692
        %v1713 = vpop.f32.mrf.mxu0
        %v1714 = vadd.f32 0.0, %v1713
        %1715 = vmatmul.f32.gmra.mxu0 %v1694
        %v1716 = vpop.f32.mrf.mxu0
        %v1717 = vadd.f32 0.0, %v1716
        %1718 = vdwg.mxu0
        %vm1719 = vcmask 130048
        %v1720 = vsel %vm1719, %v1633, -inf
        %1721 = vmax.xlane.f32.xlu0 %v1720
        %v1722 = vpop.xlane.xlu0 %1721
        %v1723 = vsel %vm1719, %v1636, -inf
        %1724 = vmax.xlane.f32.xlu0 %v1723
        %v1725 = vpop.xlane.xlu0 %1724
        %v1726 = vsel %vm1719, %v1660, -inf
        %1727 = vmax.xlane.f32.xlu0 %v1726
        %v1728 = vpop.xlane.xlu0 %1727
        %v1729 = vsel %vm1719, %v1663, -inf
        %1730 = vmax.xlane.f32.xlu0 %v1729
        %v1731 = vpop.xlane.xlu0 %1730
        %v1732 = vsel %vm1719, %v1687, -inf
        %1733 = vmax.xlane.f32.xlu0 %v1732
        %v1734 = vpop.xlane.xlu0 %1733
        %v1735 = vsel %vm1719, %v1690, -inf
        %1736 = vmax.xlane.f32.xlu0 %v1735
        %v1737 = vpop.xlane.xlu0 %1736
        %v1738 = vsel %vm1719, %v1714, -inf
        %1739 = vmax.xlane.f32.xlu0 %v1738
        %v1740 = vpop.xlane.xlu0 %1739
        %v1741 = vsel %vm1719, %v1717, -inf
        %1742 = vmax.xlane.f32.xlu0 %v1741
        %v1743 = vpop.xlane.xlu0 %1742
        %v1744 = vsub.f32 %v1633, %v1722
        %v1745 = vsub.f32 %v1636, %v1725
        %v1746 = vsub.f32 %v1660, %v1728
        %v1747 = vsub.f32 %v1663, %v1731
        %v1748 = vsub.f32 %v1687, %v1734
        %v1749 = vsub.f32 %v1690, %v1737
        %v1750 = vsub.f32 %v1714, %v1740
        %v1751 = vsub.f32 %v1717, %v1743
        %v1752 = vmul.f32 %v1744, 1.442695
        %v1753 = vpow.pop %v1752
        %v1754 = vmul.f32 %v1745, 1.442695
        %v1755 = vpow.pop %v1754
        %v1756 = vmul.f32 %v1746, 1.442695
        %v1757 = vpow.pop %v1756
        %v1758 = vmul.f32 %v1747, 1.442695
        %v1759 = vpow.pop %v1758
        %v1760 = vmul.f32 %v1748, 1.442695
        %v1761 = vpow.pop %v1760
        %v1762 = vmul.f32 %v1749, 1.442695
        %v1763 = vpow.pop %v1762
        %v1764 = vmul.f32 %v1750, 1.442695
        %v1765 = vpow.pop %v1764
        %v1766 = vmul.f32 %v1751, 1.442695
        %v1767 = vpow.pop %v1766
        %v1768 = vsel %vm1719, %v1753, 0.0
        %1769 = vadd.xlane.f32.xlu0 %v1768
        %v1770 = vpop.xlane.xlu0 %1769
        %v1771 = vsel %vm1719, %v1755, 0.0
        %1772 = vadd.xlane.f32.xlu0 %v1771
        %v1773 = vpop.xlane.xlu0 %1772
        %v1774 = vsel %vm1719, %v1757, 0.0
        %1775 = vadd.xlane.f32.xlu0 %v1774
        %v1776 = vpop.xlane.xlu0 %1775
        %v1777 = vsel %vm1719, %v1759, 0.0
        %1778 = vadd.xlane.f32.xlu0 %v1777
        %v1779 = vpop.xlane.xlu0 %1778
        %v1780 = vsel %vm1719, %v1761, 0.0
        %1781 = vadd.xlane.f32.xlu0 %v1780
        %v1782 = vpop.xlane.xlu0 %1781
        %v1783 = vsel %vm1719, %v1763, 0.0
        %1784 = vadd.xlane.f32.xlu0 %v1783
        %v1785 = vpop.xlane.xlu0 %1784
        %v1786 = vsel %vm1719, %v1765, 0.0
        %1787 = vadd.xlane.f32.xlu0 %v1786
        %v1788 = vpop.xlane.xlu0 %1787
        %v1789 = vsel %vm1719, %v1767, 0.0
        %1790 = vadd.xlane.f32.xlu0 %v1789
        %v1791 = vpop.xlane.xlu0 %1790
        %v1792 = vrcp.pop %v1770
        %v1793 = vmul.f32 %v1770, %v1792
        %v1794 = vsub.f32 1.0, %v1793
        %v1795 = vmul.f32 %v1792, %v1794
        %v1796 = vadd.f32 %v1792, %v1795
        %vm1797 = vweird.f32 %v1770
        %vm1798 = vweird.f32 %v1792
        %vm1799 = vmor %vm1797, %vm1798
        %v1800 = vsel %vm1799, %v1792, %v1796
        %v1801 = vand.u32 2147483647, %v1770
        %vm1802 = vcmp.eq.f32.partialorder %v1801, 8.507059e+37
        %v1803 = vand.u32 %v1770, 2147483648
        %v1804 = vor.u32 1.1754944e-38, %v1803
        %v1805 = vsel %vm1802, %v1804, %v1800
        %v1806 = vmul.f32 %v1753, %v1805
        %v1807 = vrcp.pop %v1773
        %v1808 = vmul.f32 %v1773, %v1807
        %v1809 = vsub.f32 1.0, %v1808
        %v1810 = vmul.f32 %v1807, %v1809
        %v1811 = vadd.f32 %v1807, %v1810
        %vm1812 = vweird.f32 %v1773
        %vm1813 = vweird.f32 %v1807
        %vm1814 = vmor %vm1812, %vm1813
        %v1815 = vsel %vm1814, %v1807, %v1811
        %v1816 = vand.u32 2147483647, %v1773
        %vm1817 = vcmp.eq.f32.partialorder %v1816, 8.507059e+37
        %v1818 = vand.u32 %v1773, 2147483648
        %v1819 = vor.u32 1.1754944e-38, %v1818
        %v1820 = vsel %vm1817, %v1819, %v1815
        %v1821 = vmul.f32 %v1755, %v1820
        %v1822 = vrcp.pop %v1776
        %v1823 = vmul.f32 %v1776, %v1822
        %v1824 = vsub.f32 1.0, %v1823
        %v1825 = vmul.f32 %v1822, %v1824
        %v1826 = vadd.f32 %v1822, %v1825
        %vm1827 = vweird.f32 %v1776
        %vm1828 = vweird.f32 %v1822
        %vm1829 = vmor %vm1827, %vm1828
        %v1830 = vsel %vm1829, %v1822, %v1826
        %v1831 = vand.u32 2147483647, %v1776
        %vm1832 = vcmp.eq.f32.partialorder %v1831, 8.507059e+37
        %v1833 = vand.u32 %v1776, 2147483648
        %v1834 = vor.u32 1.1754944e-38, %v1833
        %v1835 = vsel %vm1832, %v1834, %v1830
        %v1836 = vmul.f32 %v1757, %v1835
        %v1837 = vrcp.pop %v1779
        %v1838 = vmul.f32 %v1779, %v1837
        %v1839 = vsub.f32 1.0, %v1838
        %v1840 = vmul.f32 %v1837, %v1839
        %v1841 = vadd.f32 %v1837, %v1840
        %vm1842 = vweird.f32 %v1779
        %vm1843 = vweird.f32 %v1837
        %vm1844 = vmor %vm1842, %vm1843
        %v1845 = vsel %vm1844, %v1837, %v1841
        %v1846 = vand.u32 2147483647, %v1779
        %vm1847 = vcmp.eq.f32.partialorder %v1846, 8.507059e+37
        %v1848 = vand.u32 %v1779, 2147483648
        %v1849 = vor.u32 1.1754944e-38, %v1848
        %v1850 = vsel %vm1847, %v1849, %v1845
        %v1851 = vmul.f32 %v1759, %v1850
        %v1852 = vrcp.pop %v1782
        %v1853 = vmul.f32 %v1782, %v1852
        %v1854 = vsub.f32 1.0, %v1853
        %v1855 = vmul.f32 %v1852, %v1854
        %v1856 = vadd.f32 %v1852, %v1855
        %vm1857 = vweird.f32 %v1782
        %vm1858 = vweird.f32 %v1852
        %vm1859 = vmor %vm1857, %vm1858
        %v1860 = vsel %vm1859, %v1852, %v1856
        %v1861 = vand.u32 2147483647, %v1782
        %vm1862 = vcmp.eq.f32.partialorder %v1861, 8.507059e+37
        %v1863 = vand.u32 %v1782, 2147483648
        %v1864 = vor.u32 1.1754944e-38, %v1863
        %v1865 = vsel %vm1862, %v1864, %v1860
        %v1866 = vmul.f32 %v1761, %v1865
        %v1867 = vrcp.pop %v1785
        %v1868 = vmul.f32 %v1785, %v1867
        %v1869 = vsub.f32 1.0, %v1868
        %v1870 = vmul.f32 %v1867, %v1869
        %v1871 = vadd.f32 %v1867, %v1870
        %vm1872 = vweird.f32 %v1785
        %vm1873 = vweird.f32 %v1867
        %vm1874 = vmor %vm1872, %vm1873
        %v1875 = vsel %vm1874, %v1867, %v1871
        %v1876 = vand.u32 2147483647, %v1785
        %vm1877 = vcmp.eq.f32.partialorder %v1876, 8.507059e+37
        %v1878 = vand.u32 %v1785, 2147483648
        %v1879 = vor.u32 1.1754944e-38, %v1878
        %v1880 = vsel %vm1877, %v1879, %v1875
        %v1881 = vmul.f32 %v1763, %v1880
        %v1882 = vrcp.pop %v1788
        %v1883 = vmul.f32 %v1788, %v1882
        %v1884 = vsub.f32 1.0, %v1883
        %v1885 = vmul.f32 %v1882, %v1884
        %v1886 = vadd.f32 %v1882, %v1885
        %vm1887 = vweird.f32 %v1788
        %vm1888 = vweird.f32 %v1882
        %vm1889 = vmor %vm1887, %vm1888
        %v1890 = vsel %vm1889, %v1882, %v1886
        %v1891 = vand.u32 2147483647, %v1788
        %vm1892 = vcmp.eq.f32.partialorder %v1891, 8.507059e+37
        %v1893 = vand.u32 %v1788, 2147483648
        %v1894 = vor.u32 1.1754944e-38, %v1893
        %v1895 = vsel %vm1892, %v1894, %v1890
        %v1896 = vmul.f32 %v1765, %v1895
        %v1897 = vrcp.pop %v1791
        %v1898 = vmul.f32 %v1791, %v1897
        %v1899 = vsub.f32 1.0, %v1898
        %v1900 = vmul.f32 %v1897, %v1899
        %v1901 = vadd.f32 %v1897, %v1900
        %vm1902 = vweird.f32 %v1791
        %vm1903 = vweird.f32 %v1897
        %vm1904 = vmor %vm1902, %vm1903
        %v1905 = vsel %vm1904, %v1897, %v1901
        %v1906 = vand.u32 2147483647, %v1791
        %vm1907 = vcmp.eq.f32.partialorder %v1906, 8.507059e+37
        %v1908 = vand.u32 %v1791, 2147483648
        %v1909 = vor.u32 1.1754944e-38, %v1908
        %v1910 = vsel %vm1907, %v1909, %v1905
        %v1911 = vmul.f32 %v1767, %v1910
        %1912 = vrot.lane.b32.xlu0 %v1439, 64
        %v1913 = vpop.permute.xlu0 %1912
        %1914 = vrot.lane.b32.xlu0 %v1442, 64
        %v1915 = vpop.permute.xlu0 %1914
        %1916 = vrot.lane.b32.xlu0 %v1447, 64
        %v1917 = vpop.permute.xlu0 %1916
        %1918 = vrot.lane.b32.xlu0 %v1449, 64
        %v1919 = vpop.permute.xlu0 %1918
        %1920 = vrot.lane.b32.xlu0 %v1451, 64
        %v1921 = vpop.permute.xlu0 %1920
        %1922 = vrot.lane.b32.xlu0 %v1453, 64
        %v1923 = vpop.permute.xlu0 %1922
        %1924 = vrot.lane.b32.xlu0 %v1455, 64
        %v1925 = vpop.permute.xlu0 %1924
        %1926 = vrot.lane.b32.xlu0 %v1457, 64
        %v1927 = vpop.permute.xlu0 %1926
        %1936 = vxpose.xlu0.b32.start [1/16] %v1913, 128
        %1937 = vxpose.xlu0.b32.cont [2/16] %v1915, 128
        %1938 = vxpose.xlu0.b32.cont [3/16] 0.0, 128
        %1939 = vxpose.xlu0.b32.cont [4/16] 0.0, 128
        %1940 = vxpose.xlu0.b32.cont [5/16] 0.0, 128
        %1941 = vxpose.xlu0.b32.cont [6/16] 0.0, 128
        %1942 = vxpose.xlu0.b32.cont [7/16] 0.0, 128
        %1943 = vxpose.xlu0.b32.cont [8/16] 0.0, 128
        %1944 = vxpose.xlu0.b32.cont [9/16] 0.0, 128
        %1945 = vxpose.xlu0.b32.cont [10/16] 0.0, 128
        %1946 = vxpose.xlu0.b32.cont [11/16] 0.0, 128
        %1947 = vxpose.xlu0.b32.cont [12/16] 0.0, 128
        %1948 = vxpose.xlu0.b32.cont [13/16] 0.0, 128
        %1949 = vxpose.xlu0.b32.cont [14/16] 0.0, 128
        %1950 = vxpose.xlu0.b32.cont [15/16] 0.0, 128
        %1951 = vxpose.xlu0.b32.end [16/16] 0.0, 128
        %v1952 = vpop.trf.xlu0
        %v1953 = vpop.trf.xlu0
        %v1954 = vpop.trf.xlu0
        %v1955 = vpop.trf.xlu0
        %v1956 = vpop.trf.xlu0
        %v1957 = vpop.trf.xlu0
        %v1958 = vpop.trf.xlu0
        %v1959 = vpop.trf.xlu0
        %v1960 = vpop.trf.xlu0
        %v1961 = vpop.trf.xlu0
        %v1962 = vpop.trf.xlu0
        %v1963 = vpop.trf.xlu0
        %v1964 = vpop.trf.xlu0
        %v1965 = vpop.trf.xlu0
        %v1966 = vpop.trf.xlu0
        %v1967 = vpop.trf.xlu0
        %1968 = vxpose.xlu0.b32.start [1/16] %v1917, 128
        %1969 = vxpose.xlu0.b32.cont [2/16] %v1919, 128
        %1970 = vxpose.xlu0.b32.cont [3/16] 0.0, 128
        %1971 = vxpose.xlu0.b32.cont [4/16] 0.0, 128
        %1972 = vxpose.xlu0.b32.cont [5/16] 0.0, 128
        %1973 = vxpose.xlu0.b32.cont [6/16] 0.0, 128
        %1974 = vxpose.xlu0.b32.cont [7/16] 0.0, 128
        %1975 = vxpose.xlu0.b32.cont [8/16] 0.0, 128
        %1976 = vxpose.xlu0.b32.cont [9/16] 0.0, 128
        %1977 = vxpose.xlu0.b32.cont [10/16] 0.0, 128
        %1978 = vxpose.xlu0.b32.cont [11/16] 0.0, 128
        %1979 = vxpose.xlu0.b32.cont [12/16] 0.0, 128
        %1980 = vxpose.xlu0.b32.cont [13/16] 0.0, 128
        %1981 = vxpose.xlu0.b32.cont [14/16] 0.0, 128
        %1982 = vxpose.xlu0.b32.cont [15/16] 0.0, 128
        %1983 = vxpose.xlu0.b32.end [16/16] 0.0, 128
        %v1984 = vpop.trf.xlu0
        %v1985 = vpop.trf.xlu0
        %v1986 = vpop.trf.xlu0
        %v1987 = vpop.trf.xlu0
        %v1988 = vpop.trf.xlu0
        %v1989 = vpop.trf.xlu0
        %v1990 = vpop.trf.xlu0
        %v1991 = vpop.trf.xlu0
        %v1992 = vpop.trf.xlu0
        %v1993 = vpop.trf.xlu0
        %v1994 = vpop.trf.xlu0
        %v1995 = vpop.trf.xlu0
        %v1996 = vpop.trf.xlu0
        %v1997 = vpop.trf.xlu0
        %v1998 = vpop.trf.xlu0
        %v1999 = vpop.trf.xlu0
        %2000 = vxpose.xlu0.b32.start [1/16] %v1921, 128
        %2001 = vxpose.xlu0.b32.cont [2/16] %v1923, 128
        %2002 = vxpose.xlu0.b32.cont [3/16] 0.0, 128
        %2003 = vxpose.xlu0.b32.cont [4/16] 0.0, 128
        %2004 = vxpose.xlu0.b32.cont [5/16] 0.0, 128
        %2005 = vxpose.xlu0.b32.cont [6/16] 0.0, 128
        %2006 = vxpose.xlu0.b32.cont [7/16] 0.0, 128
        %2007 = vxpose.xlu0.b32.cont [8/16] 0.0, 128
        %2008 = vxpose.xlu0.b32.cont [9/16] 0.0, 128
        %2009 = vxpose.xlu0.b32.cont [10/16] 0.0, 128
        %2010 = vxpose.xlu0.b32.cont [11/16] 0.0, 128
        %2011 = vxpose.xlu0.b32.cont [12/16] 0.0, 128
        %2012 = vxpose.xlu0.b32.cont [13/16] 0.0, 128
        %2013 = vxpose.xlu0.b32.cont [14/16] 0.0, 128
        %2014 = vxpose.xlu0.b32.cont [15/16] 0.0, 128
        %2015 = vxpose.xlu0.b32.end [16/16] 0.0, 128
        %v2016 = vpop.trf.xlu0
        %v2017 = vpop.trf.xlu0
        %v2018 = vpop.trf.xlu0
        %v2019 = vpop.trf.xlu0
        %v2020 = vpop.trf.xlu0
        %v2021 = vpop.trf.xlu0
        %v2022 = vpop.trf.xlu0
        %v2023 = vpop.trf.xlu0
        %v2024 = vpop.trf.xlu0
        %v2025 = vpop.trf.xlu0
        %v2026 = vpop.trf.xlu0
        %v2027 = vpop.trf.xlu0
        %v2028 = vpop.trf.xlu0
        %v2029 = vpop.trf.xlu0
        %v2030 = vpop.trf.xlu0
        %v2031 = vpop.trf.xlu0
        %2032 = vxpose.xlu0.b32.start [1/16] %v1925, 128
        %2033 = vxpose.xlu0.b32.cont [2/16] %v1927, 128
        %2034 = vxpose.xlu0.b32.cont [3/16] 0.0, 128
        %2035 = vxpose.xlu0.b32.cont [4/16] 0.0, 128
        %2036 = vxpose.xlu0.b32.cont [5/16] 0.0, 128
        %2037 = vxpose.xlu0.b32.cont [6/16] 0.0, 128
        %2038 = vxpose.xlu0.b32.cont [7/16] 0.0, 128
        %2039 = vxpose.xlu0.b32.cont [8/16] 0.0, 128
        %2040 = vxpose.xlu0.b32.cont [9/16] 0.0, 128
        %2041 = vxpose.xlu0.b32.cont [10/16] 0.0, 128
        %2042 = vxpose.xlu0.b32.cont [11/16] 0.0, 128
        %2043 = vxpose.xlu0.b32.cont [12/16] 0.0, 128
        %2044 = vxpose.xlu0.b32.cont [13/16] 0.0, 128
        %2045 = vxpose.xlu0.b32.cont [14/16] 0.0, 128
        %2046 = vxpose.xlu0.b32.cont [15/16] 0.0, 128
        %2047 = vxpose.xlu0.b32.end [16/16] 0.0, 128
        %v2048 = vpop.trf.xlu0
        %v2049 = vpop.trf.xlu0
        %v2050 = vpop.trf.xlu0
        %v2051 = vpop.trf.xlu0
        %v2052 = vpop.trf.xlu0
        %v2053 = vpop.trf.xlu0
        %v2054 = vpop.trf.xlu0
        %v2055 = vpop.trf.xlu0
        %v2056 = vpop.trf.xlu0
        %v2057 = vpop.trf.xlu0
        %v2058 = vpop.trf.xlu0
        %v2059 = vpop.trf.xlu0
        %v2060 = vpop.trf.xlu0
        %v2061 = vpop.trf.xlu0
        %v2062 = vpop.trf.xlu0
        %v2063 = vpop.trf.xlu0
        %v2065 = vsel %vm1719, %v1952, 0
        %v2068 = vsel %vm1719, %v1806, 0
        %v2071 = vsel %vm1719, %v1821, 0
        %2073 = vmatpush.xpose.msra.mxu0 0.0
        %2074 = vmatpush.xpose.msra.mxu0 0.0
        %2075 = vmatpush.xpose.msra.mxu0 0.0
        %2076 = vmatpush.xpose.msra.mxu0 0.0
        %2077 = vmatpush.xpose.msra.mxu0 0.0
        %2078 = vmatpush.xpose.msra.mxu0 0.0
        %2079 = vmatpush.xpose.msra.mxu0 0.0
        %2080 = vmatpush.xpose.msra.mxu0 0.0
        %2081 = vmatpush.xpose.msra.mxu0 0.0
        %2082 = vmatpush.xpose.msra.mxu0 0.0
        %2083 = vmatpush.xpose.msra.mxu0 0.0
        %2084 = vmatpush.xpose.msra.mxu0 0.0
        %2085 = vmatpush.xpose.msra.mxu0 0.0
        %2086 = vmatpush.xpose.msra.mxu0 0.0
        %2087 = vmatpush.xpose.msra.mxu0 %v2071
        %2088 = vmatpush.xpose.msra.mxu0 %v2068
        %2089 = vmatmul.f32.gmra.mxu0 %v2065
        %v2090 = vpop.f32.mrf.mxu0
        %v2091 = vadd.f32 0.0, %v2090
        %2092 = vdwg.mxu0
        %v2094 = vsel %vm1719, %v1984, 0
        %v2097 = vsel %vm1719, %v1836, 0
        %v2100 = vsel %vm1719, %v1851, 0
        %2102 = vmatpush.xpose.msra.mxu0 0.0
        %2103 = vmatpush.xpose.msra.mxu0 0.0
        %2104 = vmatpush.xpose.msra.mxu0 0.0
        %2105 = vmatpush.xpose.msra.mxu0 0.0
        %2106 = vmatpush.xpose.msra.mxu0 0.0
        %2107 = vmatpush.xpose.msra.mxu0 0.0
        %2108 = vmatpush.xpose.msra.mxu0 0.0
        %2109 = vmatpush.xpose.msra.mxu0 0.0
        %2110 = vmatpush.xpose.msra.mxu0 0.0
        %2111 = vmatpush.xpose.msra.mxu0 0.0
        %2112 = vmatpush.xpose.msra.mxu0 0.0
        %2113 = vmatpush.xpose.msra.mxu0 0.0
        %2114 = vmatpush.xpose.msra.mxu0 0.0
        %2115 = vmatpush.xpose.msra.mxu0 0.0
        %2116 = vmatpush.xpose.msra.mxu0 %v2100
        %2117 = vmatpush.xpose.msra.mxu0 %v2097
        %2118 = vmatmul.f32.gmra.mxu0 %v2094
        %v2119 = vpop.f32.mrf.mxu0
        %v2120 = vadd.f32 0.0, %v2119
        %2121 = vdwg.mxu0
        %v2123 = vsel %vm1719, %v2016, 0
        %v2126 = vsel %vm1719, %v1866, 0
        %v2129 = vsel %vm1719, %v1881, 0
        %2131 = vmatpush.xpose.msra.mxu0 0.0
        %2132 = vmatpush.xpose.msra.mxu0 0.0
        %2133 = vmatpush.xpose.msra.mxu0 0.0
        %2134 = vmatpush.xpose.msra.mxu0 0.0
        %2135 = vmatpush.xpose.msra.mxu0 0.0
        %2136 = vmatpush.xpose.msra.mxu0 0.0
        %2137 = vmatpush.xpose.msra.mxu0 0.0
        %2138 = vmatpush.xpose.msra.mxu0 0.0
        %2139 = vmatpush.xpose.msra.mxu0 0.0
        %2140 = vmatpush.xpose.msra.mxu0 0.0
        %2141 = vmatpush.xpose.msra.mxu0 0.0
        %2142 = vmatpush.xpose.msra.mxu0 0.0
        %2143 = vmatpush.xpose.msra.mxu0 0.0
        %2144 = vmatpush.xpose.msra.mxu0 0.0
        %2145 = vmatpush.xpose.msra.mxu0 %v2129
        %2146 = vmatpush.xpose.msra.mxu0 %v2126
        %2147 = vmatmul.f32.gmra.mxu0 %v2123
        %v2148 = vpop.f32.mrf.mxu0
        %v2149 = vadd.f32 0.0, %v2148
        %2150 = vdwg.mxu0
        %v2152 = vsel %vm1719, %v2048, 0
        %v2155 = vsel %vm1719, %v1896, 0
        %v2158 = vsel %vm1719, %v1911, 0
        %2160 = vmatpush.xpose.msra.mxu0 0.0
        %2161 = vmatpush.xpose.msra.mxu0 0.0
        %2162 = vmatpush.xpose.msra.mxu0 0.0
        %2163 = vmatpush.xpose.msra.mxu0 0.0
        %2164 = vmatpush.xpose.msra.mxu0 0.0
        %2165 = vmatpush.xpose.msra.mxu0 0.0
        %2166 = vmatpush.xpose.msra.mxu0 0.0
        %2167 = vmatpush.xpose.msra.mxu0 0.0
        %2168 = vmatpush.xpose.msra.mxu0 0.0
        %2169 = vmatpush.xpose.msra.mxu0 0.0
        %2170 = vmatpush.xpose.msra.mxu0 0.0
        %2171 = vmatpush.xpose.msra.mxu0 0.0
        %2172 = vmatpush.xpose.msra.mxu0 0.0
        %2173 = vmatpush.xpose.msra.mxu0 0.0
        %2174 = vmatpush.xpose.msra.mxu0 %v2158
        %2175 = vmatpush.xpose.msra.mxu0 %v2155
        %2176 = vmatmul.f32.gmra.mxu0 %v2152
        %v2177 = vpop.f32.mrf.mxu0
        %v2178 = vadd.f32 0.0, %v2177
        %2179 = vdwg.mxu0
        %2180 = vxpose.xlu0.b32.start [1/16] %v2091, 128
        %2181 = vxpose.xlu0.b32.cont [2/16] 0.0, 128
        %2182 = vxpose.xlu0.b32.cont [3/16] 0.0, 128
        %2183 = vxpose.xlu0.b32.cont [4/16] 0.0, 128
        %2184 = vxpose.xlu0.b32.cont [5/16] 0.0, 128
        %2185 = vxpose.xlu0.b32.cont [6/16] 0.0, 128
        %2186 = vxpose.xlu0.b32.cont [7/16] 0.0, 128
        %2187 = vxpose.xlu0.b32.cont [8/16] 0.0, 128
        %2188 = vxpose.xlu0.b32.cont [9/16] 0.0, 128
        %2189 = vxpose.xlu0.b32.cont [10/16] 0.0, 128
        %2190 = vxpose.xlu0.b32.cont [11/16] 0.0, 128
        %2191 = vxpose.xlu0.b32.cont [12/16] 0.0, 128
        %2192 = vxpose.xlu0.b32.cont [13/16] 0.0, 128
        %2193 = vxpose.xlu0.b32.cont [14/16] 0.0, 128
        %2194 = vxpose.xlu0.b32.cont [15/16] 0.0, 128
        %2195 = vxpose.xlu0.b32.end [16/16] 0.0, 128
        %v2196 = vpop.trf.xlu0
        %v2197 = vpop.trf.xlu0
        %v2198 = vpop.trf.xlu0
        %v2199 = vpop.trf.xlu0
        %v2200 = vpop.trf.xlu0
        %v2201 = vpop.trf.xlu0
        %v2202 = vpop.trf.xlu0
        %v2203 = vpop.trf.xlu0
        %v2204 = vpop.trf.xlu0
        %v2205 = vpop.trf.xlu0
        %v2206 = vpop.trf.xlu0
        %v2207 = vpop.trf.xlu0
        %v2208 = vpop.trf.xlu0
        %v2209 = vpop.trf.xlu0
        %v2210 = vpop.trf.xlu0
        %v2211 = vpop.trf.xlu0
        %2212 = vxpose.xlu0.b32.start [1/16] %v2120, 128
        %2213 = vxpose.xlu0.b32.cont [2/16] 0.0, 128
        %2214 = vxpose.xlu0.b32.cont [3/16] 0.0, 128
        %2215 = vxpose.xlu0.b32.cont [4/16] 0.0, 128
        %2216 = vxpose.xlu0.b32.cont [5/16] 0.0, 128
        %2217 = vxpose.xlu0.b32.cont [6/16] 0.0, 128
        %2218 = vxpose.xlu0.b32.cont [7/16] 0.0, 128
        %2219 = vxpose.xlu0.b32.cont [8/16] 0.0, 128
        %2220 = vxpose.xlu0.b32.cont [9/16] 0.0, 128
        %2221 = vxpose.xlu0.b32.cont [10/16] 0.0, 128
        %2222 = vxpose.xlu0.b32.cont [11/16] 0.0, 128
        %2223 = vxpose.xlu0.b32.cont [12/16] 0.0, 128
        %2224 = vxpose.xlu0.b32.cont [13/16] 0.0, 128
        %2225 = vxpose.xlu0.b32.cont [14/16] 0.0, 128
        %2226 = vxpose.xlu0.b32.cont [15/16] 0.0, 128
        %2227 = vxpose.xlu0.b32.end [16/16] 0.0, 128
        %v2228 = vpop.trf.xlu0
        %v2229 = vpop.trf.xlu0
        %v2230 = vpop.trf.xlu0
        %v2231 = vpop.trf.xlu0
        %v2232 = vpop.trf.xlu0
        %v2233 = vpop.trf.xlu0
        %v2234 = vpop.trf.xlu0
        %v2235 = vpop.trf.xlu0
        %v2236 = vpop.trf.xlu0
        %v2237 = vpop.trf.xlu0
        %v2238 = vpop.trf.xlu0
        %v2239 = vpop.trf.xlu0
        %v2240 = vpop.trf.xlu0
        %v2241 = vpop.trf.xlu0
        %v2242 = vpop.trf.xlu0
        %v2243 = vpop.trf.xlu0
        %2244 = vxpose.xlu0.b32.start [1/16] %v2149, 128
        %2245 = vxpose.xlu0.b32.cont [2/16] 0.0, 128
        %2246 = vxpose.xlu0.b32.cont [3/16] 0.0, 128
        %2247 = vxpose.xlu0.b32.cont [4/16] 0.0, 128
        %2248 = vxpose.xlu0.b32.cont [5/16] 0.0, 128
        %2249 = vxpose.xlu0.b32.cont [6/16] 0.0, 128
        %2250 = vxpose.xlu0.b32.cont [7/16] 0.0, 128
        %2251 = vxpose.xlu0.b32.cont [8/16] 0.0, 128
        %2252 = vxpose.xlu0.b32.cont [9/16] 0.0, 128
        %2253 = vxpose.xlu0.b32.cont [10/16] 0.0, 128
        %2254 = vxpose.xlu0.b32.cont [11/16] 0.0, 128
        %2255 = vxpose.xlu0.b32.cont [12/16] 0.0, 128
        %2256 = vxpose.xlu0.b32.cont [13/16] 0.0, 128
        %2257 = vxpose.xlu0.b32.cont [14/16] 0.0, 128
        %2258 = vxpose.xlu0.b32.cont [15/16] 0.0, 128
        %2259 = vxpose.xlu0.b32.end [16/16] 0.0, 128
        %v2260 = vpop.trf.xlu0
        %v2261 = vpop.trf.xlu0
        %v2262 = vpop.trf.xlu0
        %v2263 = vpop.trf.xlu0
        %v2264 = vpop.trf.xlu0
        %v2265 = vpop.trf.xlu0
        %v2266 = vpop.trf.xlu0
        %v2267 = vpop.trf.xlu0
        %v2268 = vpop.trf.xlu0
        %v2269 = vpop.trf.xlu0
        %v2270 = vpop.trf.xlu0
        %v2271 = vpop.trf.xlu0
        %v2272 = vpop.trf.xlu0
        %v2273 = vpop.trf.xlu0
        %v2274 = vpop.trf.xlu0
        %v2275 = vpop.trf.xlu0
        %2276 = vxpose.xlu0.b32.start [1/16] %v2178, 128
        %2277 = vxpose.xlu0.b32.cont [2/16] 0.0, 128
        %2278 = vxpose.xlu0.b32.cont [3/16] 0.0, 128
        %2279 = vxpose.xlu0.b32.cont [4/16] 0.0, 128
        %2280 = vxpose.xlu0.b32.cont [5/16] 0.0, 128
        %2281 = vxpose.xlu0.b32.cont [6/16] 0.0, 128
        %2282 = vxpose.xlu0.b32.cont [7/16] 0.0, 128
        %2283 = vxpose.xlu0.b32.cont [8/16] 0.0, 128
        %2284 = vxpose.xlu0.b32.cont [9/16] 0.0, 128
        %2285 = vxpose.xlu0.b32.cont [10/16] 0.0, 128
        %2286 = vxpose.xlu0.b32.cont [11/16] 0.0, 128
        %2287 = vxpose.xlu0.b32.cont [12/16] 0.0, 128
        %2288 = vxpose.xlu0.b32.cont [13/16] 0.0, 128
        %2289 = vxpose.xlu0.b32.cont [14/16] 0.0, 128
        %2290 = vxpose.xlu0.b32.cont [15/16] 0.0, 128
        %2291 = vxpose.xlu0.b32.end [16/16] 0.0, 128
        %v2292 = vpop.trf.xlu0
        %v2293 = vpop.trf.xlu0
        %v2294 = vpop.trf.xlu0
        %v2295 = vpop.trf.xlu0
        %v2296 = vpop.trf.xlu0
        %v2297 = vpop.trf.xlu0
        %v2298 = vpop.trf.xlu0
        %v2299 = vpop.trf.xlu0
        %v2300 = vpop.trf.xlu0
        %v2301 = vpop.trf.xlu0
        %v2302 = vpop.trf.xlu0
        %v2303 = vpop.trf.xlu0
        %v2304 = vpop.trf.xlu0
        %v2305 = vpop.trf.xlu0
        %v2306 = vpop.trf.xlu0
        %v2307 = vpop.trf.xlu0
        %v2308 = vrot.slane %v2260, 4
        %vm2309 = vcmask 1047556
        %v2310 = vsel %vm2309, %v2308, %v2196
        %v2311 = vrot.slane %v2196, 4
        %v2312 = vsel %vm2309, %v2260, %v2311
        %v2314 = vunpack.c.l.s4 1983009808
        %v2315 = vunpack.c.0.s8 %v2314
        %v2316 = vperm.slane %v2310, %v2315
        %v2318 = vunpack.c.l.s4 1983009808
        %v2319 = vunpack.c.0.s8 %v2318
        %v2320 = vperm.slane %v2312, %v2319
        %v2321 = vrot.slane %v2292, 4
        %v2322 = vsel %vm2309, %v2321, %v2228
        %v2323 = vrot.slane %v2228, 4
        %v2324 = vsel %vm2309, %v2292, %v2323
        %v2326 = vunpack.c.l.s4 1983009808
        %v2327 = vunpack.c.0.s8 %v2326
        %v2328 = vperm.slane %v2322, %v2327
        %v2330 = vunpack.c.l.s4 1983009808
        %v2331 = vunpack.c.0.s8 %v2330
        %v2332 = vperm.slane %v2324, %v2331
        %v2333 = vrot.slane %v2328, 4
        %v2334 = vsel %vm2309, %v2333, %v2316
        %v2335 = vrot.slane %v2316, 4
        %v2336 = vsel %vm2309, %v2328, %v2335
        %v2338 = vunpack.c.l.s4 1934713408
        %v2339 = vunpack.c.0.s8 %v2338
        %v2340 = vperm.slane %v2334, %v2339
        %v2342 = vunpack.c.l.s4 1934713408
        %v2343 = vunpack.c.0.s8 %v2342
        %v2344 = vperm.slane %v2336, %v2343
        %v2345 = vrot.slane %v2332, 4
        %v2346 = vsel %vm2309, %v2345, %v2320
        %v2347 = vrot.slane %v2320, 4
        %v2348 = vsel %vm2309, %v2332, %v2347
        %v2350 = vunpack.c.l.s4 1934713408
        %v2351 = vunpack.c.0.s8 %v2350
        %v2352 = vperm.slane %v2346, %v2351
        %v2354 = vunpack.c.l.s4 1934713408
        %v2355 = vunpack.c.0.s8 %v2354
        %v2356 = vperm.slane %v2348, %v2355
        %v2357 = vrot.slane %v2340, 4
        %v2358 = vsel %vm2309, 0.0, %v2357
        %v2359 = vrot.slane %v2344, 4
        %v2360 = vsel %vm2309, 0.0, %v2359
        %v2361 = vrot.slane %v2352, 4
        %v2362 = vsel %vm2309, 0.0, %v2361
        %v2363 = vrot.slane %v2356, 4
        %v2364 = vsel %vm2309, 0.0, %v2363
        %v2365 = vrot.slane %v2261, 4
        %v2366 = vsel %vm2309, %v2365, %v2197
        %v2367 = vrot.slane %v2197, 4
        %v2368 = vsel %vm2309, %v2261, %v2367
        %v2370 = vunpack.c.l.s4 1983009808
        %v2371 = vunpack.c.0.s8 %v2370
        %v2372 = vperm.slane %v2366, %v2371
        %v2374 = vunpack.c.l.s4 1983009808
        %v2375 = vunpack.c.0.s8 %v2374
        %v2376 = vperm.slane %v2368, %v2375
        %v2377 = vrot.slane %v2293, 4
        %v2378 = vsel %vm2309, %v2377, %v2229
        %v2379 = vrot.slane %v2229, 4
        %v2380 = vsel %vm2309, %v2293, %v2379
        %v2382 = vunpack.c.l.s4 1983009808
        %v2383 = vunpack.c.0.s8 %v2382
        %v2384 = vperm.slane %v2378, %v2383
        %v2386 = vunpack.c.l.s4 1983009808
        %v2387 = vunpack.c.0.s8 %v2386
        %v2388 = vperm.slane %v2380, %v2387
        %v2389 = vrot.slane %v2384, 4
        %v2390 = vsel %vm2309, %v2389, %v2372
        %v2391 = vrot.slane %v2372, 4
        %v2392 = vsel %vm2309, %v2384, %v2391
        %v2394 = vunpack.c.l.s4 1934713408
        %v2395 = vunpack.c.0.s8 %v2394
        %v2396 = vperm.slane %v2390, %v2395
        %v2398 = vunpack.c.l.s4 1934713408
        %v2399 = vunpack.c.0.s8 %v2398
        %v2400 = vperm.slane %v2392, %v2399
        %v2401 = vrot.slane %v2388, 4
        %v2402 = vsel %vm2309, %v2401, %v2376
        %v2403 = vrot.slane %v2376, 4
        %v2404 = vsel %vm2309, %v2388, %v2403
        %v2406 = vunpack.c.l.s4 1934713408
        %v2407 = vunpack.c.0.s8 %v2406
        %v2408 = vperm.slane %v2402, %v2407
        %v2410 = vunpack.c.l.s4 1934713408
        %v2411 = vunpack.c.0.s8 %v2410
        %v2412 = vperm.slane %v2404, %v2411
        %v2413 = vrot.slane %v2396, 4
        %v2414 = vsel %vm2309, 0.0, %v2413
        %v2415 = vrot.slane %v2400, 4
        %v2416 = vsel %vm2309, 0.0, %v2415
        %v2417 = vrot.slane %v2408, 4
        %v2418 = vsel %vm2309, 0.0, %v2417
        %v2419 = vrot.slane %v2412, 4
        %v2420 = vsel %vm2309, 0.0, %v2419
        %v2421 = vsel %vm2309, %v2359, %v2340
        %v2423 = vunpack.c.l.s4 1983009808
        %v2424 = vunpack.c.0.s8 %v2423
        %v2425 = vperm.slane %v2421, %v2424
        %v2426 = vrot.slane %v2360, 4
        %v2427 = vsel %vm2309, %v2426, %v2358
        %v2429 = vunpack.c.l.s4 1983009808
        %v2430 = vunpack.c.0.s8 %v2429
        %v2431 = vperm.slane %v2427, %v2430
        %v2432 = vsel %vm2309, %v2363, %v2352
        %v2434 = vunpack.c.l.s4 1983009808
        %v2435 = vunpack.c.0.s8 %v2434
        %v2436 = vperm.slane %v2432, %v2435
        %v2437 = vrot.slane %v2364, 4
        %v2438 = vsel %vm2309, %v2437, %v2362
        %v2440 = vunpack.c.l.s4 1983009808
        %v2441 = vunpack.c.0.s8 %v2440
        %v2442 = vperm.slane %v2438, %v2441
        %v2443 = vrot.slane %v2431, 4
        %v2444 = vsel %vm2309, %v2443, %v2425
        %v2445 = vrot.slane %v2425, 4
        %v2446 = vsel %vm2309, %v2431, %v2445
        %v2448 = vunpack.c.l.s4 1934713408
        %v2449 = vunpack.c.0.s8 %v2448
        %v2450 = vperm.slane %v2444, %v2449
        %v2452 = vunpack.c.l.s4 1934713408
        %v2453 = vunpack.c.0.s8 %v2452
        %v2454 = vperm.slane %v2446, %v2453
        %v2455 = vrot.slane %v2442, 4
        %v2456 = vsel %vm2309, %v2455, %v2436
        %v2457 = vrot.slane %v2436, 4
        %v2458 = vsel %vm2309, %v2442, %v2457
        %v2460 = vunpack.c.l.s4 1934713408
        %v2461 = vunpack.c.0.s8 %v2460
        %v2462 = vperm.slane %v2456, %v2461
        %v2464 = vunpack.c.l.s4 1934713408
        %v2465 = vunpack.c.0.s8 %v2464
        %v2466 = vperm.slane %v2458, %v2465
        %v2467 = vrot.slane %v2462, 4
        %v2468 = vsel %vm2309, %v2467, %v2450
        %v2469 = vrot.slane %v2450, 4
        %v2470 = vsel %vm2309, %v2462, %v2469
        %v2471 = vrot.slane %v2466, 4
        %v2472 = vsel %vm2309, %v2471, %v2454
        %v2473 = vrot.slane %v2454, 4
        %v2474 = vsel %vm2309, %v2466, %v2473
        %v2475 = vsel %vm2309, %v2415, %v2396
        %v2477 = vunpack.c.l.s4 1983009808
        %v2478 = vunpack.c.0.s8 %v2477
        %v2479 = vperm.slane %v2475, %v2478
        %v2480 = vrot.slane %v2416, 4
        %v2481 = vsel %vm2309, %v2480, %v2414
        %v2483 = vunpack.c.l.s4 1983009808
        %v2484 = vunpack.c.0.s8 %v2483
        %v2485 = vperm.slane %v2481, %v2484
        %v2486 = vsel %vm2309, %v2419, %v2408
        %v2488 = vunpack.c.l.s4 1983009808
        %v2489 = vunpack.c.0.s8 %v2488
        %v2490 = vperm.slane %v2486, %v2489
        %v2491 = vrot.slane %v2420, 4
        %v2492 = vsel %vm2309, %v2491, %v2418
        %v2494 = vunpack.c.l.s4 1983009808
        %v2495 = vunpack.c.0.s8 %v2494
        %v2496 = vperm.slane %v2492, %v2495
        %v2497 = vrot.slane %v2485, 4
        %v2498 = vsel %vm2309, %v2497, %v2479
        %v2499 = vrot.slane %v2479, 4
        %v2500 = vsel %vm2309, %v2485, %v2499
        %v2502 = vunpack.c.l.s4 1934713408
        %v2503 = vunpack.c.0.s8 %v2502
        %v2504 = vperm.slane %v2498, %v2503
        %v2506 = vunpack.c.l.s4 1934713408
        %v2507 = vunpack.c.0.s8 %v2506
        %v2508 = vperm.slane %v2500, %v2507
        %v2509 = vrot.slane %v2496, 4
        %v2510 = vsel %vm2309, %v2509, %v2490
        %v2511 = vrot.slane %v2490, 4
        %v2512 = vsel %vm2309, %v2496, %v2511
        %v2514 = vunpack.c.l.s4 1934713408
        %v2515 = vunpack.c.0.s8 %v2514
        %v2516 = vperm.slane %v2510, %v2515
        %v2518 = vunpack.c.l.s4 1934713408
        %v2519 = vunpack.c.0.s8 %v2518
        %v2520 = vperm.slane %v2512, %v2519
        %v2521 = vrot.slane %v2516, 4
        %v2522 = vsel %vm2309, %v2521, %v2504
        %v2523 = vrot.slane %v2504, 4
        %v2524 = vsel %vm2309, %v2516, %v2523
        %v2525 = vrot.slane %v2520, 4
        %v2526 = vsel %vm2309, %v2525, %v2508
        %v2527 = vrot.slane %v2508, 4
        %v2528 = vsel %vm2309, %v2520, %v2527
        %2531 = vrot.lane.b32.xlu0 %v2470, 8
        %v2532 = vpop.permute.xlu0 %2531
        %2533 = vrot.lane.b32.xlu0 %v2524, 8
        %v2534 = vpop.permute.xlu0 %2533
        %2539 = vrot.lane.b32.xlu0 %v2472, 16
        %v2540 = vpop.permute.xlu0 %2539
        %2541 = vrot.lane.b32.xlu0 %v2526, 16
        %v2542 = vpop.permute.xlu0 %2541
        %2547 = vrot.lane.b32.xlu0 %v2474, 24
        %v2548 = vpop.permute.xlu0 %2547
        %2549 = vrot.lane.b32.xlu0 %v2528, 24
        %v2550 = vpop.permute.xlu0 %2549
        %v2553 = vsel %vm1610, %v2468, %v2532
        %v2554 = vsel %vm1610, %v2522, %v2534
        %v2555 = vsel %vm1719, %v2553, %v2540
        %v2556 = vsel %vm1719, %v2554, %v2542
        %vm2557 = vcmask 195584
        %v2558 = vsel %vm2557, %v2555, %v2548
        %v2559 = vsel %vm2557, %v2556, %v2550
        %v2561 = vperm.slane %v1393, 0
        %v2564 = vsel %vm1288, %v2558, 0
        %v2567 = vsel %vm1288, %v2559, 0
        %2569 = vmatpush.msra.mxu0 0.0
        %2570 = vmatpush.msra.mxu0 0.0
        %2571 = vmatpush.msra.mxu0 0.0
        %2572 = vmatpush.msra.mxu0 0.0
        %2573 = vmatpush.msra.mxu0 0.0
        %2574 = vmatpush.msra.mxu0 0.0
        %2575 = vmatpush.msra.mxu0 0.0
        %2576 = vmatpush.msra.mxu0 0.0
        %2577 = vmatpush.msra.mxu0 0.0
        %2578 = vmatpush.msra.mxu0 0.0
        %2579 = vmatpush.msra.mxu0 0.0
        %2580 = vmatpush.msra.mxu0 0.0
        %2581 = vmatpush.msra.mxu0 %v1392
        %2582 = vmatpush.msra.mxu0 %v1391
        %2583 = vmatpush.msra.mxu0 %v1390
        %2584 = vmatpush.msra.mxu0 %v1389
        %2585 = vmatmul.f32.gmra.mxu0 %v2564
        %v2586 = vpop.f32.mrf.mxu0
        %v2587 = vadd.f32 %v2561, %v2586
        %2588 = vmatmul.f32.gmra.mxu0 %v2567
        %v2589 = vpop.f32.mrf.mxu0
        %v2590 = vadd.f32 %v2561, %v2589
        %2591 = vdwg.mxu0
        %v2592 = vadd.f32 %v1377, %v2587
        %v2593 = vadd.f32 %v1380, %v2590
        %v2594 = vsel %vm1288, %v2592, 0.0
        %2595 = vadd.xlane.f32.xlu0 %v2594
        %v2596 = vpop.xlane.xlu0 %2595
        %v2597 = vsel %vm1288, %v2593, 0.0
        %2598 = vadd.xlane.f32.xlu0 %v2597
        %v2599 = vpop.xlane.xlu0 %2598
        %v2600 = vmul.f32 %v2596, %v1301
        %v2601 = vmul.f32 %v2599, %v1301
        %v2602 = vsub.f32 %v2592, %v2600
        %v2603 = vsub.f32 %v2593, %v2601
        %v2604 = vmul.f32 %v2602, %v2602
        %v2605 = vmul.f32 %v2603, %v2603
        %v2606 = vsel %vm1288, %v2604, 0.0
        %2607 = vadd.xlane.f32.xlu0 %v2606
        %v2608 = vpop.xlane.xlu0 %2607
        %v2609 = vsel %vm1288, %v2605, 0.0
        %2610 = vadd.xlane.f32.xlu0 %v2609
        %v2611 = vpop.xlane.xlu0 %2610
        %v2612 = vmul.f32 %v2608, %v1301
        %v2613 = vmul.f32 %v2611, %v1301
        %v2614 = vadd.f32 %v2612, 1e-05
        %v2615 = vadd.f32 %v2613, 1e-05
        %v2616 = vrsqrt.pop %v2614
        %v2617 = vmul.f32 %v2616, %v2614
        %v2618 = vmul.f32 %v2617, %v2616
        %v2619 = vmul.f32 0.5, %v2618
        %v2620 = vsub.f32 1.5, %v2619
        %v2621 = vmul.f32 %v2616, %v2620
        %vm2622 = vweird.f32 %v2614
        %vm2623 = vweird.f32 %v2616
        %vm2624 = vmor %vm2622, %vm2623
        %v2625 = vsel %vm2624, %v2616, %v2621
        %v2626 = vrsqrt.pop %v2615
        %v2627 = vmul.f32 %v2626, %v2615
        %v2628 = vmul.f32 %v2627, %v2626
        %v2629 = vmul.f32 0.5, %v2628
        %v2630 = vsub.f32 1.5, %v2629
        %v2631 = vmul.f32 %v2626, %v2630
        %vm2632 = vweird.f32 %v2615
        %vm2633 = vweird.f32 %v2626
        %vm2634 = vmor %vm2632, %vm2633
        %v2635 = vsel %vm2634, %v2626, %v2631
        %v2636 = vmul.f32 %v2602, %v2625
        %v2637 = vmul.f32 %v2603, %v2635
        %v2639 = vperm.slane %v1394, 0
        %v2641 = vmul.f32 %v2636, %v2639
        %v2642 = vmul.f32 %v2637, %v2639
        %v2644 = vperm.slane %v1395, 0
        %v2646 = vadd.f32 %v2641, %v2644
        %v2647 = vadd.f32 %v2642, %v2644
        %v2649 = vperm.slane %v1400, 0
        %v2652 = vsel %vm1288, %v2646, 0
        %v2655 = vsel %vm1288, %v2647, 0
        %2657 = vmatpush.msra.mxu0 0.0
        %2658 = vmatpush.msra.mxu0 0.0
        %2659 = vmatpush.msra.mxu0 0.0
        %2660 = vmatpush.msra.mxu0 0.0
        %2661 = vmatpush.msra.mxu0 0.0
        %2662 = vmatpush.msra.mxu0 0.0
        %2663 = vmatpush.msra.mxu0 0.0
        %2664 = vmatpush.msra.mxu0 0.0
        %2665 = vmatpush.msra.mxu0 0.0
        %2666 = vmatpush.msra.mxu0 0.0
        %2667 = vmatpush.msra.mxu0 0.0
        %2668 = vmatpush.msra.mxu0 0.0
        %2669 = vmatpush.msra.mxu0 %v1399
        %2670 = vmatpush.msra.mxu0 %v1398
        %2671 = vmatpush.msra.mxu0 %v1397
        %2672 = vmatpush.msra.mxu0 %v1396
        %2673 = vmatmul.f32.gmra.mxu0 %v2652
        %v2674 = vpop.f32.mrf.mxu0
        %v2675 = vadd.f32 %v2649, %v2674
        %2676 = vmatmul.f32.gmra.mxu0 %v2655
        %v2677 = vpop.f32.mrf.mxu0
        %v2678 = vadd.f32 %v2649, %v2677
        %2679 = vdwg.mxu0
        %v2680 = vmul.f32 %v2675, %v2675
        %v2681 = vmul.f32 %v2678, %v2678
        %v2682 = vmul.f32 %v2675, %v2680
        %v2683 = vmul.f32 %v2678, %v2681
        %v2684 = vmul.f32 %v2682, 0.044715
        %v2685 = vmul.f32 %v2683, 0.044715
        %v2686 = vadd.f32 %v2675, %v2684
        %v2687 = vadd.f32 %v2678, %v2685
        %v2688 = vmul.f32 %v2686, 0.7978846
        %v2689 = vmul.f32 %v2687, 0.7978846
        %v2690 = vtanh.pop %v2688
        %v2691 = vtanh.pop %v2689
        %v2692 = vadd.f32 %v2690, 1.0
        %v2693 = vadd.f32 %v2691, 1.0
        %v2694 = vmul.f32 %v2692, 0.5
        %v2695 = vmul.f32 %v2693, 0.5
        %v2696 = vmul.f32 %v2675, %v2694
        %v2697 = vmul.f32 %v2678, %v2695
        %v2699 = vperm.slane %v1409, 0
        %vm2701 = vcmask 523264
        %v2703 = vsel %vm2701, %v2696, 0
        %v2706 = vsel %vm2701, %v2697, 0
        %2708 = vmatpush.msra.mxu0 0.0
        %2709 = vmatpush.msra.mxu0 0.0
        %2710 = vmatpush.msra.mxu0 0.0
        %2711 = vmatpush.msra.mxu0 0.0
        %2712 = vmatpush.msra.mxu0 0.0
        %2713 = vmatpush.msra.mxu0 0.0
        %2714 = vmatpush.msra.mxu0 0.0
        %2715 = vmatpush.msra.mxu0 0.0
        %2716 = vmatpush.msra.mxu0 %v1408
        %2717 = vmatpush.msra.mxu0 %v1407
        %2718 = vmatpush.msra.mxu0 %v1406
        %2719 = vmatpush.msra.mxu0 %v1405
        %2720 = vmatpush.msra.mxu0 %v1404
        %2721 = vmatpush.msra.mxu0 %v1403
        %2722 = vmatpush.msra.mxu0 %v1402
        %2723 = vmatpush.msra.mxu0 %v1401
        %2724 = vmatmul.f32.gmra.mxu0 %v2703
        %v2725 = vpop.f32.mrf.mxu0
        %v2726 = vadd.f32 %v2699, %v2725
        %2727 = vmatmul.f32.gmra.mxu0 %v2706
        %v2728 = vpop.f32.mrf.mxu0
        %v2729 = vadd.f32 %v2699, %v2728
        %2730 = vdwg.mxu0
        %v2731 = vadd.f32 %v2646, %v2726
        %v2732 = vadd.f32 %v2647, %v2729
        %v2733 = vsel %vm1288, %v2731, 0.0
        %2734 = vadd.xlane.f32.xlu0 %v2733
        %v2735 = vpop.xlane.xlu0 %2734
        %v2736 = vsel %vm1288, %v2732, 0.0
        %2737 = vadd.xlane.f32.xlu0 %v2736
        %v2738 = vpop.xlane.xlu0 %2737
        %v2739 = vmul.f32 %v2735, %v1301
        %v2740 = vmul.f32 %v2738, %v1301
        %v2741 = vsub.f32 %v2731, %v2739
        %v2742 = vsub.f32 %v2732, %v2740
        %v2743 = vmul.f32 %v2741, %v2741
        %v2744 = vmul.f32 %v2742, %v2742
        %v2745 = vsel %vm1288, %v2743, 0.0
        %2746 = vadd.xlane.f32.xlu0 %v2745
        %v2747 = vpop.xlane.xlu0 %2746
        %v2748 = vsel %vm1288, %v2744, 0.0
        %2749 = vadd.xlane.f32.xlu0 %v2748
        %v2750 = vpop.xlane.xlu0 %2749
        %v2751 = vmul.f32 %v2747, %v1301
        %v2752 = vmul.f32 %v2750, %v1301
        %v2753 = vadd.f32 %v2751, 1e-05
        %v2754 = vadd.f32 %v2752, 1e-05
        %v2755 = vrsqrt.pop %v2753
        %v2756 = vmul.f32 %v2755, %v2753
        %v2757 = vmul.f32 %v2756, %v2755
        %v2758 = vmul.f32 0.5, %v2757
        %v2759 = vsub.f32 1.5, %v2758
        %v2760 = vmul.f32 %v2755, %v2759
        %vm2761 = vweird.f32 %v2753
        %vm2762 = vweird.f32 %v2755
        %vm2763 = vmor %vm2761, %vm2762
        %v2764 = vsel %vm2763, %v2755, %v2760
        %v2765 = vrsqrt.pop %v2754
        %v2766 = vmul.f32 %v2765, %v2754
        %v2767 = vmul.f32 %v2766, %v2765
        %v2768 = vmul.f32 0.5, %v2767
        %v2769 = vsub.f32 1.5, %v2768
        %v2770 = vmul.f32 %v2765, %v2769
        %vm2771 = vweird.f32 %v2754
        %vm2772 = vweird.f32 %v2765
        %vm2773 = vmor %vm2771, %vm2772
        %v2774 = vsel %vm2773, %v2765, %v2770
        %v2775 = vmul.f32 %v2741, %v2764
        %v2776 = vmul.f32 %v2742, %v2774
        %v2778 = vperm.slane %v1410, 0
        %v2780 = vmul.f32 %v2775, %v2778
        %v2781 = vmul.f32 %v2776, %v2778
        %v2783 = vperm.slane %v1411, 0
        %v2785 = vadd.f32 %v2780, %v2783
        %v2786 = vadd.f32 %v2781, %v2783
        %2787 = vst.msk [vmem:[%s1190] sm:$0xff] %vm1288, %v2785
        %2788 = vst.msk [vmem:[%s1190 + $0x8] sm:$0xff] %vm1288, %v2786
        %v2789 = vld [vmem:[#allocation11] sm:$0xff]
        %v2790 = vld [vmem:[#allocation11 + $0x8] sm:$0xff]
        %v2791 = vld [vmem:[#allocation11 + $0x10] sm:$0xff]
        %v2792 = vld [vmem:[#allocation11 + $0x18] sm:$0xff]
        %v2793 = vld [vmem:[%s43] sm:$0x1]
        %v2794 = vld [vmem:[#allocation13] sm:$0xff]
        %v2795 = vld [vmem:[#allocation13 + $0x8] sm:$0xff]
        %v2796 = vld [vmem:[#allocation13 + $0x10] sm:$0xff]
        %v2797 = vld [vmem:[#allocation13 + $0x18] sm:$0xff]
        %v2798 = vld [vmem:[%s47] sm:$0x1]
        %v2799 = vld [vmem:[%s49] sm:$0x1]
        %v2800 = vld [vmem:[%s51] sm:$0x1]
        %v2801 = vld [vmem:[%s53] sm:$0xff]
        %v2802 = vld [vmem:[%s53 + $0x8] sm:$0xff]
        %v2803 = vld [vmem:[%s53 + $0x10] sm:$0xff]
        %v2804 = vld [vmem:[%s53 + $0x18] sm:$0xff]
        %v2805 = vld [vmem:[%s55] sm:$0x1]
        %v2806 = vld [vmem:[#allocation14] sm:$0xff]
        %v2807 = vld [vmem:[#allocation14 + $0x8] sm:$0xff]
        %v2808 = vld [vmem:[#allocation14 + $0x10] sm:$0xff]
        %v2809 = vld [vmem:[#allocation14 + $0x18] sm:$0xff]
        %v2810 = vld [vmem:[#allocation14 + $0x20] sm:$0xff]
        %v2811 = vld [vmem:[#allocation14 + $0x28] sm:$0xff]
        %v2812 = vld [vmem:[#allocation14 + $0x30] sm:$0xff]
        %v2813 = vld [vmem:[#allocation14 + $0x38] sm:$0xff]
        %v2814 = vld [vmem:[%s59] sm:$0x1]
        %v2815 = vld [vmem:[%s61] sm:$0x1]
        %v2816 = vld [vmem:[%s63] sm:$0x1]
        %v2818 = vperm.slane %v2793, 0
        %v2821 = vsel %vm1288, %v2785, 0
        %v2824 = vsel %vm1288, %v2786, 0
        %2826 = vmatpush.msra.mxu0 0.0
        %2827 = vmatpush.msra.mxu0 0.0
        %2828 = vmatpush.msra.mxu0 0.0
        %2829 = vmatpush.msra.mxu0 0.0
        %2830 = vmatpush.msra.mxu0 0.0
        %2831 = vmatpush.msra.mxu0 0.0
        %2832 = vmatpush.msra.mxu0 0.0
        %2833 = vmatpush.msra.mxu0 0.0
        %2834 = vmatpush.msra.mxu0 0.0
        %2835 = vmatpush.msra.mxu0 0.0
        %2836 = vmatpush.msra.mxu0 0.0
        %2837 = vmatpush.msra.mxu0 0.0
        %2838 = vmatpush.msra.mxu0 %v2792
        %2839 = vmatpush.msra.mxu0 %v2791
        %2840 = vmatpush.msra.mxu0 %v2790
        %2841 = vmatpush.msra.mxu0 %v2789
        %2842 = vmatmul.f32.gmra.mxu0 %v2821
        %v2843 = vpop.f32.mrf.mxu0
        %v2844 = vadd.f32 %v2818, %v2843
        %2845 = vmatmul.f32.gmra.mxu0 %v2824
        %v2846 = vpop.f32.mrf.mxu0
        %v2847 = vadd.f32 %v2818, %v2846
        %2848 = vdwg.mxu0
        %2851 = vrot.lane.b32.xlu0 %v2844, 120
        %v2852 = vpop.permute.xlu0 %2851
        %2853 = vrot.lane.b32.xlu0 %v2847, 120
        %v2854 = vpop.permute.xlu0 %2853
        %2855 = vrot.lane.b32.xlu0 %v2844, 112
        %v2856 = vpop.permute.xlu0 %2855
        %2857 = vrot.lane.b32.xlu0 %v2847, 112
        %v2858 = vpop.permute.xlu0 %2857
        %2859 = vrot.lane.b32.xlu0 %v2844, 104
        %v2860 = vpop.permute.xlu0 %2859
        %2861 = vrot.lane.b32.xlu0 %v2847, 104
        %v2862 = vpop.permute.xlu0 %2861
        %2863 = vrot.lane.b32.xlu0 %v2844, 96
        %v2864 = vpop.permute.xlu0 %2863
        %2865 = vrot.lane.b32.xlu0 %v2847, 96
        %v2866 = vpop.permute.xlu0 %2865
        %2867 = vrot.lane.b32.xlu0 %v2852, 96
        %v2868 = vpop.permute.xlu0 %2867
        %2869 = vrot.lane.b32.xlu0 %v2854, 96
        %v2870 = vpop.permute.xlu0 %2869
        %2871 = vrot.lane.b32.xlu0 %v2856, 96
        %v2872 = vpop.permute.xlu0 %2871
        %2873 = vrot.lane.b32.xlu0 %v2858, 96
        %v2874 = vpop.permute.xlu0 %2873
        %2875 = vrot.lane.b32.xlu0 %v2860, 96
        %v2876 = vpop.permute.xlu0 %2875
        %2877 = vrot.lane.b32.xlu0 %v2862, 96
        %v2878 = vpop.permute.xlu0 %2877
        %2887 = vxpose.xlu0.b32.start [1/16] %v2864, 128
        %2888 = vxpose.xlu0.b32.cont [2/16] %v2866, 128
        %2889 = vxpose.xlu0.b32.cont [3/16] 0.0, 128
        %2890 = vxpose.xlu0.b32.cont [4/16] 0.0, 128
        %2891 = vxpose.xlu0.b32.cont [5/16] 0.0, 128
        %2892 = vxpose.xlu0.b32.cont [6/16] 0.0, 128
        %2893 = vxpose.xlu0.b32.cont [7/16] 0.0, 128
        %2894 = vxpose.xlu0.b32.cont [8/16] 0.0, 128
        %2895 = vxpose.xlu0.b32.cont [9/16] 0.0, 128
        %2896 = vxpose.xlu0.b32.cont [10/16] 0.0, 128
        %2897 = vxpose.xlu0.b32.cont [11/16] 0.0, 128
        %2898 = vxpose.xlu0.b32.cont [12/16] 0.0, 128
        %2899 = vxpose.xlu0.b32.cont [13/16] 0.0, 128
        %2900 = vxpose.xlu0.b32.cont [14/16] 0.0, 128
        %2901 = vxpose.xlu0.b32.cont [15/16] 0.0, 128
        %2902 = vxpose.xlu0.b32.end [16/16] 0.0, 128
        %v2903 = vpop.trf.xlu0
        %v2904 = vpop.trf.xlu0
        %v2905 = vpop.trf.xlu0
        %v2906 = vpop.trf.xlu0
        %v2907 = vpop.trf.xlu0
        %v2908 = vpop.trf.xlu0
        %v2909 = vpop.trf.xlu0
        %v2910 = vpop.trf.xlu0
        %v2911 = vpop.trf.xlu0
        %v2912 = vpop.trf.xlu0
        %v2913 = vpop.trf.xlu0
        %v2914 = vpop.trf.xlu0
        %v2915 = vpop.trf.xlu0
        %v2916 = vpop.trf.xlu0
        %v2917 = vpop.trf.xlu0
        %v2918 = vpop.trf.xlu0
        %2919 = vxpose.xlu0.b32.start [1/16] %v2868, 128
        %2920 = vxpose.xlu0.b32.cont [2/16] %v2870, 128
        %2921 = vxpose.xlu0.b32.cont [3/16] 0.0, 128
        %2922 = vxpose.xlu0.b32.cont [4/16] 0.0, 128
        %2923 = vxpose.xlu0.b32.cont [5/16] 0.0, 128
        %2924 = vxpose.xlu0.b32.cont [6/16] 0.0, 128
        %2925 = vxpose.xlu0.b32.cont [7/16] 0.0, 128
        %2926 = vxpose.xlu0.b32.cont [8/16] 0.0, 128
        %2927 = vxpose.xlu0.b32.cont [9/16] 0.0, 128
        %2928 = vxpose.xlu0.b32.cont [10/16] 0.0, 128
        %2929 = vxpose.xlu0.b32.cont [11/16] 0.0, 128
        %2930 = vxpose.xlu0.b32.cont [12/16] 0.0, 128
        %2931 = vxpose.xlu0.b32.cont [13/16] 0.0, 128
        %2932 = vxpose.xlu0.b32.cont [14/16] 0.0, 128
        %2933 = vxpose.xlu0.b32.cont [15/16] 0.0, 128
        %2934 = vxpose.xlu0.b32.end [16/16] 0.0, 128
        %v2935 = vpop.trf.xlu0
        %v2936 = vpop.trf.xlu0
        %v2937 = vpop.trf.xlu0
        %v2938 = vpop.trf.xlu0
        %v2939 = vpop.trf.xlu0
        %v2940 = vpop.trf.xlu0
        %v2941 = vpop.trf.xlu0
        %v2942 = vpop.trf.xlu0
        %v2943 = vpop.trf.xlu0
        %v2944 = vpop.trf.xlu0
        %v2945 = vpop.trf.xlu0
        %v2946 = vpop.trf.xlu0
        %v2947 = vpop.trf.xlu0
        %v2948 = vpop.trf.xlu0
        %v2949 = vpop.trf.xlu0
        %v2950 = vpop.trf.xlu0
        %2951 = vxpose.xlu0.b32.start [1/16] %v2872, 128
        %2952 = vxpose.xlu0.b32.cont [2/16] %v2874, 128
        %2953 = vxpose.xlu0.b32.cont [3/16] 0.0, 128
        %2954 = vxpose.xlu0.b32.cont [4/16] 0.0, 128
        %2955 = vxpose.xlu0.b32.cont [5/16] 0.0, 128
        %2956 = vxpose.xlu0.b32.cont [6/16] 0.0, 128
        %2957 = vxpose.xlu0.b32.cont [7/16] 0.0, 128
        %2958 = vxpose.xlu0.b32.cont [8/16] 0.0, 128
        %2959 = vxpose.xlu0.b32.cont [9/16] 0.0, 128
        %2960 = vxpose.xlu0.b32.cont [10/16] 0.0, 128
        %2961 = vxpose.xlu0.b32.cont [11/16] 0.0, 128
        %2962 = vxpose.xlu0.b32.cont [12/16] 0.0, 128
        %2963 = vxpose.xlu0.b32.cont [13/16] 0.0, 128
        %2964 = vxpose.xlu0.b32.cont [14/16] 0.0, 128
        %2965 = vxpose.xlu0.b32.cont [15/16] 0.0, 128
        %2966 = vxpose.xlu0.b32.end [16/16] 0.0, 128
        %v2967 = vpop.trf.xlu0
        %v2968 = vpop.trf.xlu0
        %v2969 = vpop.trf.xlu0
        %v2970 = vpop.trf.xlu0
        %v2971 = vpop.trf.xlu0
        %v2972 = vpop.trf.xlu0
        %v2973 = vpop.trf.xlu0
        %v2974 = vpop.trf.xlu0
        %v2975 = vpop.trf.xlu0
        %v2976 = vpop.trf.xlu0
        %v2977 = vpop.trf.xlu0
        %v2978 = vpop.trf.xlu0
        %v2979 = vpop.trf.xlu0
        %v2980 = vpop.trf.xlu0
        %v2981 = vpop.trf.xlu0
        %v2982 = vpop.trf.xlu0
        %2983 = vxpose.xlu0.b32.start [1/16] %v2876, 128
        %2984 = vxpose.xlu0.b32.cont [2/16] %v2878, 128
        %2985 = vxpose.xlu0.b32.cont [3/16] 0.0, 128
        %2986 = vxpose.xlu0.b32.cont [4/16] 0.0, 128
        %2987 = vxpose.xlu0.b32.cont [5/16] 0.0, 128
        %2988 = vxpose.xlu0.b32.cont [6/16] 0.0, 128
        %2989 = vxpose.xlu0.b32.cont [7/16] 0.0, 128
        %2990 = vxpose.xlu0.b32.cont [8/16] 0.0, 128
        %2991 = vxpose.xlu0.b32.cont [9/16] 0.0, 128
        %2992 = vxpose.xlu0.b32.cont [10/16] 0.0, 128
        %2993 = vxpose.xlu0.b32.cont [11/16] 0.0, 128
        %2994 = vxpose.xlu0.b32.cont [12/16] 0.0, 128
        %2995 = vxpose.xlu0.b32.cont [13/16] 0.0, 128
        %2996 = vxpose.xlu0.b32.cont [14/16] 0.0, 128
        %2997 = vxpose.xlu0.b32.cont [15/16] 0.0, 128
        %2998 = vxpose.xlu0.b32.end [16/16] 0.0, 128
        %v2999 = vpop.trf.xlu0
        %v3000 = vpop.trf.xlu0
        %v3001 = vpop.trf.xlu0
        %v3002 = vpop.trf.xlu0
        %v3003 = vpop.trf.xlu0
        %v3004 = vpop.trf.xlu0
        %v3005 = vpop.trf.xlu0
        %v3006 = vpop.trf.xlu0
        %v3007 = vpop.trf.xlu0
        %v3008 = vpop.trf.xlu0
        %v3009 = vpop.trf.xlu0
        %v3010 = vpop.trf.xlu0
        %v3011 = vpop.trf.xlu0
        %v3012 = vpop.trf.xlu0
        %v3013 = vpop.trf.xlu0
        %v3014 = vpop.trf.xlu0
        %v3015 = vsel %vm1610, %v2844, 0
        %v3017 = vsel %vm1610, %v2847, 0
        %3019 = vmatpush.msra.mxu0 0.0
        %3020 = vmatpush.msra.mxu0 0.0
        %3021 = vmatpush.msra.mxu0 0.0
        %3022 = vmatpush.msra.mxu0 0.0
        %3023 = vmatpush.msra.mxu0 0.0
        %3024 = vmatpush.msra.mxu0 0.0
        %3025 = vmatpush.msra.mxu0 0.0
        %3026 = vmatpush.msra.mxu0 0.0
        %3027 = vmatpush.msra.mxu0 0.0
        %3028 = vmatpush.msra.mxu0 0.0
        %3029 = vmatpush.msra.mxu0 0.0
        %3030 = vmatpush.msra.mxu0 0.0
        %3031 = vmatpush.msra.mxu0 0.0
        %3032 = vmatpush.msra.mxu0 0.0
        %3033 = vmatpush.msra.mxu0 0.0
        %3034 = vmatpush.msra.mxu0 %v2903
        %3035 = vmatmul.f32.gmra.mxu0 %v3015
        %v3036 = vpop.f32.mrf.mxu0
        %v3037 = vadd.f32 0.0, %v3036
        %3038 = vmatmul.f32.gmra.mxu0 %v3017
        %v3039 = vpop.f32.mrf.mxu0
        %v3040 = vadd.f32 0.0, %v3039
        %3041 = vdwg.mxu0
        %v3042 = vsel %vm1610, %v2852, 0
        %v3044 = vsel %vm1610, %v2854, 0
        %3046 = vmatpush.msra.mxu0 0.0
        %3047 = vmatpush.msra.mxu0 0.0
        %3048 = vmatpush.msra.mxu0 0.0
        %3049 = vmatpush.msra.mxu0 0.0
        %3050 = vmatpush.msra.mxu0 0.0
        %3051 = vmatpush.msra.mxu0 0.0
        %3052 = vmatpush.msra.mxu0 0.0
        %3053 = vmatpush.msra.mxu0 0.0
        %3054 = vmatpush.msra.mxu0 0.0
        %3055 = vmatpush.msra.mxu0 0.0
        %3056 = vmatpush.msra.mxu0 0.0
        %3057 = vmatpush.msra.mxu0 0.0
        %3058 = vmatpush.msra.mxu0 0.0
        %3059 = vmatpush.msra.mxu0 0.0
        %3060 = vmatpush.msra.mxu0 0.0
        %3061 = vmatpush.msra.mxu0 %v2935
        %3062 = vmatmul.f32.gmra.mxu0 %v3042
        %v3063 = vpop.f32.mrf.mxu0
        %v3064 = vadd.f32 0.0, %v3063
        %3065 = vmatmul.f32.gmra.mxu0 %v3044
        %v3066 = vpop.f32.mrf.mxu0
        %v3067 = vadd.f32 0.0, %v3066
        %3068 = vdwg.mxu0
        %v3069 = vsel %vm1610, %v2856, 0
        %v3071 = vsel %vm1610, %v2858, 0
        %3073 = vmatpush.msra.mxu0 0.0
        %3074 = vmatpush.msra.mxu0 0.0
        %3075 = vmatpush.msra.mxu0 0.0
        %3076 = vmatpush.msra.mxu0 0.0
        %3077 = vmatpush.msra.mxu0 0.0
        %3078 = vmatpush.msra.mxu0 0.0
        %3079 = vmatpush.msra.mxu0 0.0
        %3080 = vmatpush.msra.mxu0 0.0
        %3081 = vmatpush.msra.mxu0 0.0
        %3082 = vmatpush.msra.mxu0 0.0
        %3083 = vmatpush.msra.mxu0 0.0
        %3084 = vmatpush.msra.mxu0 0.0
        %3085 = vmatpush.msra.mxu0 0.0
        %3086 = vmatpush.msra.mxu0 0.0
        %3087 = vmatpush.msra.mxu0 0.0
        %3088 = vmatpush.msra.mxu0 %v2967
        %3089 = vmatmul.f32.gmra.mxu0 %v3069
        %v3090 = vpop.f32.mrf.mxu0
        %v3091 = vadd.f32 0.0, %v3090
        %3092 = vmatmul.f32.gmra.mxu0 %v3071
        %v3093 = vpop.f32.mrf.mxu0
        %v3094 = vadd.f32 0.0, %v3093
        %3095 = vdwg.mxu0
        %v3096 = vsel %vm1610, %v2860, 0
        %v3098 = vsel %vm1610, %v2862, 0
        %3100 = vmatpush.msra.mxu0 0.0
        %3101 = vmatpush.msra.mxu0 0.0
        %3102 = vmatpush.msra.mxu0 0.0
        %3103 = vmatpush.msra.mxu0 0.0
        %3104 = vmatpush.msra.mxu0 0.0
        %3105 = vmatpush.msra.mxu0 0.0
        %3106 = vmatpush.msra.mxu0 0.0
        %3107 = vmatpush.msra.mxu0 0.0
        %3108 = vmatpush.msra.mxu0 0.0
        %3109 = vmatpush.msra.mxu0 0.0
        %3110 = vmatpush.msra.mxu0 0.0
        %3111 = vmatpush.msra.mxu0 0.0
        %3112 = vmatpush.msra.mxu0 0.0
        %3113 = vmatpush.msra.mxu0 0.0
        %3114 = vmatpush.msra.mxu0 0.0
        %3115 = vmatpush.msra.mxu0 %v2999
        %3116 = vmatmul.f32.gmra.mxu0 %v3096
        %v3117 = vpop.f32.mrf.mxu0
        %v3118 = vadd.f32 0.0, %v3117
        %3119 = vmatmul.f32.gmra.mxu0 %v3098
        %v3120 = vpop.f32.mrf.mxu0
        %v3121 = vadd.f32 0.0, %v3120
        %3122 = vdwg.mxu0
        %v3123 = vsel %vm1719, %v3037, -inf
        %3124 = vmax.xlane.f32.xlu0 %v3123
        %v3125 = vpop.xlane.xlu0 %3124
        %v3126 = vsel %vm1719, %v3040, -inf
        %3127 = vmax.xlane.f32.xlu0 %v3126
        %v3128 = vpop.xlane.xlu0 %3127
        %v3129 = vsel %vm1719, %v3064, -inf
        %3130 = vmax.xlane.f32.xlu0 %v3129
        %v3131 = vpop.xlane.xlu0 %3130
        %v3132 = vsel %vm1719, %v3067, -inf
        %3133 = vmax.xlane.f32.xlu0 %v3132
        %v3134 = vpop.xlane.xlu0 %3133
        %v3135 = vsel %vm1719, %v3091, -inf
        %3136 = vmax.xlane.f32.xlu0 %v3135
        %v3137 = vpop.xlane.xlu0 %3136
        %v3138 = vsel %vm1719, %v3094, -inf
        %3139 = vmax.xlane.f32.xlu0 %v3138
        %v3140 = vpop.xlane.xlu0 %3139
        %v3141 = vsel %vm1719, %v3118, -inf
        %3142 = vmax.xlane.f32.xlu0 %v3141
        %v3143 = vpop.xlane.xlu0 %3142
        %v3144 = vsel %vm1719, %v3121, -inf
        %3145 = vmax.xlane.f32.xlu0 %v3144
        %v3146 = vpop.xlane.xlu0 %3145
        %v3147 = vsub.f32 %v3037, %v3125
        %v3148 = vsub.f32 %v3040, %v3128
        %v3149 = vsub.f32 %v3064, %v3131
        %v3150 = vsub.f32 %v3067, %v3134
        %v3151 = vsub.f32 %v3091, %v3137
        %v3152 = vsub.f32 %v3094, %v3140
        %v3153 = vsub.f32 %v3118, %v3143
        %v3154 = vsub.f32 %v3121, %v3146
        %v3155 = vmul.f32 %v3147, 1.442695
        %v3156 = vpow.pop %v3155
        %v3157 = vmul.f32 %v3148, 1.442695
        %v3158 = vpow.pop %v3157
        %v3159 = vmul.f32 %v3149, 1.442695
        %v3160 = vpow.pop %v3159
        %v3161 = vmul.f32 %v3150, 1.442695
        %v3162 = vpow.pop %v3161
        %v3163 = vmul.f32 %v3151, 1.442695
        %v3164 = vpow.pop %v3163
        %v3165 = vmul.f32 %v3152, 1.442695
        %v3166 = vpow.pop %v3165
        %v3167 = vmul.f32 %v3153, 1.442695
        %v3168 = vpow.pop %v3167
        %v3169 = vmul.f32 %v3154, 1.442695
        %v3170 = vpow.pop %v3169
        %v3171 = vsel %vm1719, %v3156, 0.0
        %3172 = vadd.xlane.f32.xlu0 %v3171
        %v3173 = vpop.xlane.xlu0 %3172
        %v3174 = vsel %vm1719, %v3158, 0.0
        %3175 = vadd.xlane.f32.xlu0 %v3174
        %v3176 = vpop.xlane.xlu0 %3175
        %v3177 = vsel %vm1719, %v3160, 0.0
        %3178 = vadd.xlane.f32.xlu0 %v3177
        %v3179 = vpop.xlane.xlu0 %3178
        %v3180 = vsel %vm1719, %v3162, 0.0
        %3181 = vadd.xlane.f32.xlu0 %v3180
        %v3182 = vpop.xlane.xlu0 %3181
        %v3183 = vsel %vm1719, %v3164, 0.0
        %3184 = vadd.xlane.f32.xlu0 %v3183
        %v3185 = vpop.xlane.xlu0 %3184
        %v3186 = vsel %vm1719, %v3166, 0.0
        %3187 = vadd.xlane.f32.xlu0 %v3186
        %v3188 = vpop.xlane.xlu0 %3187
        %v3189 = vsel %vm1719, %v3168, 0.0
        %3190 = vadd.xlane.f32.xlu0 %v3189
        %v3191 = vpop.xlane.xlu0 %3190
        %v3192 = vsel %vm1719, %v3170, 0.0
        %3193 = vadd.xlane.f32.xlu0 %v3192
        %v3194 = vpop.xlane.xlu0 %3193
        %v3195 = vrcp.pop %v3173
        %v3196 = vmul.f32 %v3173, %v3195
        %v3197 = vsub.f32 1.0, %v3196
        %v3198 = vmul.f32 %v3195, %v3197
        %v3199 = vadd.f32 %v3195, %v3198
        %vm3200 = vweird.f32 %v3173
        %vm3201 = vweird.f32 %v3195
        %vm3202 = vmor %vm3200, %vm3201
        %v3203 = vsel %vm3202, %v3195, %v3199
        %v3204 = vand.u32 2147483647, %v3173
        %vm3205 = vcmp.eq.f32.partialorder %v3204, 8.507059e+37
        %v3206 = vand.u32 %v3173, 2147483648
        %v3207 = vor.u32 1.1754944e-38, %v3206
        %v3208 = vsel %vm3205, %v3207, %v3203
        %v3209 = vmul.f32 %v3156, %v3208
        %v3210 = vrcp.pop %v3176
        %v3211 = vmul.f32 %v3176, %v3210
        %v3212 = vsub.f32 1.0, %v3211
        %v3213 = vmul.f32 %v3210, %v3212
        %v3214 = vadd.f32 %v3210, %v3213
        %vm3215 = vweird.f32 %v3176
        %vm3216 = vweird.f32 %v3210
        %vm3217 = vmor %vm3215, %vm3216
        %v3218 = vsel %vm3217, %v3210, %v3214
        %v3219 = vand.u32 2147483647, %v3176
        %vm3220 = vcmp.eq.f32.partialorder %v3219, 8.507059e+37
        %v3221 = vand.u32 %v3176, 2147483648
        %v3222 = vor.u32 1.1754944e-38, %v3221
        %v3223 = vsel %vm3220, %v3222, %v3218
        %v3224 = vmul.f32 %v3158, %v3223
        %v3225 = vrcp.pop %v3179
        %v3226 = vmul.f32 %v3179, %v3225
        %v3227 = vsub.f32 1.0, %v3226
        %v3228 = vmul.f32 %v3225, %v3227
        %v3229 = vadd.f32 %v3225, %v3228
        %vm3230 = vweird.f32 %v3179
        %vm3231 = vweird.f32 %v3225
        %vm3232 = vmor %vm3230, %vm3231
        %v3233 = vsel %vm3232, %v3225, %v3229
        %v3234 = vand.u32 2147483647, %v3179
        %vm3235 = vcmp.eq.f32.partialorder %v3234, 8.507059e+37
        %v3236 = vand.u32 %v3179, 2147483648
        %v3237 = vor.u32 1.1754944e-38, %v3236
        %v3238 = vsel %vm3235, %v3237, %v3233
        %v3239 = vmul.f32 %v3160, %v3238
        %v3240 = vrcp.pop %v3182
        %v3241 = vmul.f32 %v3182, %v3240
        %v3242 = vsub.f32 1.0, %v3241
        %v3243 = vmul.f32 %v3240, %v3242
        %v3244 = vadd.f32 %v3240, %v3243
        %vm3245 = vweird.f32 %v3182
        %vm3246 = vweird.f32 %v3240
        %vm3247 = vmor %vm3245, %vm3246
        %v3248 = vsel %vm3247, %v3240, %v3244
        %v3249 = vand.u32 2147483647, %v3182
        %vm3250 = vcmp.eq.f32.partialorder %v3249, 8.507059e+37
        %v3251 = vand.u32 %v3182, 2147483648
        %v3252 = vor.u32 1.1754944e-38, %v3251
        %v3253 = vsel %vm3250, %v3252, %v3248
        %v3254 = vmul.f32 %v3162, %v3253
        %v3255 = vrcp.pop %v3185
        %v3256 = vmul.f32 %v3185, %v3255
        %v3257 = vsub.f32 1.0, %v3256
        %v3258 = vmul.f32 %v3255, %v3257
        %v3259 = vadd.f32 %v3255, %v3258
        %vm3260 = vweird.f32 %v3185
        %vm3261 = vweird.f32 %v3255
        %vm3262 = vmor %vm3260, %vm3261
        %v3263 = vsel %vm3262, %v3255, %v3259
        %v3264 = vand.u32 2147483647, %v3185
        %vm3265 = vcmp.eq.f32.partialorder %v3264, 8.507059e+37
        %v3266 = vand.u32 %v3185, 2147483648
        %v3267 = vor.u32 1.1754944e-38, %v3266
        %v3268 = vsel %vm3265, %v3267, %v3263
        %v3269 = vmul.f32 %v3164, %v3268
        %v3270 = vrcp.pop %v3188
        %v3271 = vmul.f32 %v3188, %v3270
        %v3272 = vsub.f32 1.0, %v3271
        %v3273 = vmul.f32 %v3270, %v3272
        %v3274 = vadd.f32 %v3270, %v3273
        %vm3275 = vweird.f32 %v3188
        %vm3276 = vweird.f32 %v3270
        %vm3277 = vmor %vm3275, %vm3276
        %v3278 = vsel %vm3277, %v3270, %v3274
        %v3279 = vand.u32 2147483647, %v3188
        %vm3280 = vcmp.eq.f32.partialorder %v3279, 8.507059e+37
        %v3281 = vand.u32 %v3188, 2147483648
        %v3282 = vor.u32 1.1754944e-38, %v3281
        %v3283 = vsel %vm3280, %v3282, %v3278
        %v3284 = vmul.f32 %v3166, %v3283
        %v3285 = vrcp.pop %v3191
        %v3286 = vmul.f32 %v3191, %v3285
        %v3287 = vsub.f32 1.0, %v3286
        %v3288 = vmul.f32 %v3285, %v3287
        %v3289 = vadd.f32 %v3285, %v3288
        %vm3290 = vweird.f32 %v3191
        %vm3291 = vweird.f32 %v3285
        %vm3292 = vmor %vm3290, %vm3291
        %v3293 = vsel %vm3292, %v3285, %v3289
        %v3294 = vand.u32 2147483647, %v3191
        %vm3295 = vcmp.eq.f32.partialorder %v3294, 8.507059e+37
        %v3296 = vand.u32 %v3191, 2147483648
        %v3297 = vor.u32 1.1754944e-38, %v3296
        %v3298 = vsel %vm3295, %v3297, %v3293
        %v3299 = vmul.f32 %v3168, %v3298
        %v3300 = vrcp.pop %v3194
        %v3301 = vmul.f32 %v3194, %v3300
        %v3302 = vsub.f32 1.0, %v3301
        %v3303 = vmul.f32 %v3300, %v3302
        %v3304 = vadd.f32 %v3300, %v3303
        %vm3305 = vweird.f32 %v3194
        %vm3306 = vweird.f32 %v3300
        %vm3307 = vmor %vm3305, %vm3306
        %v3308 = vsel %vm3307, %v3300, %v3304
        %v3309 = vand.u32 2147483647, %v3194
        %vm3310 = vcmp.eq.f32.partialorder %v3309, 8.507059e+37
        %v3311 = vand.u32 %v3194, 2147483648
        %v3312 = vor.u32 1.1754944e-38, %v3311
        %v3313 = vsel %vm3310, %v3312, %v3308
        %v3314 = vmul.f32 %v3170, %v3313
        %3315 = vrot.lane.b32.xlu0 %v2844, 64
        %v3316 = vpop.permute.xlu0 %3315
        %3317 = vrot.lane.b32.xlu0 %v2847, 64
        %v3318 = vpop.permute.xlu0 %3317
        %3319 = vrot.lane.b32.xlu0 %v2852, 64
        %v3320 = vpop.permute.xlu0 %3319
        %3321 = vrot.lane.b32.xlu0 %v2854, 64
        %v3322 = vpop.permute.xlu0 %3321
        %3323 = vrot.lane.b32.xlu0 %v2856, 64
        %v3324 = vpop.permute.xlu0 %3323
        %3325 = vrot.lane.b32.xlu0 %v2858, 64
        %v3326 = vpop.permute.xlu0 %3325
        %3327 = vrot.lane.b32.xlu0 %v2860, 64
        %v3328 = vpop.permute.xlu0 %3327
        %3329 = vrot.lane.b32.xlu0 %v2862, 64
        %v3330 = vpop.permute.xlu0 %3329
        %3339 = vxpose.xlu0.b32.start [1/16] %v3316, 128
        %3340 = vxpose.xlu0.b32.cont [2/16] %v3318, 128
        %3341 = vxpose.xlu0.b32.cont [3/16] 0.0, 128
        %3342 = vxpose.xlu0.b32.cont [4/16] 0.0, 128
        %3343 = vxpose.xlu0.b32.cont [5/16] 0.0, 128
        %3344 = vxpose.xlu0.b32.cont [6/16] 0.0, 128
        %3345 = vxpose.xlu0.b32.cont [7/16] 0.0, 128
        %3346 = vxpose.xlu0.b32.cont [8/16] 0.0, 128
        %3347 = vxpose.xlu0.b32.cont [9/16] 0.0, 128
        %3348 = vxpose.xlu0.b32.cont [10/16] 0.0, 128
        %3349 = vxpose.xlu0.b32.cont [11/16] 0.0, 128
        %3350 = vxpose.xlu0.b32.cont [12/16] 0.0, 128
        %3351 = vxpose.xlu0.b32.cont [13/16] 0.0, 128
        %3352 = vxpose.xlu0.b32.cont [14/16] 0.0, 128
        %3353 = vxpose.xlu0.b32.cont [15/16] 0.0, 128
        %3354 = vxpose.xlu0.b32.end [16/16] 0.0, 128
        %v3355 = vpop.trf.xlu0
        %v3356 = vpop.trf.xlu0
        %v3357 = vpop.trf.xlu0
        %v3358 = vpop.trf.xlu0
        %v3359 = vpop.trf.xlu0
        %v3360 = vpop.trf.xlu0
        %v3361 = vpop.trf.xlu0
        %v3362 = vpop.trf.xlu0
        %v3363 = vpop.trf.xlu0
        %v3364 = vpop.trf.xlu0
        %v3365 = vpop.trf.xlu0
        %v3366 = vpop.trf.xlu0
        %v3367 = vpop.trf.xlu0
        %v3368 = vpop.trf.xlu0
        %v3369 = vpop.trf.xlu0
        %v3370 = vpop.trf.xlu0
        %3371 = vxpose.xlu0.b32.start [1/16] %v3320, 128
        %3372 = vxpose.xlu0.b32.cont [2/16] %v3322, 128
        %3373 = vxpose.xlu0.b32.cont [3/16] 0.0, 128
        %3374 = vxpose.xlu0.b32.cont [4/16] 0.0, 128
        %3375 = vxpose.xlu0.b32.cont [5/16] 0.0, 128
        %3376 = vxpose.xlu0.b32.cont [6/16] 0.0, 128
        %3377 = vxpose.xlu0.b32.cont [7/16] 0.0, 128
        %3378 = vxpose.xlu0.b32.cont [8/16] 0.0, 128
        %3379 = vxpose.xlu0.b32.cont [9/16] 0.0, 128
        %3380 = vxpose.xlu0.b32.cont [10/16] 0.0, 128
        %3381 = vxpose.xlu0.b32.cont [11/16] 0.0, 128
        %3382 = vxpose.xlu0.b32.cont [12/16] 0.0, 128
        %3383 = vxpose.xlu0.b32.cont [13/16] 0.0, 128
        %3384 = vxpose.xlu0.b32.cont [14/16] 0.0, 128
        %3385 = vxpose.xlu0.b32.cont [15/16] 0.0, 128
        %3386 = vxpose.xlu0.b32.end [16/16] 0.0, 128
        %v3387 = vpop.trf.xlu0
        %v3388 = vpop.trf.xlu0
        %v3389 = vpop.trf.xlu0
        %v3390 = vpop.trf.xlu0
        %v3391 = vpop.trf.xlu0
        %v3392 = vpop.trf.xlu0
        %v3393 = vpop.trf.xlu0
        %v3394 = vpop.trf.xlu0
        %v3395 = vpop.trf.xlu0
        %v3396 = vpop.trf.xlu0
        %v3397 = vpop.trf.xlu0
        %v3398 = vpop.trf.xlu0
        %v3399 = vpop.trf.xlu0
        %v3400 = vpop.trf.xlu0
        %v3401 = vpop.trf.xlu0
        %v3402 = vpop.trf.xlu0
        %3403 = vxpose.xlu0.b32.start [1/16] %v3324, 128
        %3404 = vxpose.xlu0.b32.cont [2/16] %v3326, 128
        %3405 = vxpose.xlu0.b32.cont [3/16] 0.0, 128
        %3406 = vxpose.xlu0.b32.cont [4/16] 0.0, 128
        %3407 = vxpose.xlu0.b32.cont [5/16] 0.0, 128
        %3408 = vxpose.xlu0.b32.cont [6/16] 0.0, 128
        %3409 = vxpose.xlu0.b32.cont [7/16] 0.0, 128
        %3410 = vxpose.xlu0.b32.cont [8/16] 0.0, 128
        %3411 = vxpose.xlu0.b32.cont [9/16] 0.0, 128
        %3412 = vxpose.xlu0.b32.cont [10/16] 0.0, 128
        %3413 = vxpose.xlu0.b32.cont [11/16] 0.0, 128
        %3414 = vxpose.xlu0.b32.cont [12/16] 0.0, 128
        %3415 = vxpose.xlu0.b32.cont [13/16] 0.0, 128
        %3416 = vxpose.xlu0.b32.cont [14/16] 0.0, 128
        %3417 = vxpose.xlu0.b32.cont [15/16] 0.0, 128
        %3418 = vxpose.xlu0.b32.end [16/16] 0.0, 128
        %v3419 = vpop.trf.xlu0
        %v3420 = vpop.trf.xlu0
        %v3421 = vpop.trf.xlu0
        %v3422 = vpop.trf.xlu0
        %v3423 = vpop.trf.xlu0
        %v3424 = vpop.trf.xlu0
        %v3425 = vpop.trf.xlu0
        %v3426 = vpop.trf.xlu0
        %v3427 = vpop.trf.xlu0
        %v3428 = vpop.trf.xlu0
        %v3429 = vpop.trf.xlu0
        %v3430 = vpop.trf.xlu0
        %v3431 = vpop.trf.xlu0
        %v3432 = vpop.trf.xlu0
        %v3433 = vpop.trf.xlu0
        %v3434 = vpop.trf.xlu0
        %3435 = vxpose.xlu0.b32.start [1/16] %v3328, 128
        %3436 = vxpose.xlu0.b32.cont [2/16] %v3330, 128
        %3437 = vxpose.xlu0.b32.cont [3/16] 0.0, 128
        %3438 = vxpose.xlu0.b32.cont [4/16] 0.0, 128
        %3439 = vxpose.xlu0.b32.cont [5/16] 0.0, 128
        %3440 = vxpose.xlu0.b32.cont [6/16] 0.0, 128
        %3441 = vxpose.xlu0.b32.cont [7/16] 0.0, 128
        %3442 = vxpose.xlu0.b32.cont [8/16] 0.0, 128
        %3443 = vxpose.xlu0.b32.cont [9/16] 0.0, 128
        %3444 = vxpose.xlu0.b32.cont [10/16] 0.0, 128
        %3445 = vxpose.xlu0.b32.cont [11/16] 0.0, 128
        %3446 = vxpose.xlu0.b32.cont [12/16] 0.0, 128
        %3447 = vxpose.xlu0.b32.cont [13/16] 0.0, 128
        %3448 = vxpose.xlu0.b32.cont [14/16] 0.0, 128
        %3449 = vxpose.xlu0.b32.cont [15/16] 0.0, 128
        %3450 = vxpose.xlu0.b32.end [16/16] 0.0, 128
        %v3451 = vpop.trf.xlu0
        %v3452 = vpop.trf.xlu0
        %v3453 = vpop.trf.xlu0
        %v3454 = vpop.trf.xlu0
        %v3455 = vpop.trf.xlu0
        %v3456 = vpop.trf.xlu0
        %v3457 = vpop.trf.xlu0
        %v3458 = vpop.trf.xlu0
        %v3459 = vpop.trf.xlu0
        %v3460 = vpop.trf.xlu0
        %v3461 = vpop.trf.xlu0
        %v3462 = vpop.trf.xlu0
        %v3463 = vpop.trf.xlu0
        %v3464 = vpop.trf.xlu0
        %v3465 = vpop.trf.xlu0
        %v3466 = vpop.trf.xlu0
        %v3468 = vsel %vm1719, %v3355, 0
        %v3471 = vsel %vm1719, %v3209, 0
        %v3474 = vsel %vm1719, %v3224, 0
        %3476 = vmatpush.xpose.msra.mxu0 0.0
        %3477 = vmatpush.xpose.msra.mxu0 0.0
        %3478 = vmatpush.xpose.msra.mxu0 0.0
        %3479 = vmatpush.xpose.msra.mxu0 0.0
        %3480 = vmatpush.xpose.msra.mxu0 0.0
        %3481 = vmatpush.xpose.msra.mxu0 0.0
        %3482 = vmatpush.xpose.msra.mxu0 0.0
        %3483 = vmatpush.xpose.msra.mxu0 0.0
        %3484 = vmatpush.xpose.msra.mxu0 0.0
        %3485 = vmatpush.xpose.msra.mxu0 0.0
        %3486 = vmatpush.xpose.msra.mxu0 0.0
        %3487 = vmatpush.xpose.msra.mxu0 0.0
        %3488 = vmatpush.xpose.msra.mxu0 0.0
        %3489 = vmatpush.xpose.msra.mxu0 0.0
        %3490 = vmatpush.xpose.msra.mxu0 %v3474
        %3491 = vmatpush.xpose.msra.mxu0 %v3471
        %3492 = vmatmul.f32.gmra.mxu0 %v3468
        %v3493 = vpop.f32.mrf.mxu0
        %v3494 = vadd.f32 0.0, %v3493
        %3495 = vdwg.mxu0
        %v3497 = vsel %vm1719, %v3387, 0
        %v3500 = vsel %vm1719, %v3239, 0
        %v3503 = vsel %vm1719, %v3254, 0
        %3505 = vmatpush.xpose.msra.mxu0 0.0
        %3506 = vmatpush.xpose.msra.mxu0 0.0
        %3507 = vmatpush.xpose.msra.mxu0 0.0
        %3508 = vmatpush.xpose.msra.mxu0 0.0
        %3509 = vmatpush.xpose.msra.mxu0 0.0
        %3510 = vmatpush.xpose.msra.mxu0 0.0
        %3511 = vmatpush.xpose.msra.mxu0 0.0
        %3512 = vmatpush.xpose.msra.mxu0 0.0
        %3513 = vmatpush.xpose.msra.mxu0 0.0
        %3514 = vmatpush.xpose.msra.mxu0 0.0
        %3515 = vmatpush.xpose.msra.mxu0 0.0
        %3516 = vmatpush.xpose.msra.mxu0 0.0
        %3517 = vmatpush.xpose.msra.mxu0 0.0
        %3518 = vmatpush.xpose.msra.mxu0 0.0
        %3519 = vmatpush.xpose.msra.mxu0 %v3503
        %3520 = vmatpush.xpose.msra.mxu0 %v3500
        %3521 = vmatmul.f32.gmra.mxu0 %v3497
        %v3522 = vpop.f32.mrf.mxu0
        %v3523 = vadd.f32 0.0, %v3522
        %3524 = vdwg.mxu0
        %v3526 = vsel %vm1719, %v3419, 0
        %v3529 = vsel %vm1719, %v3269, 0
        %v3532 = vsel %vm1719, %v3284, 0
        %3534 = vmatpush.xpose.msra.mxu0 0.0
        %3535 = vmatpush.xpose.msra.mxu0 0.0
        %3536 = vmatpush.xpose.msra.mxu0 0.0
        %3537 = vmatpush.xpose.msra.mxu0 0.0
        %3538 = vmatpush.xpose.msra.mxu0 0.0
        %3539 = vmatpush.xpose.msra.mxu0 0.0
        %3540 = vmatpush.xpose.msra.mxu0 0.0
        %3541 = vmatpush.xpose.msra.mxu0 0.0
        %3542 = vmatpush.xpose.msra.mxu0 0.0
        %3543 = vmatpush.xpose.msra.mxu0 0.0
        %3544 = vmatpush.xpose.msra.mxu0 0.0
        %3545 = vmatpush.xpose.msra.mxu0 0.0
        %3546 = vmatpush.xpose.msra.mxu0 0.0
        %3547 = vmatpush.xpose.msra.mxu0 0.0
        %3548 = vmatpush.xpose.msra.mxu0 %v3532
        %3549 = vmatpush.xpose.msra.mxu0 %v3529
        %3550 = vmatmul.f32.gmra.mxu0 %v3526
        %v3551 = vpop.f32.mrf.mxu0
        %v3552 = vadd.f32 0.0, %v3551
        %3553 = vdwg.mxu0
        %v3555 = vsel %vm1719, %v3451, 0
        %v3558 = vsel %vm1719, %v3299, 0
        %v3561 = vsel %vm1719, %v3314, 0
        %3563 = vmatpush.xpose.msra.mxu0 0.0
        %3564 = vmatpush.xpose.msra.mxu0 0.0
        %3565 = vmatpush.xpose.msra.mxu0 0.0
        %3566 = vmatpush.xpose.msra.mxu0 0.0
        %3567 = vmatpush.xpose.msra.mxu0 0.0
        %3568 = vmatpush.xpose.msra.mxu0 0.0
        %3569 = vmatpush.xpose.msra.mxu0 0.0
        %3570 = vmatpush.xpose.msra.mxu0 0.0
        %3571 = vmatpush.xpose.msra.mxu0 0.0
        %3572 = vmatpush.xpose.msra.mxu0 0.0
        %3573 = vmatpush.xpose.msra.mxu0 0.0
        %3574 = vmatpush.xpose.msra.mxu0 0.0
        %3575 = vmatpush.xpose.msra.mxu0 0.0
        %3576 = vmatpush.xpose.msra.mxu0 0.0
        %3577 = vmatpush.xpose.msra.mxu0 %v3561
        %3578 = vmatpush.xpose.msra.mxu0 %v3558
        %3579 = vmatmul.f32.gmra.mxu0 %v3555
        %v3580 = vpop.f32.mrf.mxu0
        %v3581 = vadd.f32 0.0, %v3580
        %3582 = vdwg.mxu0
        %3583 = vxpose.xlu0.b32.start [1/16] %v3494, 128
        %3584 = vxpose.xlu0.b32.cont [2/16] 0.0, 128
        %3585 = vxpose.xlu0.b32.cont [3/16] 0.0, 128
        %3586 = vxpose.xlu0.b32.cont [4/16] 0.0, 128
        %3587 = vxpose.xlu0.b32.cont [5/16] 0.0, 128
        %3588 = vxpose.xlu0.b32.cont [6/16] 0.0, 128
        %3589 = vxpose.xlu0.b32.cont [7/16] 0.0, 128
        %3590 = vxpose.xlu0.b32.cont [8/16] 0.0, 128
        %3591 = vxpose.xlu0.b32.cont [9/16] 0.0, 128
        %3592 = vxpose.xlu0.b32.cont [10/16] 0.0, 128
        %3593 = vxpose.xlu0.b32.cont [11/16] 0.0, 128
        %3594 = vxpose.xlu0.b32.cont [12/16] 0.0, 128
        %3595 = vxpose.xlu0.b32.cont [13/16] 0.0, 128
        %3596 = vxpose.xlu0.b32.cont [14/16] 0.0, 128
        %3597 = vxpose.xlu0.b32.cont [15/16] 0.0, 128
        %3598 = vxpose.xlu0.b32.end [16/16] 0.0, 128
        %v3599 = vpop.trf.xlu0
        %v3600 = vpop.trf.xlu0
        %v3601 = vpop.trf.xlu0
        %v3602 = vpop.trf.xlu0
        %v3603 = vpop.trf.xlu0
        %v3604 = vpop.trf.xlu0
        %v3605 = vpop.trf.xlu0
        %v3606 = vpop.trf.xlu0
        %v3607 = vpop.trf.xlu0
        %v3608 = vpop.trf.xlu0
        %v3609 = vpop.trf.xlu0
        %v3610 = vpop.trf.xlu0
        %v3611 = vpop.trf.xlu0
        %v3612 = vpop.trf.xlu0
        %v3613 = vpop.trf.xlu0
        %v3614 = vpop.trf.xlu0
        %3615 = vxpose.xlu0.b32.start [1/16] %v3523, 128
        %3616 = vxpose.xlu0.b32.cont [2/16] 0.0, 128
        %3617 = vxpose.xlu0.b32.cont [3/16] 0.0, 128
        %3618 = vxpose.xlu0.b32.cont [4/16] 0.0, 128
        %3619 = vxpose.xlu0.b32.cont [5/16] 0.0, 128
        %3620 = vxpose.xlu0.b32.cont [6/16] 0.0, 128
        %3621 = vxpose.xlu0.b32.cont [7/16] 0.0, 128
        %3622 = vxpose.xlu0.b32.cont [8/16] 0.0, 128
        %3623 = vxpose.xlu0.b32.cont [9/16] 0.0, 128
        %3624 = vxpose.xlu0.b32.cont [10/16] 0.0, 128
        %3625 = vxpose.xlu0.b32.cont [11/16] 0.0, 128
        %3626 = vxpose.xlu0.b32.cont [12/16] 0.0, 128
        %3627 = vxpose.xlu0.b32.cont [13/16] 0.0, 128
        %3628 = vxpose.xlu0.b32.cont [14/16] 0.0, 128
        %3629 = vxpose.xlu0.b32.cont [15/16] 0.0, 128
        %3630 = vxpose.xlu0.b32.end [16/16] 0.0, 128
        %v3631 = vpop.trf.xlu0
        %v3632 = vpop.trf.xlu0
        %v3633 = vpop.trf.xlu0
        %v3634 = vpop.trf.xlu0
        %v3635 = vpop.trf.xlu0
        %v3636 = vpop.trf.xlu0
        %v3637 = vpop.trf.xlu0
        %v3638 = vpop.trf.xlu0
        %v3639 = vpop.trf.xlu0
        %v3640 = vpop.trf.xlu0
        %v3641 = vpop.trf.xlu0
        %v3642 = vpop.trf.xlu0
        %v3643 = vpop.trf.xlu0
        %v3644 = vpop.trf.xlu0
        %v3645 = vpop.trf.xlu0
        %v3646 = vpop.trf.xlu0
        %3647 = vxpose.xlu0.b32.start [1/16] %v3552, 128
        %3648 = vxpose.xlu0.b32.cont [2/16] 0.0, 128
        %3649 = vxpose.xlu0.b32.cont [3/16] 0.0, 128
        %3650 = vxpose.xlu0.b32.cont [4/16] 0.0, 128
        %3651 = vxpose.xlu0.b32.cont [5/16] 0.0, 128
        %3652 = vxpose.xlu0.b32.cont [6/16] 0.0, 128
        %3653 = vxpose.xlu0.b32.cont [7/16] 0.0, 128
        %3654 = vxpose.xlu0.b32.cont [8/16] 0.0, 128
        %3655 = vxpose.xlu0.b32.cont [9/16] 0.0, 128
        %3656 = vxpose.xlu0.b32.cont [10/16] 0.0, 128
        %3657 = vxpose.xlu0.b32.cont [11/16] 0.0, 128
        %3658 = vxpose.xlu0.b32.cont [12/16] 0.0, 128
        %3659 = vxpose.xlu0.b32.cont [13/16] 0.0, 128
        %3660 = vxpose.xlu0.b32.cont [14/16] 0.0, 128
        %3661 = vxpose.xlu0.b32.cont [15/16] 0.0, 128
        %3662 = vxpose.xlu0.b32.end [16/16] 0.0, 128
        %v3663 = vpop.trf.xlu0
        %v3664 = vpop.trf.xlu0
        %v3665 = vpop.trf.xlu0
        %v3666 = vpop.trf.xlu0
        %v3667 = vpop.trf.xlu0
        %v3668 = vpop.trf.xlu0
        %v3669 = vpop.trf.xlu0
        %v3670 = vpop.trf.xlu0
        %v3671 = vpop.trf.xlu0
        %v3672 = vpop.trf.xlu0
        %v3673 = vpop.trf.xlu0
        %v3674 = vpop.trf.xlu0
        %v3675 = vpop.trf.xlu0
        %v3676 = vpop.trf.xlu0
        %v3677 = vpop.trf.xlu0
        %v3678 = vpop.trf.xlu0
        %3679 = vxpose.xlu0.b32.start [1/16] %v3581, 128
        %3680 = vxpose.xlu0.b32.cont [2/16] 0.0, 128
        %3681 = vxpose.xlu0.b32.cont [3/16] 0.0, 128
        %3682 = vxpose.xlu0.b32.cont [4/16] 0.0, 128
        %3683 = vxpose.xlu0.b32.cont [5/16] 0.0, 128
        %3684 = vxpose.xlu0.b32.cont [6/16] 0.0, 128
        %3685 = vxpose.xlu0.b32.cont [7/16] 0.0, 128
        %3686 = vxpose.xlu0.b32.cont [8/16] 0.0, 128
        %3687 = vxpose.xlu0.b32.cont [9/16] 0.0, 128
        %3688 = vxpose.xlu0.b32.cont [10/16] 0.0, 128
        %3689 = vxpose.xlu0.b32.cont [11/16] 0.0, 128
        %3690 = vxpose.xlu0.b32.cont [12/16] 0.0, 128
        %3691 = vxpose.xlu0.b32.cont [13/16] 0.0, 128
        %3692 = vxpose.xlu0.b32.cont [14/16] 0.0, 128
        %3693 = vxpose.xlu0.b32.cont [15/16] 0.0, 128
        %3694 = vxpose.xlu0.b32.end [16/16] 0.0, 128
        %v3695 = vpop.trf.xlu0
        %v3696 = vpop.trf.xlu0
        %v3697 = vpop.trf.xlu0
        %v3698 = vpop.trf.xlu0
        %v3699 = vpop.trf.xlu0
        %v3700 = vpop.trf.xlu0
        %v3701 = vpop.trf.xlu0
        %v3702 = vpop.trf.xlu0
        %v3703 = vpop.trf.xlu0
        %v3704 = vpop.trf.xlu0
        %v3705 = vpop.trf.xlu0
        %v3706 = vpop.trf.xlu0
        %v3707 = vpop.trf.xlu0
        %v3708 = vpop.trf.xlu0
        %v3709 = vpop.trf.xlu0
        %v3710 = vpop.trf.xlu0
        %v3711 = vrot.slane %v3663, 4
        %v3712 = vsel %vm2309, %v3711, %v3599
        %v3713 = vrot.slane %v3599, 4
        %v3714 = vsel %vm2309, %v3663, %v3713
        %v3716 = vunpack.c.l.s4 1983009808
        %v3717 = vunpack.c.0.s8 %v3716
        %v3718 = vperm.slane %v3712, %v3717
        %v3720 = vunpack.c.l.s4 1983009808
        %v3721 = vunpack.c.0.s8 %v3720
        %v3722 = vperm.slane %v3714, %v3721
        %v3723 = vrot.slane %v3695, 4
        %v3724 = vsel %vm2309, %v3723, %v3631
        %v3725 = vrot.slane %v3631, 4
        %v3726 = vsel %vm2309, %v3695, %v3725
        %v3728 = vunpack.c.l.s4 1983009808
        %v3729 = vunpack.c.0.s8 %v3728
        %v3730 = vperm.slane %v3724, %v3729
        %v3732 = vunpack.c.l.s4 1983009808
        %v3733 = vunpack.c.0.s8 %v3732
        %v3734 = vperm.slane %v3726, %v3733
        %v3735 = vrot.slane %v3730, 4
        %v3736 = vsel %vm2309, %v3735, %v3718
        %v3737 = vrot.slane %v3718, 4
        %v3738 = vsel %vm2309, %v3730, %v3737
        %v3740 = vunpack.c.l.s4 1934713408
        %v3741 = vunpack.c.0.s8 %v3740
        %v3742 = vperm.slane %v3736, %v3741
        %v3744 = vunpack.c.l.s4 1934713408
        %v3745 = vunpack.c.0.s8 %v3744
        %v3746 = vperm.slane %v3738, %v3745
        %v3747 = vrot.slane %v3734, 4
        %v3748 = vsel %vm2309, %v3747, %v3722
        %v3749 = vrot.slane %v3722, 4
        %v3750 = vsel %vm2309, %v3734, %v3749
        %v3752 = vunpack.c.l.s4 1934713408
        %v3753 = vunpack.c.0.s8 %v3752
        %v3754 = vperm.slane %v3748, %v3753
        %v3756 = vunpack.c.l.s4 1934713408
        %v3757 = vunpack.c.0.s8 %v3756
        %v3758 = vperm.slane %v3750, %v3757
        %v3759 = vrot.slane %v3742, 4
        %v3760 = vsel %vm2309, 0.0, %v3759
        %v3761 = vrot.slane %v3746, 4
        %v3762 = vsel %vm2309, 0.0, %v3761
        %v3763 = vrot.slane %v3754, 4
        %v3764 = vsel %vm2309, 0.0, %v3763
        %v3765 = vrot.slane %v3758, 4
        %v3766 = vsel %vm2309, 0.0, %v3765
        %v3767 = vrot.slane %v3664, 4
        %v3768 = vsel %vm2309, %v3767, %v3600
        %v3769 = vrot.slane %v3600, 4
        %v3770 = vsel %vm2309, %v3664, %v3769
        %v3772 = vunpack.c.l.s4 1983009808
        %v3773 = vunpack.c.0.s8 %v3772
        %v3774 = vperm.slane %v3768, %v3773
        %v3776 = vunpack.c.l.s4 1983009808
        %v3777 = vunpack.c.0.s8 %v3776
        %v3778 = vperm.slane %v3770, %v3777
        %v3779 = vrot.slane %v3696, 4
        %v3780 = vsel %vm2309, %v3779, %v3632
        %v3781 = vrot.slane %v3632, 4
        %v3782 = vsel %vm2309, %v3696, %v3781
        %v3784 = vunpack.c.l.s4 1983009808
        %v3785 = vunpack.c.0.s8 %v3784
        %v3786 = vperm.slane %v3780, %v3785
        %v3788 = vunpack.c.l.s4 1983009808
        %v3789 = vunpack.c.0.s8 %v3788
        %v3790 = vperm.slane %v3782, %v3789
        %v3791 = vrot.slane %v3786, 4
        %v3792 = vsel %vm2309, %v3791, %v3774
        %v3793 = vrot.slane %v3774, 4
        %v3794 = vsel %vm2309, %v3786, %v3793
        %v3796 = vunpack.c.l.s4 1934713408
        %v3797 = vunpack.c.0.s8 %v3796
        %v3798 = vperm.slane %v3792, %v3797
        %v3800 = vunpack.c.l.s4 1934713408
        %v3801 = vunpack.c.0.s8 %v3800
        %v3802 = vperm.slane %v3794, %v3801
        %v3803 = vrot.slane %v3790, 4
        %v3804 = vsel %vm2309, %v3803, %v3778
        %v3805 = vrot.slane %v3778, 4
        %v3806 = vsel %vm2309, %v3790, %v3805
        %v3808 = vunpack.c.l.s4 1934713408
        %v3809 = vunpack.c.0.s8 %v3808
        %v3810 = vperm.slane %v3804, %v3809
        %v3812 = vunpack.c.l.s4 1934713408
        %v3813 = vunpack.c.0.s8 %v3812
        %v3814 = vperm.slane %v3806, %v3813
        %v3815 = vrot.slane %v3798, 4
        %v3816 = vsel %vm2309, 0.0, %v3815
        %v3817 = vrot.slane %v3802, 4
        %v3818 = vsel %vm2309, 0.0, %v3817
        %v3819 = vrot.slane %v3810, 4
        %v3820 = vsel %vm2309, 0.0, %v3819
        %v3821 = vrot.slane %v3814, 4
        %v3822 = vsel %vm2309, 0.0, %v3821
        %v3823 = vsel %vm2309, %v3761, %v3742
        %v3825 = vunpack.c.l.s4 1983009808
        %v3826 = vunpack.c.0.s8 %v3825
        %v3827 = vperm.slane %v3823, %v3826
        %v3828 = vrot.slane %v3762, 4
        %v3829 = vsel %vm2309, %v3828, %v3760
        %v3831 = vunpack.c.l.s4 1983009808
        %v3832 = vunpack.c.0.s8 %v3831
        %v3833 = vperm.slane %v3829, %v3832
        %v3834 = vsel %vm2309, %v3765, %v3754
        %v3836 = vunpack.c.l.s4 1983009808
        %v3837 = vunpack.c.0.s8 %v3836
        %v3838 = vperm.slane %v3834, %v3837
        %v3839 = vrot.slane %v3766, 4
        %v3840 = vsel %vm2309, %v3839, %v3764
        %v3842 = vunpack.c.l.s4 1983009808
        %v3843 = vunpack.c.0.s8 %v3842
        %v3844 = vperm.slane %v3840, %v3843
        %v3845 = vrot.slane %v3833, 4
        %v3846 = vsel %vm2309, %v3845, %v3827
        %v3847 = vrot.slane %v3827, 4
        %v3848 = vsel %vm2309, %v3833, %v3847
        %v3850 = vunpack.c.l.s4 1934713408
        %v3851 = vunpack.c.0.s8 %v3850
        %v3852 = vperm.slane %v3846, %v3851
        %v3854 = vunpack.c.l.s4 1934713408
        %v3855 = vunpack.c.0.s8 %v3854
        %v3856 = vperm.slane %v3848, %v3855
        %v3857 = vrot.slane %v3844, 4
        %v3858 = vsel %vm2309, %v3857, %v3838
        %v3859 = vrot.slane %v3838, 4
        %v3860 = vsel %vm2309, %v3844, %v3859
        %v3862 = vunpack.c.l.s4 1934713408
        %v3863 = vunpack.c.0.s8 %v3862
        %v3864 = vperm.slane %v3858, %v3863
        %v3866 = vunpack.c.l.s4 1934713408
        %v3867 = vunpack.c.0.s8 %v3866
        %v3868 = vperm.slane %v3860, %v3867
        %v3869 = vrot.slane %v3864, 4
        %v3870 = vsel %vm2309, %v3869, %v3852
        %v3871 = vrot.slane %v3852, 4
        %v3872 = vsel %vm2309, %v3864, %v3871
        %v3873 = vrot.slane %v3868, 4
        %v3874 = vsel %vm2309, %v3873, %v3856
        %v3875 = vrot.slane %v3856, 4
        %v3876 = vsel %vm2309, %v3868, %v3875
        %v3877 = vsel %vm2309, %v3817, %v3798
        %v3879 = vunpack.c.l.s4 1983009808
        %v3880 = vunpack.c.0.s8 %v3879
        %v3881 = vperm.slane %v3877, %v3880
        %v3882 = vrot.slane %v3818, 4
        %v3883 = vsel %vm2309, %v3882, %v3816
        %v3885 = vunpack.c.l.s4 1983009808
        %v3886 = vunpack.c.0.s8 %v3885
        %v3887 = vperm.slane %v3883, %v3886
        %v3888 = vsel %vm2309, %v3821, %v3810
        %v3890 = vunpack.c.l.s4 1983009808
        %v3891 = vunpack.c.0.s8 %v3890
        %v3892 = vperm.slane %v3888, %v3891
        %v3893 = vrot.slane %v3822, 4
        %v3894 = vsel %vm2309, %v3893, %v3820
        %v3896 = vunpack.c.l.s4 1983009808
        %v3897 = vunpack.c.0.s8 %v3896
        %v3898 = vperm.slane %v3894, %v3897
        %v3899 = vrot.slane %v3887, 4
        %v3900 = vsel %vm2309, %v3899, %v3881
        %v3901 = vrot.slane %v3881, 4
        %v3902 = vsel %vm2309, %v3887, %v3901
        %v3904 = vunpack.c.l.s4 1934713408
        %v3905 = vunpack.c.0.s8 %v3904
        %v3906 = vperm.slane %v3900, %v3905
        %v3908 = vunpack.c.l.s4 1934713408
        %v3909 = vunpack.c.0.s8 %v3908
        %v3910 = vperm.slane %v3902, %v3909
        %v3911 = vrot.slane %v3898, 4
        %v3912 = vsel %vm2309, %v3911, %v3892
        %v3913 = vrot.slane %v3892, 4
        %v3914 = vsel %vm2309, %v3898, %v3913
        %v3916 = vunpack.c.l.s4 1934713408
        %v3917 = vunpack.c.0.s8 %v3916
        %v3918 = vperm.slane %v3912, %v3917
        %v3920 = vunpack.c.l.s4 1934713408
        %v3921 = vunpack.c.0.s8 %v3920
        %v3922 = vperm.slane %v3914, %v3921
        %v3923 = vrot.slane %v3918, 4
        %v3924 = vsel %vm2309, %v3923, %v3906
        %v3925 = vrot.slane %v3906, 4
        %v3926 = vsel %vm2309, %v3918, %v3925
        %v3927 = vrot.slane %v3922, 4
        %v3928 = vsel %vm2309, %v3927, %v3910
        %v3929 = vrot.slane %v3910, 4
        %v3930 = vsel %vm2309, %v3922, %v3929
        %3933 = vrot.lane.b32.xlu0 %v3872, 8
        %v3934 = vpop.permute.xlu0 %3933
        %3935 = vrot.lane.b32.xlu0 %v3926, 8
        %v3936 = vpop.permute.xlu0 %3935
        %3941 = vrot.lane.b32.xlu0 %v3874, 16
        %v3942 = vpop.permute.xlu0 %3941
        %3943 = vrot.lane.b32.xlu0 %v3928, 16
        %v3944 = vpop.permute.xlu0 %3943
        %3949 = vrot.lane.b32.xlu0 %v3876, 24
        %v3950 = vpop.permute.xlu0 %3949
        %3951 = vrot.lane.b32.xlu0 %v3930, 24
        %v3952 = vpop.permute.xlu0 %3951
        %v3955 = vsel %vm1610, %v3870, %v3934
        %v3956 = vsel %vm1610, %v3924, %v3936
        %v3957 = vsel %vm1719, %v3955, %v3942
        %v3958 = vsel %vm1719, %v3956, %v3944
        %v3959 = vsel %vm2557, %v3957, %v3950
        %v3960 = vsel %vm2557, %v3958, %v3952
        %v3962 = vperm.slane %v2798, 0
        %v3965 = vsel %vm1288, %v3959, 0
        %v3968 = vsel %vm1288, %v3960, 0
        %3970 = vmatpush.msra.mxu0 0.0
        %3971 = vmatpush.msra.mxu0 0.0
        %3972 = vmatpush.msra.mxu0 0.0
        %3973 = vmatpush.msra.mxu0 0.0
        %3974 = vmatpush.msra.mxu0 0.0
        %3975 = vmatpush.msra.mxu0 0.0
        %3976 = vmatpush.msra.mxu0 0.0
        %3977 = vmatpush.msra.mxu0 0.0
        %3978 = vmatpush.msra.mxu0 0.0
        %3979 = vmatpush.msra.mxu0 0.0
        %3980 = vmatpush.msra.mxu0 0.0
        %3981 = vmatpush.msra.mxu0 0.0
        %3982 = vmatpush.msra.mxu0 %v2797
        %3983 = vmatpush.msra.mxu0 %v2796
        %3984 = vmatpush.msra.mxu0 %v2795
        %3985 = vmatpush.msra.mxu0 %v2794
        %3986 = vmatmul.f32.gmra.mxu0 %v3965
        %v3987 = vpop.f32.mrf.mxu0
        %v3988 = vadd.f32 %v3962, %v3987
        %3989 = vmatmul.f32.gmra.mxu0 %v3968
        %v3990 = vpop.f32.mrf.mxu0
        %v3991 = vadd.f32 %v3962, %v3990
        %3992 = vdwg.mxu0
        %v3993 = vadd.f32 %v2785, %v3988
        %v3994 = vadd.f32 %v2786, %v3991
        %v3995 = vsel %vm1288, %v3993, 0.0
        %3996 = vadd.xlane.f32.xlu0 %v3995
        %v3997 = vpop.xlane.xlu0 %3996
        %v3998 = vsel %vm1288, %v3994, 0.0
        %3999 = vadd.xlane.f32.xlu0 %v3998
        %v4000 = vpop.xlane.xlu0 %3999
        %v4001 = vmul.f32 %v3997, %v1301
        %v4002 = vmul.f32 %v4000, %v1301
        %v4003 = vsub.f32 %v3993, %v4001
        %v4004 = vsub.f32 %v3994, %v4002
        %v4005 = vmul.f32 %v4003, %v4003
        %v4006 = vmul.f32 %v4004, %v4004
        %v4007 = vsel %vm1288, %v4005, 0.0
        %4008 = vadd.xlane.f32.xlu0 %v4007
        %v4009 = vpop.xlane.xlu0 %4008
        %v4010 = vsel %vm1288, %v4006, 0.0
        %4011 = vadd.xlane.f32.xlu0 %v4010
        %v4012 = vpop.xlane.xlu0 %4011
        %v4013 = vmul.f32 %v4009, %v1301
        %v4014 = vmul.f32 %v4012, %v1301
        %v4015 = vadd.f32 %v4013, 1e-05
        %v4016 = vadd.f32 %v4014, 1e-05
        %v4017 = vrsqrt.pop %v4015
        %v4018 = vmul.f32 %v4017, %v4015
        %v4019 = vmul.f32 %v4018, %v4017
        %v4020 = vmul.f32 0.5, %v4019
        %v4021 = vsub.f32 1.5, %v4020
        %v4022 = vmul.f32 %v4017, %v4021
        %vm4023 = vweird.f32 %v4015
        %vm4024 = vweird.f32 %v4017
        %vm4025 = vmor %vm4023, %vm4024
        %v4026 = vsel %vm4025, %v4017, %v4022
        %v4027 = vrsqrt.pop %v4016
        %v4028 = vmul.f32 %v4027, %v4016
        %v4029 = vmul.f32 %v4028, %v4027
        %v4030 = vmul.f32 0.5, %v4029
        %v4031 = vsub.f32 1.5, %v4030
        %v4032 = vmul.f32 %v4027, %v4031
        %vm4033 = vweird.f32 %v4016
        %vm4034 = vweird.f32 %v4027
        %vm4035 = vmor %vm4033, %vm4034
        %v4036 = vsel %vm4035, %v4027, %v4032
        %v4037 = vmul.f32 %v4003, %v4026
        %v4038 = vmul.f32 %v4004, %v4036
        %v4040 = vperm.slane %v2799, 0
        %v4042 = vmul.f32 %v4037, %v4040
        %v4043 = vmul.f32 %v4038, %v4040
        %v4045 = vperm.slane %v2800, 0
        %v4047 = vadd.f32 %v4042, %v4045
        %v4048 = vadd.f32 %v4043, %v4045
        %v4050 = vperm.slane %v2805, 0
        %v4053 = vsel %vm1288, %v4047, 0
        %v4056 = vsel %vm1288, %v4048, 0
        %4058 = vmatpush.msra.mxu0 0.0
        %4059 = vmatpush.msra.mxu0 0.0
        %4060 = vmatpush.msra.mxu0 0.0
        %4061 = vmatpush.msra.mxu0 0.0
        %4062 = vmatpush.msra.mxu0 0.0
        %4063 = vmatpush.msra.mxu0 0.0
        %4064 = vmatpush.msra.mxu0 0.0
        %4065 = vmatpush.msra.mxu0 0.0
        %4066 = vmatpush.msra.mxu0 0.0
        %4067 = vmatpush.msra.mxu0 0.0
        %4068 = vmatpush.msra.mxu0 0.0
        %4069 = vmatpush.msra.mxu0 0.0
        %4070 = vmatpush.msra.mxu0 %v2804
        %4071 = vmatpush.msra.mxu0 %v2803
        %4072 = vmatpush.msra.mxu0 %v2802
        %4073 = vmatpush.msra.mxu0 %v2801
        %4074 = vmatmul.f32.gmra.mxu0 %v4053
        %v4075 = vpop.f32.mrf.mxu0
        %v4076 = vadd.f32 %v4050, %v4075
        %4077 = vmatmul.f32.gmra.mxu0 %v4056
        %v4078 = vpop.f32.mrf.mxu0
        %v4079 = vadd.f32 %v4050, %v4078
        %4080 = vdwg.mxu0
        %v4081 = vmul.f32 %v4076, %v4076
        %v4082 = vmul.f32 %v4079, %v4079
        %v4083 = vmul.f32 %v4076, %v4081
        %v4084 = vmul.f32 %v4079, %v4082
        %v4085 = vmul.f32 %v4083, 0.044715
        %v4086 = vmul.f32 %v4084, 0.044715
        %v4087 = vadd.f32 %v4076, %v4085
        %v4088 = vadd.f32 %v4079, %v4086
        %v4089 = vmul.f32 %v4087, 0.7978846
        %v4090 = vmul.f32 %v4088, 0.7978846
        %v4091 = vtanh.pop %v4089
        %v4092 = vtanh.pop %v4090
        %v4093 = vadd.f32 %v4091, 1.0
        %v4094 = vadd.f32 %v4092, 1.0
        %v4095 = vmul.f32 %v4093, 0.5
        %v4096 = vmul.f32 %v4094, 0.5
        %v4097 = vmul.f32 %v4076, %v4095
        %v4098 = vmul.f32 %v4079, %v4096
        %v4100 = vperm.slane %v2814, 0
        %v4103 = vsel %vm2701, %v4097, 0
        %v4106 = vsel %vm2701, %v4098, 0
        %4108 = vmatpush.msra.mxu0 0.0
        %4109 = vmatpush.msra.mxu0 0.0
        %4110 = vmatpush.msra.mxu0 0.0
        %4111 = vmatpush.msra.mxu0 0.0
        %4112 = vmatpush.msra.mxu0 0.0
        %4113 = vmatpush.msra.mxu0 0.0
        %4114 = vmatpush.msra.mxu0 0.0
        %4115 = vmatpush.msra.mxu0 0.0
        %4116 = vmatpush.msra.mxu0 %v2813
        %4117 = vmatpush.msra.mxu0 %v2812
        %4118 = vmatpush.msra.mxu0 %v2811
        %4119 = vmatpush.msra.mxu0 %v2810
        %4120 = vmatpush.msra.mxu0 %v2809
        %4121 = vmatpush.msra.mxu0 %v2808
        %4122 = vmatpush.msra.mxu0 %v2807
        %4123 = vmatpush.msra.mxu0 %v2806
        %4124 = vmatmul.f32.gmra.mxu0 %v4103
        %v4125 = vpop.f32.mrf.mxu0
        %v4126 = vadd.f32 %v4100, %v4125
        %4127 = vmatmul.f32.gmra.mxu0 %v4106
        %v4128 = vpop.f32.mrf.mxu0
        %v4129 = vadd.f32 %v4100, %v4128
        %4130 = vdwg.mxu0
        %v4131 = vadd.f32 %v4047, %v4126
        %v4132 = vadd.f32 %v4048, %v4129
        %v4133 = vsel %vm1288, %v4131, 0.0
        %4134 = vadd.xlane.f32.xlu0 %v4133
        %v4135 = vpop.xlane.xlu0 %4134
        %v4136 = vsel %vm1288, %v4132, 0.0
        %4137 = vadd.xlane.f32.xlu0 %v4136
        %v4138 = vpop.xlane.xlu0 %4137
        %v4139 = vmul.f32 %v4135, %v1301
        %v4140 = vmul.f32 %v4138, %v1301
        %v4141 = vsub.f32 %v4131, %v4139
        %v4142 = vsub.f32 %v4132, %v4140
        %v4143 = vmul.f32 %v4141, %v4141
        %v4144 = vmul.f32 %v4142, %v4142
        %v4145 = vsel %vm1288, %v4143, 0.0
        %4146 = vadd.xlane.f32.xlu0 %v4145
        %v4147 = vpop.xlane.xlu0 %4146
        %v4148 = vsel %vm1288, %v4144, 0.0
        %4149 = vadd.xlane.f32.xlu0 %v4148
        %v4150 = vpop.xlane.xlu0 %4149
        %v4151 = vmul.f32 %v4147, %v1301
        %v4152 = vmul.f32 %v4150, %v1301
        %v4153 = vadd.f32 %v4151, 1e-05
        %v4154 = vadd.f32 %v4152, 1e-05
        %v4155 = vrsqrt.pop %v4153
        %v4156 = vmul.f32 %v4155, %v4153
        %v4157 = vmul.f32 %v4156, %v4155
        %v4158 = vmul.f32 0.5, %v4157
        %v4159 = vsub.f32 1.5, %v4158
        %v4160 = vmul.f32 %v4155, %v4159
        %vm4161 = vweird.f32 %v4153
        %vm4162 = vweird.f32 %v4155
        %vm4163 = vmor %vm4161, %vm4162
        %v4164 = vsel %vm4163, %v4155, %v4160
        %v4165 = vrsqrt.pop %v4154
        %v4166 = vmul.f32 %v4165, %v4154
        %v4167 = vmul.f32 %v4166, %v4165
        %v4168 = vmul.f32 0.5, %v4167
        %v4169 = vsub.f32 1.5, %v4168
        %v4170 = vmul.f32 %v4165, %v4169
        %vm4171 = vweird.f32 %v4154
        %vm4172 = vweird.f32 %v4165
        %vm4173 = vmor %vm4171, %vm4172
        %v4174 = vsel %vm4173, %v4165, %v4170
        %v4175 = vmul.f32 %v4141, %v4164
        %v4176 = vmul.f32 %v4142, %v4174
        %v4178 = vperm.slane %v2815, 0
        %v4180 = vmul.f32 %v4175, %v4178
        %v4181 = vmul.f32 %v4176, %v4178
        %v4183 = vperm.slane %v2816, 0
        %v4185 = vadd.f32 %v4180, %v4183
        %v4186 = vadd.f32 %v4181, %v4183
        %4187 = vst.msk [vmem:[%s1197] sm:$0xff] %vm1288, %v4185
        %4188 = vst.msk [vmem:[%s1197 + $0x8] sm:$0xff] %vm1288, %v4186
        %s4189 = sand.u32 %s782, 1
        %s4190 = scalar_lea.sflag [#allocation4], %s4189
        %s4191 = sand.u32 %s782, 1
        %s4192 = smul.addr %s4191, 16
        %s4193 = scalar_lea.vmem [#allocation16], %s4192
        %s4194 = sand.u32 %s92, 1
        %s4195 = scalar_lea.sflag [#allocation18], %s4194
        %s4196 = sand.u32 %s808, 1
        %s4197 = smul.addr %s4196, 16
        %s4198 = scalar_lea.vmem [#allocation17], %s4197
        %s4199 = sand.u32 %s92, 1
        %s4200 = scalar_lea.sflag [#allocation18], %s4199
        %s4201 = sand.u32 %s834, 1
        %s4202 = smul.addr %s4201, 16
        %s4203 = scalar_lea.vmem [#allocation19], %s4202
        // Predicated region
        $region181: #{_lambda_.3} parent=147 // pred_check
          %p4204 = pneg %p792
        $region182: #{_lambda_.3} parent=147 // pred_check_branch
          %4206 = sbr.rel (%p4204) target = $region184
        $region183: #{_lambda_.3} parent=147 // pred_region
          %4208 = vsyncadd %s4190, 0
          %s4209 = smul.addr %s92, 2
          %s4210 = smul.addr %s4209, 8
          %s4211 = scalar_lea.hbm %s65, %s4210
          %s4212 = sshll.u32 %s4193, 4
          %s4213 = int_to_ptr.vmem [resolvable:$true] %s4212
          %s4214 = sshll.u32 %s4211, 4
          %s4215 = int_to_ptr.hbm [resolvable:$true] %s4214
          %4220 = dma.vmem_to_hbm [thread:$0]  %s4213, 256, %s4215, %s4190, 128, 128, 8
        $region184: #{_lambda_.3} parent=147 // pred_fallthru
          _
        // Predicated region
        $region185: #{_lambda_.3} parent=147 // pred_check
          %p4221 = pneg %p818
        $region186: #{_lambda_.3} parent=147 // pred_check_branch
          %4223 = sbr.rel (%p4221) target = $region188
        $region187: #{_lambda_.3} parent=147 // pred_region
          %4225 = vsyncadd %s4195, 0
          %s4226 = smul.addr %s92, 2
          %s4227 = smul.addr %s4226, 8
          %s4228 = scalar_lea.hbm %s67, %s4227
          %s4229 = sshll.u32 %s4198, 4
          %s4230 = int_to_ptr.vmem [resolvable:$true] %s4229
          %s4231 = sshll.u32 %s4228, 4
          %s4232 = int_to_ptr.hbm [resolvable:$true] %s4231
          %4237 = dma.vmem_to_hbm [thread:$0]  %s4230, 256, %s4232, %s4195, 128, 128, 8
        $region188: #{_lambda_.3} parent=147 // pred_fallthru
          _
        // Predicated region
        $region189: #{_lambda_.3} parent=147 // pred_check
          %p4238 = pneg %p844
        $region190: #{_lambda_.3} parent=147 // pred_check_branch
          %4240 = sbr.rel (%p4238) target = $region192
        $region191: #{_lambda_.3} parent=147 // pred_region
          %4242 = vsyncadd %s4200, 0
          %s4243 = smul.addr %s92, 2
          %s4244 = smul.addr %s4243, 8
          %s4245 = scalar_lea.hbm %s69, %s4244
          %s4246 = sshll.u32 %s4203, 4
          %s4247 = int_to_ptr.vmem [resolvable:$true] %s4246
          %s4248 = sshll.u32 %s4245, 4
          %s4249 = int_to_ptr.hbm [resolvable:$true] %s4248
          %4254 = dma.vmem_to_hbm [thread:$0]  %s4247, 256, %s4249, %s4200, 128, 128, 8
        $region192: #{_lambda_.3} parent=147 // pred_fallthru
          _
      $region148: #{_lambda_.3} parent=5 // pred_fallthru
        _
      %p4255 = scmp.le.s32.totalorder 2, %s87
      // Predicated region
      $region193: #{_lambda_.3} parent=5 // pred_check
        %p4256 = pneg %p4255
      $region194: #{_lambda_.3} parent=5 // pred_check_branch
        %4258 = sbr.rel (%p4256) target = $region196
      $region195: #{_lambda_.3} parent=5 // pred_region
        %s4259 = ssub.s32 %s87, 2
        // Predicated region
        $region197: #{_lambda_.3} parent=195 // pred_check
          %p4260 = pneg %p798
        $region198: #{_lambda_.3} parent=195 // pred_check_branch
          %4262 = sbr.rel (%p4260) target = $region200
        $region199: #{_lambda_.3} parent=195 // pred_region
          %s4263 = sand.u32 %s783, 1
          %s4264 = scalar_lea.sflag [#allocation4], %s4263
          %s4265 = sand.u32 %s783, 1
          %s4266 = smul.addr %s4265, 16
          %s4267 = scalar_lea.vmem [#allocation16], %s4266
          %4269 = dma.done %s4264, 256
        $region200: #{_lambda_.3} parent=195 // pred_fallthru
          _
        // Predicated region
        $region201: #{_lambda_.3} parent=195 // pred_check
          %p4270 = pneg %p824
        $region202: #{_lambda_.3} parent=195 // pred_check_branch
          %4272 = sbr.rel (%p4270) target = $region204
        $region203: #{_lambda_.3} parent=195 // pred_region
          %s4273 = sand.u32 %s93, 1
          %s4274 = scalar_lea.sflag [#allocation18], %s4273
          %s4275 = sand.u32 %s809, 1
          %s4276 = smul.addr %s4275, 16
          %s4277 = scalar_lea.vmem [#allocation17], %s4276
          %4279 = dma.done %s4274, 256
        $region204: #{_lambda_.3} parent=195 // pred_fallthru
          _
        // Predicated region
        $region205: #{_lambda_.3} parent=195 // pred_check
          %p4280 = pneg %p850
        $region206: #{_lambda_.3} parent=195 // pred_check_branch
          %4282 = sbr.rel (%p4280) target = $region208
        $region207: #{_lambda_.3} parent=195 // pred_region
          %s4283 = sand.u32 %s93, 1
          %s4284 = scalar_lea.sflag [#allocation18], %s4283
          %s4285 = sand.u32 %s835, 1
          %s4286 = smul.addr %s4285, 16
          %s4287 = scalar_lea.vmem [#allocation19], %s4286
          %4289 = dma.done %s4284, 256
        $region208: #{_lambda_.3} parent=195 // pred_fallthru
          _
      $region196: #{_lambda_.3} parent=5 // pred_fallthru
        _
    $region6: #{_lambda_.3} parent=1 // loop_footer
      %s91 = sadd.s32 1, %s87
    $region7: #{_lambda_.3} parent=1 // loop_footer_branch
      %86 = sbr.rel target = $region3
    $region8: #{_lambda_.3} parent=1 // loop_exit
      _
    %4290 = vsyncpa [#allocation3], 1
    %s4291 = scalar_lea.sflag [#allocation3], 1
    %4292 = vsyncpa %s4291, 1
    %4293 = vsyncpa [#allocation6], 1
    %4294 = vsyncpa [#allocation9], 1
    %4295 = vsyncpa [#allocation12], 1
    %4296 = vsyncpa [#allocation15], 1
    %4297 = vsyncpa [#allocation4], 1
    %s4298 = scalar_lea.sflag [#allocation4], 1
    %4299 = vsyncpa %s4298, 1
    %4300 = vsyncpa [#allocation18], 1
    %s4301 = scalar_lea.sflag [#allocation18], 1
    %4302 = vsyncpa %s4301, 1

</llo_original>
